<compile_context>
chip_gen: v6e
topology: v6e:2x2x1
jax: 0.10.0
libtpu: 0.0.40
codegen_flags: <defaults>
</compile_context>

<pallas_src>
import jax
import jax.numpy as jnp
from jax.experimental import pallas as pl
from jax.experimental.pallas import tpu as pltpu


def _round_up(v, m):
    return (v + m - 1) // m * m


def _vmem_capacity_bytes():
    """Physical VMEM per core; conservative 64 MiB (v7x) fallback."""
    try:
        info = pltpu.get_tpu_info()
        for attr in ("vmem_capacity_bytes", "vmem_bytes", "vmem_size_bytes"):
            v = getattr(info, attr, None)
            if v:
                return int(v)
    except Exception:
        pass
    return 64 * 1024 * 1024


def prepare_params(params, *, input_size, hidden_dim, output_dim, num_layers,
                   matmul_dtype=jnp.float32):
    """One-time padding / gate scatter (hoisted out of the per-call wrapper).

    Gate g is scattered to column offset g*Hp so in-kernel gate slices are
    zero-cost lane-aligned views.  Only the big hoisted-matmul weights take
    `matmul_dtype`; the recurrent w_hh and all biases stay f32.
    """
    In, H, O, L = input_size, hidden_dim, output_dim, num_layers
    f32 = jnp.float32
    In_p = _round_up(In, 128)
    Hp = _round_up(H, 128)
    Op = _round_up(O, 128)

    w1 = jnp.zeros((In_p, Hp), f32).at[:In, :H].set(params["w1"])
    b1 = jnp.zeros((1, Hp), f32).at[:, :H].set(params["b1"])
    w2 = jnp.zeros((Hp, Op), f32).at[:H, :O].set(params["w2"])
    # Class-padding mask baked into the bias: padded logit columns get -1e30 so
    # they vanish in the log-softmax without any in-kernel iota/where.
    b2 = jnp.full((1, Op), -1e30, f32).at[:, :O].set(params["b2"])

    w_ih = jnp.zeros((L, Hp, 3 * Hp), f32)
    w_hh = jnp.zeros((L, Hp, 3 * Hp), f32)
    b_ih = jnp.zeros((L, 1, 3 * Hp), f32)
    b_hh = jnp.zeros((L, 1, 3 * Hp), f32)
    for g in range(3):
        src = slice(g * H, (g + 1) * H)
        dst = slice(g * Hp, g * Hp + H)
        w_ih = w_ih.at[:, :H, dst].set(params["w_ih"][:, :, src])
        w_hh = w_hh.at[:, :H, dst].set(params["w_hh"][:, :, src])
        b_ih = b_ih.at[:, :, dst].set(params["b_ih"][:, :, src])
        b_hh = b_hh.at[:, :, dst].set(params["b_hh"][:, :, src])

    return {
        "w1": w1.astype(matmul_dtype), "b1": b1,
        "w_ih": w_ih.astype(matmul_dtype), "w_hh": w_hh,
        "b_ih": b_ih, "b_hh": b_hh,
        "w2": w2.astype(matmul_dtype), "b2": b2,
    }


def my_classifier_1b(x, prepared, *, num_layers, output_dim, time_chunk=64):
    """x: (B, S, input_size) f32 -> (B, S, output_dim) log-probabilities."""
    B, S, _In = x.shape
    L, O = num_layers, output_dim
    f32 = jnp.float32

    In_p, Hp = prepared["w1"].shape
    Op = prepared["w2"].shape[1]
    mm_dtype = prepared["w1"].dtype

    # Batch tiling: pad to a sublane multiple; aim for >=128 rows per tile when
    # batch allows (fills MXU rows, gives v7x's 2 cores a parallel axis).
    Bp = _round_up(B, 8)
    if Bp > 128:
        Btile = 128
        Bp = _round_up(Bp, Btile)
    else:
        Btile = Bp
    nb = Bp // Btile

    # Time chunking for the hoisted gi matmul (padded timesteps come after all
    # real ones, so their garbage never reaches a real output row).
    Tc = min(S, time_chunk)
    Sp = _round_up(S, Tc)
    n_chunks = Sp // Tc
    rows_per_chunk = Tc * Btile
    rows = Sp * Btile

    # ---- input: pad, per-tile time-major, flatten to lane-dense 2D slabs ----
    xp = jnp.zeros((Bp, Sp, In_p), f32).at[:B, :S, :_In].set(x)
    x3 = (xp.reshape(nb, Btile, Sp, In_p)
            .transpose(0, 2, 1, 3)                 # (nb, Sp, Btile, In_p)
            .reshape(nb, rows, In_p))

    def kernel(x_ref, w1_ref, b1_ref, wih_ref, whh_ref, bih_ref, bhh_ref,
               w2_ref, b2_ref, out_ref, seq_buf, gi_buf):
        layer = pl.program_id(1)

        # ---- linear1: once per batch tile, at the first layer grid step ----
        @pl.when(layer == 0)
        def _():
            seq_buf[...] = (
                jnp.dot(x_ref[...].astype(mm_dtype), w1_ref[...],
                        preferred_element_type=jnp.float32) + b1_ref[...])

        # Per-layer weights (this layer's block is VMEM-resident while the
        # pipeliner prefetches layer+1's block).
        w_ih_l = wih_ref[...]      # (Hp, 3Hp) matmul dtype
        b_ih_l = bih_ref[...]      # (1, 3Hp)  f32
        w_hh_l = whh_ref[...]      # (Hp, 3Hp) f32
        b_hh_l = bhh_ref[...]      # (1, 3Hp)  f32

        def chunk_body(c, h):
            row0 = pl.multiple_of(c * rows_per_chunk, 8)
            # Hoisted input->hidden matmul for Tc timesteps at once (MXU).
            gi_buf[...] = (
                jnp.dot(seq_buf[pl.ds(row0, rows_per_chunk), :].astype(mm_dtype),
                        w_ih_l, preferred_element_type=jnp.float32) + b_ih_l)

            def step(t, h_prev):
                r0 = pl.multiple_of(t * Btile, 8)
                gi = gi_buf[pl.ds(r0, Btile), :]        # precomputed, aligned
                gh = (jnp.dot(h_prev, w_hh_l,
                              preferred_element_type=jnp.float32) + b_hh_l)
                r = jax.nn.sigmoid(gi[:, 0 * Hp:1 * Hp] + gh[:, 0 * Hp:1 * Hp])
                z = jax.nn.sigmoid(gi[:, 1 * Hp:2 * Hp] + gh[:, 1 * Hp:2 * Hp])
                n = jnp.tanh(gi[:, 2 * Hp:3 * Hp] + r * gh[:, 2 * Hp:3 * Hp])
                h_new = (1.0 - z) * n + z * h_prev
                seq_buf[pl.ds(pl.multiple_of(row0 + r0, 8), Btile), :] = h_new
                return h_new                            # h carried in vregs

            return jax.lax.fori_loop(0, Tc, step, h, unroll=min(8, Tc))

        h0 = jnp.zeros((Btile, Hp), jnp.float32)        # hs=None path
        jax.lax.fori_loop(0, n_chunks, chunk_body, h0)

        # ---- final linear + log-softmax, only after the last layer ----
        @pl.when(layer == pl.num_programs(1) - 1)
        def _():
            logits = (jnp.dot(seq_buf[...].astype(mm_dtype), w2_ref[...],
                              preferred_element_type=jnp.float32) + b2_ref[...])
            m = jnp.max(logits, axis=-1, keepdims=True)
            shifted = logits - m
            lse = jnp.log(jnp.sum(jnp.exp(shifted), axis=-1, keepdims=True))
            out_ref[...] = shifted - lse                # lane-dense store

    # Generation-aware VMEM budget (double-buffered blocks + scratch + headroom).
    mm_b = jnp.dtype(mm_dtype).itemsize
    est = (2 * rows * In_p * 4                          # x block
           + In_p * Hp * mm_b + Hp * 4                 # w1, b1
           + 2 * Hp * 3 * Hp * (mm_b + 4)              # w_ih + w_hh (2-buffered)
           + 2 * 2 * 3 * Hp * 4                        # b_ih, b_hh
           + Hp * Op * mm_b + Op * 4                   # w2, b2
           + 2 * rows * Op * 4                         # out block
           + rows * Hp * 4                             # seq_buf scratch
           + rows_per_chunk * 3 * Hp * 4)              # gi chunk scratch
    cap = int(0.85 * _vmem_capacity_bytes())           # headroom for compiler scratch
    vmem_limit = min(max(int(1.25 * est), 16 * 1024 * 1024), cap)
    # TODO(synk): if 1.25*est exceeds cap at real 1B shapes, shrink time_chunk /
    #             batch tile (more streaming) instead of relying on the clamp.

    grid_spec = pltpu.PrefetchScalarGridSpec(
        num_scalar_prefetch=0,
        grid=(nb, L),
        in_specs=[
            pl.BlockSpec((None, rows, In_p), lambda b, l: (b, 0, 0)),   # x
            pl.BlockSpec((In_p, Hp), lambda b, l: (0, 0)),              # w1
            pl.BlockSpec((1, Hp), lambda b, l: (0, 0)),                 # b1
            pl.BlockSpec((None, Hp, 3 * Hp), lambda b, l: (l, 0, 0)),   # w_ih
            pl.BlockSpec((None, Hp, 3 * Hp), lambda b, l: (l, 0, 0)),   # w_hh
            pl.BlockSpec((None, 1, 3 * Hp), lambda b, l: (l, 0, 0)),    # b_ih
            pl.BlockSpec((None, 1, 3 * Hp), lambda b, l: (l, 0, 0)),    # b_hh
            pl.BlockSpec((Hp, Op), lambda b, l: (0, 0)),                # w2
            pl.BlockSpec((1, Op), lambda b, l: (0, 0)),                 # b2
        ],
        out_specs=pl.BlockSpec((None, rows, Op), lambda b, l: (b, 0, 0)),
        scratch_shapes=[
            pltpu.VMEM((rows, Hp), jnp.float32),                 # layer activations
            pltpu.VMEM((rows_per_chunk, 3 * Hp), jnp.float32),   # gi time-chunk
        ],
    )

    out3 = pl.pallas_call(
        kernel,
        out_shape=jax.ShapeDtypeStruct((nb, rows, Op), jnp.float32),
        grid_spec=grid_spec,
        compiler_params=pltpu.CompilerParams(
            dimension_semantics=("parallel", "arbitrary"),
            vmem_limit_bytes=vmem_limit),
    )(x3, prepared["w1"], prepared["b1"], prepared["w_ih"], prepared["w_hh"],
      prepared["b_ih"], prepared["b_hh"], prepared["w2"], prepared["b2"])

    out = (out3.reshape(nb, Sp, Btile, Op)
                .transpose(0, 2, 1, 3)                 # (nb, Btile, Sp, Op)
                .reshape(Bp, Sp, Op))[:B, :S, :O]
    return out                                         # (B, S, O), batch_first


def init_params(key, input_size, hidden_dim, output_dim, num_layers):
    In, H, O, L = input_size, hidden_dim, output_dim, num_layers
    ks = jax.random.split(key, 8)
    s = 0.1
    return {
        "w1":   s * jax.random.normal(ks[0], (In, H), jnp.float32),
        "b1":   s * jax.random.normal(ks[1], (1, H), jnp.float32),
        "w_ih": s * jax.random.normal(ks[2], (L, H, 3 * H), jnp.float32),
        "w_hh": s * jax.random.normal(ks[3], (L, H, 3 * H), jnp.float32),
        "b_ih": s * jax.random.normal(ks[4], (L, 1, 3 * H), jnp.float32),
        "b_hh": s * jax.random.normal(ks[5], (L, 1, 3 * H), jnp.float32),
        "w2":   s * jax.random.normal(ks[6], (H, O), jnp.float32),
        "b2":   s * jax.random.normal(ks[7], (1, O), jnp.float32),
    }


def reference(x, params, *, num_layers, hidden_dim):
    """Pure-JAX reproduction of the PyTorch forward pass for verification."""
    B, S, _ = x.shape
    H = hidden_dim
    seq = x @ params["w1"] + params["b1"][None]        # linear1
    for l in range(num_layers):
        h = jnp.zeros((B, H), jnp.float32)
        outs = []
        for t in range(S):
            x_t = seq[:, t, :]
            gi = x_t @ params["w_ih"][l] + params["b_ih"][l]
            gh = h @ params["w_hh"][l] + params["b_hh"][l]
            r = jax.nn.sigmoid(gi[:, :H] + gh[:, :H])
            z = jax.nn.sigmoid(gi[:, H:2 * H] + gh[:, H:2 * H])
            n = jnp.tanh(gi[:, 2 * H:] + r * gh[:, 2 * H:])
            h = (1.0 - z) * n + z * h
            outs.append(h)
        seq = jnp.stack(outs, axis=1)
    logits = seq @ params["w2"] + params["b2"][None]
    return jax.nn.log_softmax(logits, axis=2)


if __name__ == "__main__":
    batch, seq = 2, 8
    input_size, hidden_dim, output_dim, num_layers = 16, 32, 8, 2

    key = jax.random.PRNGKey(0)
    k_x, k_p = jax.random.split(key)
    x = jax.random.normal(k_x, (batch, seq, input_size), jnp.float32)
    params = init_params(k_p, input_size, hidden_dim, output_dim, num_layers)
    ref = reference(x, params, num_layers=num_layers, hidden_dim=hidden_dim)

    # f32 matmul path: must hold the 1e-4 bar.
    prep32 = prepare_params(params, input_size=input_size, hidden_dim=hidden_dim,
                            output_dim=output_dim, num_layers=num_layers,
                            matmul_dtype=jnp.float32)
    out = my_classifier_1b(x, prep32, num_layers=num_layers, output_dim=output_dim)
    out = jax.block_until_ready(out)
    assert out.shape == (batch, seq, output_dim)
    assert jnp.allclose(out, ref, rtol=1e-4, atol=1e-4), "f32 mismatch vs reference"

    # bf16 matmul-operand path (perf config): f32 accumulation, looser bar.
    prep16 = prepare_params(params, input_size=input_size, hidden_dim=hidden_dim,
                            output_dim=output_dim, num_layers=num_layers,
                            matmul_dtype=jnp.bfloat16)
    out16 = my_classifier_1b(x, prep16, num_layers=num_layers, output_dim=output_dim)
    out16 = jax.block_until_ready(out16)
    assert jnp.allclose(out16, ref, rtol=5e-2, atol=5e-2), "bf16 mismatch vs reference"

    print("KERNEL_OK")
</pallas_src>

<mosaic_0001>
module attributes {stable_mosaic.version = 11 : i64} {
  func.func @kernel(%arg0: i32, %arg1: i32, %arg2: memref<1x64x128xf32, #tpu.memory_space<vmem>>, %arg3: memref<128x128xf32, #tpu.memory_space<vmem>>, %arg4: memref<1x128xf32, #tpu.memory_space<vmem>>, %arg5: memref<1x128x384xf32, #tpu.memory_space<vmem>>, %arg6: memref<1x128x384xf32, #tpu.memory_space<vmem>>, %arg7: memref<1x1x384xf32, #tpu.memory_space<vmem>>, %arg8: memref<1x1x384xf32, #tpu.memory_space<vmem>>, %arg9: memref<128x128xf32, #tpu.memory_space<vmem>>, %arg10: memref<1x128xf32, #tpu.memory_space<vmem>>, %arg11: memref<1x64x128xf32, #tpu.memory_space<vmem>>, %arg12: memref<64x128xf32, #tpu.memory_space<vmem>>, %arg13: memref<64x384xf32, #tpu.memory_space<vmem>>) attributes {dimension_semantics = [#tpu.dimension_semantics<parallel>, #tpu.dimension_semantics<arbitrary>], iteration_bounds = array<i64: 1, 2>, scalar_prefetch = 0 : i64, scratch_operands = 2 : i64, tpu.core_type = #tpu.core_type<tc>, window_params = [{transform_indices = @transform_0, window_bounds = array<i64: 1, 64, 128>}, {pipeline_mode = #tpu.pipeline_mode<synchronous>, transform_indices = @transform_1, window_bounds = array<i64: 128, 128>}, {pipeline_mode = #tpu.pipeline_mode<synchronous>, transform_indices = @transform_2, window_bounds = array<i64: 1, 128>}, {transform_indices = @transform_3, window_bounds = array<i64: 1, 128, 384>}, {transform_indices = @transform_4, window_bounds = array<i64: 1, 128, 384>}, {transform_indices = @transform_5, window_bounds = array<i64: 1, 1, 384>}, {transform_indices = @transform_6, window_bounds = array<i64: 1, 1, 384>}, {pipeline_mode = #tpu.pipeline_mode<synchronous>, transform_indices = @transform_7, window_bounds = array<i64: 128, 128>}, {pipeline_mode = #tpu.pipeline_mode<synchronous>, transform_indices = @transform_8, window_bounds = array<i64: 1, 128>}, {transform_indices = @transform_9, window_bounds = array<i64: 1, 64, 128>}]} {
    %c0_i32 = arith.constant 0 : i32
    %0 = arith.cmpi eq, %arg1, %c0_i32 : i32
    %1 = arith.extui %0 : i1 to i32
    %c0_i32_0 = arith.constant 0 : i32
    %2 = arith.cmpi ne, %1, %c0_i32_0 : i32
    scf.if %2 {
      %c0_77 = arith.constant 0 : index
      %c0_78 = arith.constant 0 : index
      %c0_79 = arith.constant 0 : index
      %319 = vector.load %arg2[%c0_77, %c0_78, %c0_79] : memref<1x64x128xf32, #tpu.memory_space<vmem>>, vector<1x64x128xf32>
      %320 = vector.shape_cast %319 : vector<1x64x128xf32> to vector<64x128xf32>
      %c0_80 = arith.constant 0 : index
      %c0_81 = arith.constant 0 : index
      %321 = vector.load %arg3[%c0_80, %c0_81] : memref<128x128xf32, #tpu.memory_space<vmem>>, vector<128x128xf32>
      %cst_82 = arith.constant dense<0.000000e+00> : vector<64x128xf32>
      %322 = tpu.matmul %320, %321, %cst_82 {dimension_numbers = #tpu.dot_dimension_numbers<[1], [0], [0], [1], [0, 0, 1, 1], [], []>} : vector<64x128xf32>, vector<128x128xf32>, vector<64x128xf32> -> vector<64x128xf32>
      %c0_83 = arith.constant 0 : index
      %c0_84 = arith.constant 0 : index
      %323 = vector.load %arg4[%c0_83, %c0_84] : memref<1x128xf32, #tpu.memory_space<vmem>>, vector<1x128xf32>
      %324 = vector.broadcast %323 : vector<1x128xf32> to vector<64x128xf32>
      %325 = arith.addf %322, %324 : vector<64x128xf32>
      %c0_85 = arith.constant 0 : index
      %c0_86 = arith.constant 0 : index
      %326 = vector.load %arg12[%c0_85, %c0_86] : memref<64x128xf32, #tpu.memory_space<vmem>>, vector<64x128xf32>
      tpu.vector_store %arg12[%c0_85, %c0_86], %325 {strides = array<i32>} : memref<64x128xf32, #tpu.memory_space<vmem>>, vector<64x128xf32>,
    } else {
    }
    %c0 = arith.constant 0 : index
    %c0_1 = arith.constant 0 : index
    %c0_2 = arith.constant 0 : index
    %3 = vector.load %arg5[%c0, %c0_1, %c0_2] : memref<1x128x384xf32, #tpu.memory_space<vmem>>, vector<1x128x384xf32>
    %4 = vector.shape_cast %3 : vector<1x128x384xf32> to vector<128x384xf32>
    %c0_3 = arith.constant 0 : index
    %c0_4 = arith.constant 0 : index
    %c0_5 = arith.constant 0 : index
    %5 = vector.load %arg7[%c0_3, %c0_4, %c0_5] : memref<1x1x384xf32, #tpu.memory_space<vmem>>, vector<1x1x384xf32>
    %6 = vector.shape_cast %5 : vector<1x1x384xf32> to vector<1x384xf32>
    %c0_6 = arith.constant 0 : index
    %c0_7 = arith.constant 0 : index
    %c0_8 = arith.constant 0 : index
    %7 = vector.load %arg6[%c0_6, %c0_7, %c0_8] : memref<1x128x384xf32, #tpu.memory_space<vmem>>, vector<1x128x384xf32>
    %8 = vector.shape_cast %7 : vector<1x128x384xf32> to vector<128x384xf32>
    %c0_9 = arith.constant 0 : index
    %c0_10 = arith.constant 0 : index
    %c0_11 = arith.constant 0 : index
    %9 = vector.load %arg8[%c0_9, %c0_10, %c0_11] : memref<1x1x384xf32, #tpu.memory_space<vmem>>, vector<1x1x384xf32>
    %10 = vector.shape_cast %9 : vector<1x1x384xf32> to vector<1x384xf32>
    %cst = arith.constant 0.000000e+00 : f32
    %11 = vector.broadcast %cst : f32 to vector<8x128xf32>
    %c0_i32_12 = arith.constant 0 : i32
    %c64_i32 = arith.constant 64 : i32
    %12 = arith.muli %c0_i32_12, %c64_i32 : i32
    %13 = tpu.assume_multiple %12, 8 : i32
    %14 = arith.index_cast %13 : i32 to index
    %c0_13 = arith.constant 0 : index
    %15 = vector.load %arg12[%14, %c0_13] : memref<64x128xf32, #tpu.memory_space<vmem>>, vector<64x128xf32>
    %cst_14 = arith.constant dense<0.000000e+00> : vector<64x384xf32>
    %16 = tpu.matmul %15, %4, %cst_14 {dimension_numbers = #tpu.dot_dimension_numbers<[1], [0], [0], [1], [0, 0, 1, 1], [], []>} : vector<64x128xf32>, vector<128x384xf32>, vector<64x384xf32> -> vector<64x384xf32>
    %17 = vector.broadcast %6 : vector<1x384xf32> to vector<64x384xf32>
    %18 = arith.addf %16, %17 : vector<64x384xf32>
    %c0_15 = arith.constant 0 : index
    %c0_16 = arith.constant 0 : index
    %19 = vector.load %arg13[%c0_15, %c0_16] : memref<64x384xf32, #tpu.memory_space<vmem>>, vector<64x384xf32>
    tpu.vector_store %arg13[%c0_15, %c0_16], %18 {strides = array<i32>} : memref<64x384xf32, #tpu.memory_space<vmem>>, vector<64x384xf32>,
    %c0_i32_17 = arith.constant 0 : i32
    %c8_i32 = arith.constant 8 : i32
    %20 = arith.muli %c0_i32_17, %c8_i32 : i32
    %21 = tpu.assume_multiple %20, 8 : i32
    %22 = arith.index_cast %21 : i32 to index
    %c0_18 = arith.constant 0 : index
    %23 = vector.load %arg13[%22, %c0_18] : memref<64x384xf32, #tpu.memory_space<vmem>>, vector<8x384xf32>
    %cst_19 = arith.constant dense<0.000000e+00> : vector<8x384xf32>
    %24 = tpu.matmul %11, %8, %cst_19 {dimension_numbers = #tpu.dot_dimension_numbers<[1], [0], [0], [1], [0, 0, 1, 1], [], []>} : vector<8x128xf32>, vector<128x384xf32>, vector<8x384xf32> -> vector<8x384xf32>
    %25 = vector.broadcast %10 : vector<1x384xf32> to vector<8x384xf32>
    %26 = arith.addf %24, %25 : vector<8x384xf32>
    %27 = vector.extract_strided_slice %23 {offsets = [0, 0], sizes = [8, 128], strides = [1, 1]} : vector<8x384xf32> to vector<8x128xf32>
    %28 = vector.extract_strided_slice %26 {offsets = [0, 0], sizes = [8, 128], strides = [1, 1]} : vector<8x384xf32> to vector<8x128xf32>
    %29 = arith.addf %27, %28 : vector<8x128xf32>
    %30 = arith.negf %29 : vector<8x128xf32>
    %31 = math.exp %30 : vector<8x128xf32>
    %cst_20 = arith.constant 1.000000e+00 : f32
    %32 = vector.broadcast %cst_20 : f32 to vector<8x128xf32>
    %33 = arith.addf %32, %31 : vector<8x128xf32>
    %34 = arith.divf %32, %33 : vector<8x128xf32>
    %35 = vector.extract_strided_slice %23 {offsets = [0, 128], sizes = [8, 128], strides = [1, 1]} : vector<8x384xf32> to vector<8x128xf32>
    %36 = vector.extract_strided_slice %26 {offsets = [0, 128], sizes = [8, 128], strides = [1, 1]} : vector<8x384xf32> to vector<8x128xf32>
    %37 = arith.addf %35, %36 : vector<8x128xf32>
    %38 = arith.negf %37 : vector<8x128xf32>
    %39 = math.exp %38 : vector<8x128xf32>
    %cst_21 = arith.constant 1.000000e+00 : f32
    %40 = vector.broadcast %cst_21 : f32 to vector<8x128xf32>
    %41 = arith.addf %40, %39 : vector<8x128xf32>
    %42 = arith.divf %40, %41 : vector<8x128xf32>
    %43 = vector.extract_strided_slice %23 {offsets = [0, 256], sizes = [8, 128], strides = [1, 1]} : vector<8x384xf32> to vector<8x128xf32>
    %44 = vector.extract_strided_slice %26 {offsets = [0, 256], sizes = [8, 128], strides = [1, 1]} : vector<8x384xf32> to vector<8x128xf32>
    %45 = arith.mulf %34, %44 : vector<8x128xf32>
    %46 = arith.addf %43, %45 : vector<8x128xf32>
    %47 = math.tanh %46 : vector<8x128xf32>
    %cst_22 = arith.constant 1.000000e+00 : f32
    %48 = vector.broadcast %cst_22 : f32 to vector<8x128xf32>
    %49 = arith.subf %48, %42 : vector<8x128xf32>
    %50 = arith.mulf %49, %47 : vector<8x128xf32>
    %51 = arith.mulf %42, %11 : vector<8x128xf32>
    %52 = arith.addf %50, %51 : vector<8x128xf32>
    %53 = arith.addi %13, %21 : i32
    %54 = tpu.assume_multiple %53, 8 : i32
    %55 = arith.index_cast %54 : i32 to index
    %c0_23 = arith.constant 0 : index
    %56 = vector.load %arg12[%55, %c0_23] : memref<64x128xf32, #tpu.memory_space<vmem>>, vector<8x128xf32>
    tpu.vector_store %arg12[%55, %c0_23], %52 {strides = array<i32>} : memref<64x128xf32, #tpu.memory_space<vmem>>, vector<8x128xf32>,
    %c1_i32 = arith.constant 1 : i32
    %c8_i32_24 = arith.constant 8 : i32
    %57 = arith.muli %c1_i32, %c8_i32_24 : i32
    %58 = tpu.assume_multiple %57, 8 : i32
    %59 = arith.index_cast %58 : i32 to index
    %c0_25 = arith.constant 0 : index
    %60 = vector.load %arg13[%59, %c0_25] : memref<64x384xf32, #tpu.memory_space<vmem>>, vector<8x384xf32>
    %cst_26 = arith.constant dense<0.000000e+00> : vector<8x384xf32>
    %61 = tpu.matmul %52, %8, %cst_26 {dimension_numbers = #tpu.dot_dimension_numbers<[1], [0], [0], [1], [0, 0, 1, 1], [], []>} : vector<8x128xf32>, vector<128x384xf32>, vector<8x384xf32> -> vector<8x384xf32>
    %62 = vector.broadcast %10 : vector<1x384xf32> to vector<8x384xf32>
    %63 = arith.addf %61, %62 : vector<8x384xf32>
    %64 = vector.extract_strided_slice %60 {offsets = [0, 0], sizes = [8, 128], strides = [1, 1]} : vector<8x384xf32> to vector<8x128xf32>
    %65 = vector.extract_strided_slice %63 {offsets = [0, 0], sizes = [8, 128], strides = [1, 1]} : vector<8x384xf32> to vector<8x128xf32>
    %66 = arith.addf %64, %65 : vector<8x128xf32>
    %67 = arith.negf %66 : vector<8x128xf32>
    %68 = math.exp %67 : vector<8x128xf32>
    %cst_27 = arith.constant 1.000000e+00 : f32
    %69 = vector.broadcast %cst_27 : f32 to vector<8x128xf32>
    %70 = arith.addf %69, %68 : vector<8x128xf32>
    %71 = arith.divf %69, %70 : vector<8x128xf32>
    %72 = vector.extract_strided_slice %60 {offsets = [0, 128], sizes = [8, 128], strides = [1, 1]} : vector<8x384xf32> to vector<8x128xf32>
    %73 = vector.extract_strided_slice %63 {offsets = [0, 128], sizes = [8, 128], strides = [1, 1]} : vector<8x384xf32> to vector<8x128xf32>
    %74 = arith.addf %72, %73 : vector<8x128xf32>
    %75 = arith.negf %74 : vector<8x128xf32>
    %76 = math.exp %75 : vector<8x128xf32>
    %cst_28 = arith.constant 1.000000e+00 : f32
    %77 = vector.broadcast %cst_28 : f32 to vector<8x128xf32>
    %78 = arith.addf %77, %76 : vector<8x128xf32>
    %79 = arith.divf %77, %78 : vector<8x128xf32>
    %80 = vector.extract_strided_slice %60 {offsets = [0, 256], sizes = [8, 128], strides = [1, 1]} : vector<8x384xf32> to vector<8x128xf32>
    %81 = vector.extract_strided_slice %63 {offsets = [0, 256], sizes = [8, 128], strides = [1, 1]} : vector<8x384xf32> to vector<8x128xf32>
    %82 = arith.mulf %71, %81 : vector<8x128xf32>
    %83 = arith.addf %80, %82 : vector<8x128xf32>
    %84 = math.tanh %83 : vector<8x128xf32>
    %cst_29 = arith.constant 1.000000e+00 : f32
    %85 = vector.broadcast %cst_29 : f32 to vector<8x128xf32>
    %86 = arith.subf %85, %79 : vector<8x128xf32>
    %87 = arith.mulf %86, %84 : vector<8x128xf32>
    %88 = arith.mulf %79, %52 : vector<8x128xf32>
    %89 = arith.addf %87, %88 : vector<8x128xf32>
    %90 = arith.addi %13, %58 : i32
    %91 = tpu.assume_multiple %90, 8 : i32
    %92 = arith.index_cast %91 : i32 to index
    %c0_30 = arith.constant 0 : index
    %93 = vector.load %arg12[%92, %c0_30] : memref<64x128xf32, #tpu.memory_space<vmem>>, vector<8x128xf32>
    tpu.vector_store %arg12[%92, %c0_30], %89 {strides = array<i32>} : memref<64x128xf32, #tpu.memory_space<vmem>>, vector<8x128xf32>,
    %c2_i32 = arith.constant 2 : i32
    %c8_i32_31 = arith.constant 8 : i32
    %94 = arith.muli %c2_i32, %c8_i32_31 : i32
    %95 = tpu.assume_multiple %94, 8 : i32
    %96 = arith.index_cast %95 : i32 to index
    %c0_32 = arith.constant 0 : index
    %97 = vector.load %arg13[%96, %c0_32] : memref<64x384xf32, #tpu.memory_space<vmem>>, vector<8x384xf32>
    %cst_33 = arith.constant dense<0.000000e+00> : vector<8x384xf32>
    %98 = tpu.matmul %89, %8, %cst_33 {dimension_numbers = #tpu.dot_dimension_numbers<[1], [0], [0], [1], [0, 0, 1, 1], [], []>} : vector<8x128xf32>, vector<128x384xf32>, vector<8x384xf32> -> vector<8x384xf32>
    %99 = vector.broadcast %10 : vector<1x384xf32> to vector<8x384xf32>
    %100 = arith.addf %98, %99 : vector<8x384xf32>
    %101 = vector.extract_strided_slice %97 {offsets = [0, 0], sizes = [8, 128], strides = [1, 1]} : vector<8x384xf32> to vector<8x128xf32>
    %102 = vector.extract_strided_slice %100 {offsets = [0, 0], sizes = [8, 128], strides = [1, 1]} : vector<8x384xf32> to vector<8x128xf32>
    %103 = arith.addf %101, %102 : vector<8x128xf32>
    %104 = arith.negf %103 : vector<8x128xf32>
    %105 = math.exp %104 : vector<8x128xf32>
    %cst_34 = arith.constant 1.000000e+00 : f32
    %106 = vector.broadcast %cst_34 : f32 to vector<8x128xf32>
    %107 = arith.addf %106, %105 : vector<8x128xf32>
    %108 = arith.divf %106, %107 : vector<8x128xf32>
    %109 = vector.extract_strided_slice %97 {offsets = [0, 128], sizes = [8, 128], strides = [1, 1]} : vector<8x384xf32> to vector<8x128xf32>
    %110 = vector.extract_strided_slice %100 {offsets = [0, 128], sizes = [8, 128], strides = [1, 1]} : vector<8x384xf32> to vector<8x128xf32>
    %111 = arith.addf %109, %110 : vector<8x128xf32>
    %112 = arith.negf %111 : vector<8x128xf32>
    %113 = math.exp %112 : vector<8x128xf32>
    %cst_35 = arith.constant 1.000000e+00 : f32
    %114 = vector.broadcast %cst_35 : f32 to vector<8x128xf32>
    %115 = arith.addf %114, %113 : vector<8x128xf32>
    %116 = arith.divf %114, %115 : vector<8x128xf32>
    %117 = vector.extract_strided_slice %97 {offsets = [0, 256], sizes = [8, 128], strides = [1, 1]} : vector<8x384xf32> to vector<8x128xf32>
    %118 = vector.extract_strided_slice %100 {offsets = [0, 256], sizes = [8, 128], strides = [1, 1]} : vector<8x384xf32> to vector<8x128xf32>
    %119 = arith.mulf %108, %118 : vector<8x128xf32>
    %120 = arith.addf %117, %119 : vector<8x128xf32>
    %121 = math.tanh %120 : vector<8x128xf32>
    %cst_36 = arith.constant 1.000000e+00 : f32
    %122 = vector.broadcast %cst_36 : f32 to vector<8x128xf32>
    %123 = arith.subf %122, %116 : vector<8x128xf32>
    %124 = arith.mulf %123, %121 : vector<8x128xf32>
    %125 = arith.mulf %116, %89 : vector<8x128xf32>
    %126 = arith.addf %124, %125 : vector<8x128xf32>
    %127 = arith.addi %13, %95 : i32
    %128 = tpu.assume_multiple %127, 8 : i32
    %129 = arith.index_cast %128 : i32 to index
    %c0_37 = arith.constant 0 : index
    %130 = vector.load %arg12[%129, %c0_37] : memref<64x128xf32, #tpu.memory_space<vmem>>, vector<8x128xf32>
    tpu.vector_store %arg12[%129, %c0_37], %126 {strides = array<i32>} : memref<64x128xf32, #tpu.memory_space<vmem>>, vector<8x128xf32>,
    %c3_i32 = arith.constant 3 : i32
    %c8_i32_38 = arith.constant 8 : i32
    %131 = arith.muli %c3_i32, %c8_i32_38 : i32
    %132 = tpu.assume_multiple %131, 8 : i32
    %133 = arith.index_cast %132 : i32 to index
    %c0_39 = arith.constant 0 : index
    %134 = vector.load %arg13[%133, %c0_39] : memref<64x384xf32, #tpu.memory_space<vmem>>, vector<8x384xf32>
    %cst_40 = arith.constant dense<0.000000e+00> : vector<8x384xf32>
    %135 = tpu.matmul %126, %8, %cst_40 {dimension_numbers = #tpu.dot_dimension_numbers<[1], [0], [0], [1], [0, 0, 1, 1], [], []>} : vector<8x128xf32>, vector<128x384xf32>, vector<8x384xf32> -> vector<8x384xf32>
    %136 = vector.broadcast %10 : vector<1x384xf32> to vector<8x384xf32>
    %137 = arith.addf %135, %136 : vector<8x384xf32>
    %138 = vector.extract_strided_slice %134 {offsets = [0, 0], sizes = [8, 128], strides = [1, 1]} : vector<8x384xf32> to vector<8x128xf32>
    %139 = vector.extract_strided_slice %137 {offsets = [0, 0], sizes = [8, 128], strides = [1, 1]} : vector<8x384xf32> to vector<8x128xf32>
    %140 = arith.addf %138, %139 : vector<8x128xf32>
    %141 = arith.negf %140 : vector<8x128xf32>
    %142 = math.exp %141 : vector<8x128xf32>
    %cst_41 = arith.constant 1.000000e+00 : f32
    %143 = vector.broadcast %cst_41 : f32 to vector<8x128xf32>
    %144 = arith.addf %143, %142 : vector<8x128xf32>
    %145 = arith.divf %143, %144 : vector<8x128xf32>
    %146 = vector.extract_strided_slice %134 {offsets = [0, 128], sizes = [8, 128], strides = [1, 1]} : vector<8x384xf32> to vector<8x128xf32>
    %147 = vector.extract_strided_slice %137 {offsets = [0, 128], sizes = [8, 128], strides = [1, 1]} : vector<8x384xf32> to vector<8x128xf32>
    %148 = arith.addf %146, %147 : vector<8x128xf32>
    %149 = arith.negf %148 : vector<8x128xf32>
    %150 = math.exp %149 : vector<8x128xf32>
    %cst_42 = arith.constant 1.000000e+00 : f32
    %151 = vector.broadcast %cst_42 : f32 to vector<8x128xf32>
    %152 = arith.addf %151, %150 : vector<8x128xf32>
    %153 = arith.divf %151, %152 : vector<8x128xf32>
    %154 = vector.extract_strided_slice %134 {offsets = [0, 256], sizes = [8, 128], strides = [1, 1]} : vector<8x384xf32> to vector<8x128xf32>
    %155 = vector.extract_strided_slice %137 {offsets = [0, 256], sizes = [8, 128], strides = [1, 1]} : vector<8x384xf32> to vector<8x128xf32>
    %156 = arith.mulf %145, %155 : vector<8x128xf32>
    %157 = arith.addf %154, %156 : vector<8x128xf32>
    %158 = math.tanh %157 : vector<8x128xf32>
    %cst_43 = arith.constant 1.000000e+00 : f32
    %159 = vector.broadcast %cst_43 : f32 to vector<8x128xf32>
    %160 = arith.subf %159, %153 : vector<8x128xf32>
    %161 = arith.mulf %160, %158 : vector<8x128xf32>
    %162 = arith.mulf %153, %126 : vector<8x128xf32>
    %163 = arith.addf %161, %162 : vector<8x128xf32>
    %164 = arith.addi %13, %132 : i32
    %165 = tpu.assume_multiple %164, 8 : i32
    %166 = arith.index_cast %165 : i32 to index
    %c0_44 = arith.constant 0 : index
    %167 = vector.load %arg12[%166, %c0_44] : memref<64x128xf32, #tpu.memory_space<vmem>>, vector<8x128xf32>
    tpu.vector_store %arg12[%166, %c0_44], %163 {strides = array<i32>} : memref<64x128xf32, #tpu.memory_space<vmem>>, vector<8x128xf32>,
    %c4_i32 = arith.constant 4 : i32
    %c8_i32_45 = arith.constant 8 : i32
    %168 = arith.muli %c4_i32, %c8_i32_45 : i32
    %169 = tpu.assume_multiple %168, 8 : i32
    %170 = arith.index_cast %169 : i32 to index
    %c0_46 = arith.constant 0 : index
    %171 = vector.load %arg13[%170, %c0_46] : memref<64x384xf32, #tpu.memory_space<vmem>>, vector<8x384xf32>
    %cst_47 = arith.constant dense<0.000000e+00> : vector<8x384xf32>
    %172 = tpu.matmul %163, %8, %cst_47 {dimension_numbers = #tpu.dot_dimension_numbers<[1], [0], [0], [1], [0, 0, 1, 1], [], []>} : vector<8x128xf32>, vector<128x384xf32>, vector<8x384xf32> -> vector<8x384xf32>
    %173 = vector.broadcast %10 : vector<1x384xf32> to vector<8x384xf32>
    %174 = arith.addf %172, %173 : vector<8x384xf32>
    %175 = vector.extract_strided_slice %171 {offsets = [0, 0], sizes = [8, 128], strides = [1, 1]} : vector<8x384xf32> to vector<8x128xf32>
    %176 = vector.extract_strided_slice %174 {offsets = [0, 0], sizes = [8, 128], strides = [1, 1]} : vector<8x384xf32> to vector<8x128xf32>
    %177 = arith.addf %175, %176 : vector<8x128xf32>
    %178 = arith.negf %177 : vector<8x128xf32>
    %179 = math.exp %178 : vector<8x128xf32>
    %cst_48 = arith.constant 1.000000e+00 : f32
    %180 = vector.broadcast %cst_48 : f32 to vector<8x128xf32>
    %181 = arith.addf %180, %179 : vector<8x128xf32>
    %182 = arith.divf %180, %181 : vector<8x128xf32>
    %183 = vector.extract_strided_slice %171 {offsets = [0, 128], sizes = [8, 128], strides = [1, 1]} : vector<8x384xf32> to vector<8x128xf32>
    %184 = vector.extract_strided_slice %174 {offsets = [0, 128], sizes = [8, 128], strides = [1, 1]} : vector<8x384xf32> to vector<8x128xf32>
    %185 = arith.addf %183, %184 : vector<8x128xf32>
    %186 = arith.negf %185 : vector<8x128xf32>
    %187 = math.exp %186 : vector<8x128xf32>
    %cst_49 = arith.constant 1.000000e+00 : f32
    %188 = vector.broadcast %cst_49 : f32 to vector<8x128xf32>
    %189 = arith.addf %188, %187 : vector<8x128xf32>
    %190 = arith.divf %188, %189 : vector<8x128xf32>
    %191 = vector.extract_strided_slice %171 {offsets = [0, 256], sizes = [8, 128], strides = [1, 1]} : vector<8x384xf32> to vector<8x128xf32>
    %192 = vector.extract_strided_slice %174 {offsets = [0, 256], sizes = [8, 128], strides = [1, 1]} : vector<8x384xf32> to vector<8x128xf32>
    %193 = arith.mulf %182, %192 : vector<8x128xf32>
    %194 = arith.addf %191, %193 : vector<8x128xf32>
    %195 = math.tanh %194 : vector<8x128xf32>
    %cst_50 = arith.constant 1.000000e+00 : f32
    %196 = vector.broadcast %cst_50 : f32 to vector<8x128xf32>
    %197 = arith.subf %196, %190 : vector<8x128xf32>
    %198 = arith.mulf %197, %195 : vector<8x128xf32>
    %199 = arith.mulf %190, %163 : vector<8x128xf32>
    %200 = arith.addf %198, %199 : vector<8x128xf32>
    %201 = arith.addi %13, %169 : i32
    %202 = tpu.assume_multiple %201, 8 : i32
    %203 = arith.index_cast %202 : i32 to index
    %c0_51 = arith.constant 0 : index
    %204 = vector.load %arg12[%203, %c0_51] : memref<64x128xf32, #tpu.memory_space<vmem>>, vector<8x128xf32>
    tpu.vector_store %arg12[%203, %c0_51], %200 {strides = array<i32>} : memref<64x128xf32, #tpu.memory_space<vmem>>, vector<8x128xf32>,
    %c5_i32 = arith.constant 5 : i32
    %c8_i32_52 = arith.constant 8 : i32
    %205 = arith.muli %c5_i32, %c8_i32_52 : i32
    %206 = tpu.assume_multiple %205, 8 : i32
    %207 = arith.index_cast %206 : i32 to index
    %c0_53 = arith.constant 0 : index
    %208 = vector.load %arg13[%207, %c0_53] : memref<64x384xf32, #tpu.memory_space<vmem>>, vector<8x384xf32>
    %cst_54 = arith.constant dense<0.000000e+00> : vector<8x384xf32>
    %209 = tpu.matmul %200, %8, %cst_54 {dimension_numbers = #tpu.dot_dimension_numbers<[1], [0], [0], [1], [0, 0, 1, 1], [], []>} : vector<8x128xf32>, vector<128x384xf32>, vector<8x384xf32> -> vector<8x384xf32>
    %210 = vector.broadcast %10 : vector<1x384xf32> to vector<8x384xf32>
    %211 = arith.addf %209, %210 : vector<8x384xf32>
    %212 = vector.extract_strided_slice %208 {offsets = [0, 0], sizes = [8, 128], strides = [1, 1]} : vector<8x384xf32> to vector<8x128xf32>
    %213 = vector.extract_strided_slice %211 {offsets = [0, 0], sizes = [8, 128], strides = [1, 1]} : vector<8x384xf32> to vector<8x128xf32>
    %214 = arith.addf %212, %213 : vector<8x128xf32>
    %215 = arith.negf %214 : vector<8x128xf32>
    %216 = math.exp %215 : vector<8x128xf32>
    %cst_55 = arith.constant 1.000000e+00 : f32
    %217 = vector.broadcast %cst_55 : f32 to vector<8x128xf32>
    %218 = arith.addf %217, %216 : vector<8x128xf32>
    %219 = arith.divf %217, %218 : vector<8x128xf32>
    %220 = vector.extract_strided_slice %208 {offsets = [0, 128], sizes = [8, 128], strides = [1, 1]} : vector<8x384xf32> to vector<8x128xf32>
    %221 = vector.extract_strided_slice %211 {offsets = [0, 128], sizes = [8, 128], strides = [1, 1]} : vector<8x384xf32> to vector<8x128xf32>
    %222 = arith.addf %220, %221 : vector<8x128xf32>
    %223 = arith.negf %222 : vector<8x128xf32>
    %224 = math.exp %223 : vector<8x128xf32>
    %cst_56 = arith.constant 1.000000e+00 : f32
    %225 = vector.broadcast %cst_56 : f32 to vector<8x128xf32>
    %226 = arith.addf %225, %224 : vector<8x128xf32>
    %227 = arith.divf %225, %226 : vector<8x128xf32>
    %228 = vector.extract_strided_slice %208 {offsets = [0, 256], sizes = [8, 128], strides = [1, 1]} : vector<8x384xf32> to vector<8x128xf32>
    %229 = vector.extract_strided_slice %211 {offsets = [0, 256], sizes = [8, 128], strides = [1, 1]} : vector<8x384xf32> to vector<8x128xf32>
    %230 = arith.mulf %219, %229 : vector<8x128xf32>
    %231 = arith.addf %228, %230 : vector<8x128xf32>
    %232 = math.tanh %231 : vector<8x128xf32>
    %cst_57 = arith.constant 1.000000e+00 : f32
    %233 = vector.broadcast %cst_57 : f32 to vector<8x128xf32>
    %234 = arith.subf %233, %227 : vector<8x128xf32>
    %235 = arith.mulf %234, %232 : vector<8x128xf32>
    %236 = arith.mulf %227, %200 : vector<8x128xf32>
    %237 = arith.addf %235, %236 : vector<8x128xf32>
    %238 = arith.addi %13, %206 : i32
    %239 = tpu.assume_multiple %238, 8 : i32
    %240 = arith.index_cast %239 : i32 to index
    %c0_58 = arith.constant 0 : index
    %241 = vector.load %arg12[%240, %c0_58] : memref<64x128xf32, #tpu.memory_space<vmem>>, vector<8x128xf32>
    tpu.vector_store %arg12[%240, %c0_58], %237 {strides = array<i32>} : memref<64x128xf32, #tpu.memory_space<vmem>>, vector<8x128xf32>,
    %c6_i32 = arith.constant 6 : i32
    %c8_i32_59 = arith.constant 8 : i32
    %242 = arith.muli %c6_i32, %c8_i32_59 : i32
    %243 = tpu.assume_multiple %242, 8 : i32
    %244 = arith.index_cast %243 : i32 to index
    %c0_60 = arith.constant 0 : index
    %245 = vector.load %arg13[%244, %c0_60] : memref<64x384xf32, #tpu.memory_space<vmem>>, vector<8x384xf32>
    %cst_61 = arith.constant dense<0.000000e+00> : vector<8x384xf32>
    %246 = tpu.matmul %237, %8, %cst_61 {dimension_numbers = #tpu.dot_dimension_numbers<[1], [0], [0], [1], [0, 0, 1, 1], [], []>} : vector<8x128xf32>, vector<128x384xf32>, vector<8x384xf32> -> vector<8x384xf32>
    %247 = vector.broadcast %10 : vector<1x384xf32> to vector<8x384xf32>
    %248 = arith.addf %246, %247 : vector<8x384xf32>
    %249 = vector.extract_strided_slice %245 {offsets = [0, 0], sizes = [8, 128], strides = [1, 1]} : vector<8x384xf32> to vector<8x128xf32>
    %250 = vector.extract_strided_slice %248 {offsets = [0, 0], sizes = [8, 128], strides = [1, 1]} : vector<8x384xf32> to vector<8x128xf32>
    %251 = arith.addf %249, %250 : vector<8x128xf32>
    %252 = arith.negf %251 : vector<8x128xf32>
    %253 = math.exp %252 : vector<8x128xf32>
    %cst_62 = arith.constant 1.000000e+00 : f32
    %254 = vector.broadcast %cst_62 : f32 to vector<8x128xf32>
    %255 = arith.addf %254, %253 : vector<8x128xf32>
    %256 = arith.divf %254, %255 : vector<8x128xf32>
    %257 = vector.extract_strided_slice %245 {offsets = [0, 128], sizes = [8, 128], strides = [1, 1]} : vector<8x384xf32> to vector<8x128xf32>
    %258 = vector.extract_strided_slice %248 {offsets = [0, 128], sizes = [8, 128], strides = [1, 1]} : vector<8x384xf32> to vector<8x128xf32>
    %259 = arith.addf %257, %258 : vector<8x128xf32>
    %260 = arith.negf %259 : vector<8x128xf32>
    %261 = math.exp %260 : vector<8x128xf32>
    %cst_63 = arith.constant 1.000000e+00 : f32
    %262 = vector.broadcast %cst_63 : f32 to vector<8x128xf32>
    %263 = arith.addf %262, %261 : vector<8x128xf32>
    %264 = arith.divf %262, %263 : vector<8x128xf32>
    %265 = vector.extract_strided_slice %245 {offsets = [0, 256], sizes = [8, 128], strides = [1, 1]} : vector<8x384xf32> to vector<8x128xf32>
    %266 = vector.extract_strided_slice %248 {offsets = [0, 256], sizes = [8, 128], strides = [1, 1]} : vector<8x384xf32> to vector<8x128xf32>
    %267 = arith.mulf %256, %266 : vector<8x128xf32>
    %268 = arith.addf %265, %267 : vector<8x128xf32>
    %269 = math.tanh %268 : vector<8x128xf32>
    %cst_64 = arith.constant 1.000000e+00 : f32
    %270 = vector.broadcast %cst_64 : f32 to vector<8x128xf32>
    %271 = arith.subf %270, %264 : vector<8x128xf32>
    %272 = arith.mulf %271, %269 : vector<8x128xf32>
    %273 = arith.mulf %264, %237 : vector<8x128xf32>
    %274 = arith.addf %272, %273 : vector<8x128xf32>
    %275 = arith.addi %13, %243 : i32
    %276 = tpu.assume_multiple %275, 8 : i32
    %277 = arith.index_cast %276 : i32 to index
    %c0_65 = arith.constant 0 : index
    %278 = vector.load %arg12[%277, %c0_65] : memref<64x128xf32, #tpu.memory_space<vmem>>, vector<8x128xf32>
    tpu.vector_store %arg12[%277, %c0_65], %274 {strides = array<i32>} : memref<64x128xf32, #tpu.memory_space<vmem>>, vector<8x128xf32>,
    %c7_i32 = arith.constant 7 : i32
    %c8_i32_66 = arith.constant 8 : i32
    %279 = arith.muli %c7_i32, %c8_i32_66 : i32
    %280 = tpu.assume_multiple %279, 8 : i32
    %281 = arith.index_cast %280 : i32 to index
    %c0_67 = arith.constant 0 : index
    %282 = vector.load %arg13[%281, %c0_67] : memref<64x384xf32, #tpu.memory_space<vmem>>, vector<8x384xf32>
    %cst_68 = arith.constant dense<0.000000e+00> : vector<8x384xf32>
    %283 = tpu.matmul %274, %8, %cst_68 {dimension_numbers = #tpu.dot_dimension_numbers<[1], [0], [0], [1], [0, 0, 1, 1], [], []>} : vector<8x128xf32>, vector<128x384xf32>, vector<8x384xf32> -> vector<8x384xf32>
    %284 = vector.broadcast %10 : vector<1x384xf32> to vector<8x384xf32>
    %285 = arith.addf %283, %284 : vector<8x384xf32>
    %286 = vector.extract_strided_slice %282 {offsets = [0, 0], sizes = [8, 128], strides = [1, 1]} : vector<8x384xf32> to vector<8x128xf32>
    %287 = vector.extract_strided_slice %285 {offsets = [0, 0], sizes = [8, 128], strides = [1, 1]} : vector<8x384xf32> to vector<8x128xf32>
    %288 = arith.addf %286, %287 : vector<8x128xf32>
    %289 = arith.negf %288 : vector<8x128xf32>
    %290 = math.exp %289 : vector<8x128xf32>
    %cst_69 = arith.constant 1.000000e+00 : f32
    %291 = vector.broadcast %cst_69 : f32 to vector<8x128xf32>
    %292 = arith.addf %291, %290 : vector<8x128xf32>
    %293 = arith.divf %291, %292 : vector<8x128xf32>
    %294 = vector.extract_strided_slice %282 {offsets = [0, 128], sizes = [8, 128], strides = [1, 1]} : vector<8x384xf32> to vector<8x128xf32>
    %295 = vector.extract_strided_slice %285 {offsets = [0, 128], sizes = [8, 128], strides = [1, 1]} : vector<8x384xf32> to vector<8x128xf32>
    %296 = arith.addf %294, %295 : vector<8x128xf32>
    %297 = arith.negf %296 : vector<8x128xf32>
    %298 = math.exp %297 : vector<8x128xf32>
    %cst_70 = arith.constant 1.000000e+00 : f32
    %299 = vector.broadcast %cst_70 : f32 to vector<8x128xf32>
    %300 = arith.addf %299, %298 : vector<8x128xf32>
    %301 = arith.divf %299, %300 : vector<8x128xf32>
    %302 = vector.extract_strided_slice %282 {offsets = [0, 256], sizes = [8, 128], strides = [1, 1]} : vector<8x384xf32> to vector<8x128xf32>
    %303 = vector.extract_strided_slice %285 {offsets = [0, 256], sizes = [8, 128], strides = [1, 1]} : vector<8x384xf32> to vector<8x128xf32>
    %304 = arith.mulf %293, %303 : vector<8x128xf32>
    %305 = arith.addf %302, %304 : vector<8x128xf32>
    %306 = math.tanh %305 : vector<8x128xf32>
    %cst_71 = arith.constant 1.000000e+00 : f32
    %307 = vector.broadcast %cst_71 : f32 to vector<8x128xf32>
    %308 = arith.subf %307, %301 : vector<8x128xf32>
    %309 = arith.mulf %308, %306 : vector<8x128xf32>
    %310 = arith.mulf %301, %274 : vector<8x128xf32>
    %311 = arith.addf %309, %310 : vector<8x128xf32>
    %312 = arith.addi %13, %280 : i32
    %313 = tpu.assume_multiple %312, 8 : i32
    %314 = arith.index_cast %313 : i32 to index
    %c0_72 = arith.constant 0 : index
    %315 = vector.load %arg12[%314, %c0_72] : memref<64x128xf32, #tpu.memory_space<vmem>>, vector<8x128xf32>
    tpu.vector_store %arg12[%314, %c0_72], %311 {strides = array<i32>} : memref<64x128xf32, #tpu.memory_space<vmem>>, vector<8x128xf32>,
    %c8_i32_73 = arith.constant 8 : i32
    %c1_i32_74 = arith.constant 1 : i32
    %c1_i32_75 = arith.constant 1 : i32
    %316 = arith.cmpi eq, %arg1, %c1_i32_75 : i32
    %317 = arith.extui %316 : i1 to i32
    %c0_i32_76 = arith.constant 0 : i32
    %318 = arith.cmpi ne, %317, %c0_i32_76 : i32
    scf.if %318 {
      %c0_77 = arith.constant 0 : index
      %c0_78 = arith.constant 0 : index
      %319 = vector.load %arg12[%c0_77, %c0_78] : memref<64x128xf32, #tpu.memory_space<vmem>>, vector<64x128xf32>
      %c0_79 = arith.constant 0 : index
      %c0_80 = arith.constant 0 : index
      %320 = vector.load %arg9[%c0_79, %c0_80] : memref<128x128xf32, #tpu.memory_space<vmem>>, vector<128x128xf32>
      %cst_81 = arith.constant dense<0.000000e+00> : vector<64x128xf32>
      %321 = tpu.matmul %319, %320, %cst_81 {dimension_numbers = #tpu.dot_dimension_numbers<[1], [0], [0], [1], [0, 0, 1, 1], [], []>} : vector<64x128xf32>, vector<128x128xf32>, vector<64x128xf32> -> vector<64x128xf32>
      %c0_82 = arith.constant 0 : index
      %c0_83 = arith.constant 0 : index
      %322 = vector.load %arg10[%c0_82, %c0_83] : memref<1x128xf32, #tpu.memory_space<vmem>>, vector<1x128xf32>
      %323 = vector.broadcast %322 : vector<1x128xf32> to vector<64x128xf32>
      %324 = arith.addf %321, %323 : vector<64x128xf32>
      %cst_84 = arith.constant dense<0xFF800000> : vector<64xf32>
      %325 = vector.multi_reduction <maximumf>, %324, %cst_84 [1] : vector<64x128xf32> to vector<64xf32>
      %326 = vector.shape_cast %325 : vector<64xf32> to vector<64x1xf32>
      %327 = vector.broadcast %326 : vector<64x1xf32> to vector<64x128xf32>
      %328 = arith.subf %324, %327 : vector<64x128xf32>
      %329 = math.exp %328 : vector<64x128xf32>
      %cst_85 = arith.constant dense<0.000000e+00> : vector<64xf32>
      %330 = vector.multi_reduction <add>, %329, %cst_85 [1] : vector<64x128xf32> to vector<64xf32>
      %331 = vector.shape_cast %330 : vector<64xf32> to vector<64x1xf32>
      %332 = math.log %331 : vector<64x1xf32>
      %333 = vector.broadcast %332 : vector<64x1xf32> to vector<64x128xf32>
      %334 = arith.subf %328, %333 : vector<64x128xf32>
      %c0_86 = arith.constant 0 : index
      %c0_87 = arith.constant 0 : index
      %c0_88 = arith.constant 0 : index
      %335 = vector.load %arg11[%c0_86, %c0_87, %c0_88] : memref<1x64x128xf32, #tpu.memory_space<vmem>>, vector<1x64x128xf32>
      %336 = vector.shape_cast %335 : vector<1x64x128xf32> to vector<64x128xf32>
      %337 = vector.shape_cast %334 : vector<64x128xf32> to vector<1x64x128xf32>
      tpu.vector_store %arg11[%c0_86, %c0_87, %c0_88], %337 {strides = array<i32>} : memref<1x64x128xf32, #tpu.memory_space<vmem>>, vector<1x64x128xf32>,
    } else {
    }
    return
  }
  func.func @transform_0(%arg0: i32, %arg1: i32) -> (i32, i32, i32) {
    %c0_i32 = arith.constant 0 : i32
    %c0_i32_0 = arith.constant 0 : i32
    %c0_i32_1 = arith.constant 0 : i32
    return %arg0, %c0_i32, %c0_i32_0 : i32, i32, i32
  }
  func.func @transform_1(%arg0: i32, %arg1: i32) -> (i32, i32) {
    %c0_i32 = arith.constant 0 : i32
    %c0_i32_0 = arith.constant 0 : i32
    %c0_i32_1 = arith.constant 0 : i32
    return %c0_i32, %c0_i32_0 : i32, i32
  }
  func.func @transform_2(%arg0: i32, %arg1: i32) -> (i32, i32) {
    %c0_i32 = arith.constant 0 : i32
    %c0_i32_0 = arith.constant 0 : i32
    %c0_i32_1 = arith.constant 0 : i32
    return %c0_i32, %c0_i32_0 : i32, i32
  }
  func.func @transform_3(%arg0: i32, %arg1: i32) -> (i32, i32, i32) {
    %c0_i32 = arith.constant 0 : i32
    %c0_i32_0 = arith.constant 0 : i32
    %c0_i32_1 = arith.constant 0 : i32
    return %arg1, %c0_i32, %c0_i32_0 : i32, i32, i32
  }
  func.func @transform_4(%arg0: i32, %arg1: i32) -> (i32, i32, i32) {
    %c0_i32 = arith.constant 0 : i32
    %c0_i32_0 = arith.constant 0 : i32
    %c0_i32_1 = arith.constant 0 : i32
    return %arg1, %c0_i32, %c0_i32_0 : i32, i32, i32
  }
  func.func @transform_5(%arg0: i32, %arg1: i32) -> (i32, i32, i32) {
    %c0_i32 = arith.constant 0 : i32
    %c0_i32_0 = arith.constant 0 : i32
    %c0_i32_1 = arith.constant 0 : i32
    return %arg1, %c0_i32, %c0_i32_0 : i32, i32, i32
  }
  func.func @transform_6(%arg0: i32, %arg1: i32) -> (i32, i32, i32) {
    %c0_i32 = arith.constant 0 : i32
    %c0_i32_0 = arith.constant 0 : i32
    %c0_i32_1 = arith.constant 0 : i32
    return %arg1, %c0_i32, %c0_i32_0 : i32, i32, i32
  }
  func.func @transform_7(%arg0: i32, %arg1: i32) -> (i32, i32) {
    %c0_i32 = arith.constant 0 : i32
    %c0_i32_0 = arith.constant 0 : i32
    %c0_i32_1 = arith.constant 0 : i32
    return %c0_i32, %c0_i32_0 : i32, i32
  }
  func.func @transform_8(%arg0: i32, %arg1: i32) -> (i32, i32) {
    %c0_i32 = arith.constant 0 : i32
    %c0_i32_0 = arith.constant 0 : i32
    %c0_i32_1 = arith.constant 0 : i32
    return %c0_i32, %c0_i32_0 : i32, i32
  }
  func.func @transform_9(%arg0: i32, %arg1: i32) -> (i32, i32, i32) {
    %c0_i32 = arith.constant 0 : i32
    %c0_i32_0 = arith.constant 0 : i32
    %c0_i32_1 = arith.constant 0 : i32
    return %arg0, %c0_i32, %c0_i32_0 : i32, i32, i32
  }
}

</mosaic_0001>

<llo_original>
// kernel: tpu_custom_call.1
$region0: #{tpu_custom_call.1}
  #allocation0 [shape = 'u32[]', space=smem, size = 0x4, offset = 0x4, fixed_abs, tag = 'smem constant byte address 0x4 - core index']
  #allocation1 [shape = 'u32[144,128]{1,0:T(1,128)}', space=vmem, size = 0x12000, scoped, tag = 'internal scratch']
  #allocation2 [shape = 'f32[64,128]{1,0:T(8,128)}', space=vmem, size = 0x8000, scoped, tag = 'scratch operand']
  #allocation3 [shape = 'f32[64,384]{1,0:T(8,128)}', space=vmem, size = 0x18000, scoped, tag = 'scratch operand']
  %s0 = inlined_call_operand.hbm [shape: f32[1,64,128], index: 0, kind: input, shape index: {}]
  %s1 = inlined_call_operand.hbm [shape: f32[128,128], index: 1, kind: input, shape index: {}]
  %s2 = inlined_call_operand.vmem [shape: f32[1,128], index: 2, kind: input, shape index: {}]
  %s3 = inlined_call_operand.hbm [shape: f32[2,128,384], index: 3, kind: input, shape index: {}]
  %s4 = inlined_call_operand.hbm [shape: f32[2,128,384], index: 4, kind: input, shape index: {}]
  %s5 = inlined_call_operand.vmem [shape: f32[2,1,384], index: 5, kind: input, shape index: {}]
  %s6 = inlined_call_operand.hbm [shape: f32[2,1,384], index: 6, kind: input, shape index: {}]
  %s7 = inlined_call_operand.hbm [shape: f32[128,128], index: 7, kind: input, shape index: {}]
  %s8 = inlined_call_operand.vmem [shape: f32[1,128], index: 8, kind: input, shape index: {}]
  %s9 = inlined_call_operand.hbm [shape: f32[1,64,128], index: 9, kind: output, shape index: {}]
  %s10 = sld [smem:[#allocation0]]
  $region101: #{tpu_custom_call.1} parent=0
    _
  %s12 = ssub.s32 1, %s10
  %s13 = scalar_select 0, %s12, %s10
  $region1: #{tpu_custom_call.1} parent=0
    #allocation4 [shape = 'u8[32768]{0}', space=vmem, size = 0x8000, scoped, tag = 'input window, operand 0, single buffered']
    #allocation5 [shape = 's32[2]{0}', space=sflag, size = 0x8, scoped, tag = 'scoped memory for tpu_custom_call.1']
    #allocation6 [shape = 's32[2]{0}', space=sflag, size = 0x8, scoped, tag = 'scoped memory for tpu_custom_call.1']
    #allocation7 [shape = 'u8[65536]{0}', space=vmem, size = 0x10000, scoped, tag = 'input window, operand 1, single buffered']
    #allocation8 [shape = 's32[1]{0}', space=sflag, size = 0x4, scoped, tag = 'scoped memory for tpu_custom_call.1']
    #allocation9 [shape = 'u8[393216]{0}', space=vmem, size = 0x60000, scoped, tag = 'input window, operand 3']
    #allocation10 [shape = 'u8[393216]{0}', space=vmem, size = 0x60000, scoped, tag = 'input window, operand 4']
    #allocation11 [shape = 'u8[3072]{0}', space=vmem, size = 0xc00, scoped, tag = 'input window, operand 6']
    #allocation12 [shape = 'u8[65536]{0}', space=vmem, size = 0x10000, scoped, tag = 'input window, operand 7, single buffered']
    #allocation13 [shape = 'u8[32768]{0}', space=vmem, size = 0x8000, scoped, tag = 'output window, operand 0, single buffered']
    %14 = vsyncpa [#allocation5], 0
    %15 = vsyncpa [#allocation8], 0
    %16 = vsyncpa [#allocation6], 0
    loop: start=0, step=1, limit=4
    $region2: #{tpu_custom_call.1} parent=1 // loop_pre_header
      _
    $region3: #{tpu_custom_call.1} parent=1 // loop_header
      %s18 = sphi 0, %s22
      %p19 = scmp.ge.s32.totalorder %s18, 4
      %s25 = sphi 0, %s37
      %s26 = sphi 0, %s33
      %s27 = sphi 0, %s25
      %s28 = sphi 0, %s26
      %s29 = sphi 0, %s27
      %s30 = sphi 0, %s28
      %s40 = sphi 0, %s42
      %s43 = sphi 0, %s40
      %s44 = sphi 0, %s43
      %s60 = sphi 0, %s44
      %s64 = sphi 0, %s64
      %s66 = sphi 0, %s64
      %s67 = sphi 0, %s66
      %s81 = sphi 0, %s67
      %s85 = sphi 0, %s85
      %s87 = sphi 0, %s85
      %s88 = sphi 0, %s87
      %s102 = sphi 0, %s88
      %s108 = sphi 0, %s110
      %s111 = sphi 0, %s108
      %s112 = sphi 0, %s111
      %s128 = sphi 0, %s112
      %s134 = sphi 0, %s136
      %s137 = sphi 0, %s134
      %s138 = sphi 0, %s137
      %s154 = sphi 0, %s138
      %s160 = sphi 0, %s162
      %s163 = sphi 0, %s160
      %s164 = sphi 0, %s163
      %s180 = sphi 0, %s164
      %s186 = sphi 0, %s188
      %s189 = sphi 0, %s186
      %s190 = sphi 0, %s189
      %s206 = sphi 0, %s190
      %s210 = sphi 0, %s210
      %s212 = sphi 0, %s210
      %s213 = sphi 0, %s212
      %s227 = sphi 0, %s213
      %s231 = sphi 0, %s231
      %s233 = sphi 0, %s231
      %s234 = sphi 0, %s233
      %s248 = sphi 0, %s234
      %s254 = sphi 0, %s256
      %s257 = sphi 0, %s254
      %s258 = sphi 0, %s257
      %s274 = sphi 0, %s258
    $region4: #{tpu_custom_call.1} parent=1 // loop_header_branch
      %21 = sbr.rel (%p19) target = $region8
    $region5: #{tpu_custom_call.1} parent=1 // loop_body
      %s23 = ssub.s32 %s18, 1
      %s24 = ssub.s32 %s18, 2
      %s31 = sadd.s32 1, %s26
      %p32 = scmp.ge.s32.totalorder %s31, 2
      %s33 = scalar_select %p32, 0, %s31
      %s34 = sadd.s32 1, %s25
      %s35 = scalar_select %p32, %s34, %s25
      %p36 = scmp.ge.s32.totalorder %s35, 1
      %s37 = scalar_select %p36, 0, %s35
      %s38 = ssub.s32 %s25, %s37
      %p39 = scmp.eq.s32.totalorder %s38, 0
      %s41 = sadd.s32 %s40, 1
      %s42 = scalar_select %p39, %s40, %s41
      %p45 = pneg %p39
      %p46 = scmp.eq.s32.totalorder %s18, 1
      %p47 = por %p45, %p46
      %p48 = scmp.ne.s32.totalorder %s40, %s43
      %p49 = scmp.eq.s32.totalorder %s18, 0
      %p50 = por %p48, %p49
      %p51 = scmp.ne.s32.totalorder %s40, %s43
      %p52 = scmp.eq.s32.totalorder %s23, 1
      %p53 = por %p51, %p52
      %p54 = scmp.ne.s32.totalorder %s43, %s44
      %p55 = scmp.eq.s32.totalorder %s23, 0
      %p56 = por %p54, %p55
      %p57 = scmp.ne.s32.totalorder %s43, %s44
      %p58 = scmp.eq.s32.totalorder %s24, 1
      %p59 = por %p57, %p58
      %p61 = scmp.ne.s32.totalorder %s44, %s60
      %p62 = scmp.eq.s32.totalorder %s24, 0
      %p63 = por %p61, %p62
      %s65 = sadd.s32 %s64, 1
      %p68 = scmp.eq.s32.totalorder %s18, 1
      %p69 = scmp.ne.s32.totalorder %s64, %s66
      %p70 = scmp.eq.s32.totalorder %s18, 0
      %p71 = por %p69, %p70
      %p72 = scmp.ne.s32.totalorder %s64, %s66
      %p73 = scmp.eq.s32.totalorder %s23, 1
      %p74 = por %p72, %p73
      %p75 = scmp.ne.s32.totalorder %s66, %s67
      %p76 = scmp.eq.s32.totalorder %s23, 0
      %p77 = por %p75, %p76
      %p78 = scmp.ne.s32.totalorder %s66, %s67
      %p79 = scmp.eq.s32.totalorder %s24, 1
      %p80 = por %p78, %p79
      %p82 = scmp.ne.s32.totalorder %s67, %s81
      %p83 = scmp.eq.s32.totalorder %s24, 0
      %p84 = por %p82, %p83
      %s86 = sadd.s32 %s85, 1
      %p89 = scmp.eq.s32.totalorder %s18, 1
      %p90 = scmp.ne.s32.totalorder %s85, %s87
      %p91 = scmp.eq.s32.totalorder %s18, 0
      %p92 = por %p90, %p91
      %p93 = scmp.ne.s32.totalorder %s85, %s87
      %p94 = scmp.eq.s32.totalorder %s23, 1
      %p95 = por %p93, %p94
      %p96 = scmp.ne.s32.totalorder %s87, %s88
      %p97 = scmp.eq.s32.totalorder %s23, 0
      %p98 = por %p96, %p97
      %p99 = scmp.ne.s32.totalorder %s87, %s88
      %p100 = scmp.eq.s32.totalorder %s24, 1
      %p101 = por %p99, %p100
      %p103 = scmp.ne.s32.totalorder %s88, %s102
      %p104 = scmp.eq.s32.totalorder %s24, 0
      %p105 = por %p103, %p104
      %s106 = ssub.s32 %s26, %s33
      %p107 = scmp.eq.s32.totalorder %s106, 0
      %s109 = sadd.s32 %s108, 1
      %s110 = scalar_select %p107, %s108, %s109
      %p113 = pneg %p107
      %p114 = scmp.eq.s32.totalorder %s18, 1
      %p115 = por %p113, %p114
      %p116 = scmp.ne.s32.totalorder %s108, %s111
      %p117 = scmp.eq.s32.totalorder %s18, 0
      %p118 = por %p116, %p117
      %p119 = scmp.ne.s32.totalorder %s108, %s111
      %p120 = scmp.eq.s32.totalorder %s23, 1
      %p121 = por %p119, %p120
      %p122 = scmp.ne.s32.totalorder %s111, %s112
      %p123 = scmp.eq.s32.totalorder %s23, 0
      %p124 = por %p122, %p123
      %p125 = scmp.ne.s32.totalorder %s111, %s112
      %p126 = scmp.eq.s32.totalorder %s24, 1
      %p127 = por %p125, %p126
      %p129 = scmp.ne.s32.totalorder %s112, %s128
      %p130 = scmp.eq.s32.totalorder %s24, 0
      %p131 = por %p129, %p130
      %s132 = ssub.s32 %s26, %s33
      %p133 = scmp.eq.s32.totalorder %s132, 0
      %s135 = sadd.s32 %s134, 1
      %s136 = scalar_select %p133, %s134, %s135
      %p139 = pneg %p133
      %p140 = scmp.eq.s32.totalorder %s18, 1
      %p141 = por %p139, %p140
      %p142 = scmp.ne.s32.totalorder %s134, %s137
      %p143 = scmp.eq.s32.totalorder %s18, 0
      %p144 = por %p142, %p143
      %p145 = scmp.ne.s32.totalorder %s134, %s137
      %p146 = scmp.eq.s32.totalorder %s23, 1
      %p147 = por %p145, %p146
      %p148 = scmp.ne.s32.totalorder %s137, %s138
      %p149 = scmp.eq.s32.totalorder %s23, 0
      %p150 = por %p148, %p149
      %p151 = scmp.ne.s32.totalorder %s137, %s138
      %p152 = scmp.eq.s32.totalorder %s24, 1
      %p153 = por %p151, %p152
      %p155 = scmp.ne.s32.totalorder %s138, %s154
      %p156 = scmp.eq.s32.totalorder %s24, 0
      %p157 = por %p155, %p156
      %s158 = ssub.s32 %s26, %s33
      %p159 = scmp.eq.s32.totalorder %s158, 0
      %s161 = sadd.s32 %s160, 1
      %s162 = scalar_select %p159, %s160, %s161
      %p165 = pneg %p159
      %p166 = scmp.eq.s32.totalorder %s18, 1
      %p167 = por %p165, %p166
      %p168 = scmp.ne.s32.totalorder %s160, %s163
      %p169 = scmp.eq.s32.totalorder %s18, 0
      %p170 = por %p168, %p169
      %p171 = scmp.ne.s32.totalorder %s160, %s163
      %p172 = scmp.eq.s32.totalorder %s23, 1
      %p173 = por %p171, %p172
      %p174 = scmp.ne.s32.totalorder %s163, %s164
      %p175 = scmp.eq.s32.totalorder %s23, 0
      %p176 = por %p174, %p175
      %p177 = scmp.ne.s32.totalorder %s163, %s164
      %p178 = scmp.eq.s32.totalorder %s24, 1
      %p179 = por %p177, %p178
      %p181 = scmp.ne.s32.totalorder %s164, %s180
      %p182 = scmp.eq.s32.totalorder %s24, 0
      %p183 = por %p181, %p182
      %s184 = ssub.s32 %s26, %s33
      %p185 = scmp.eq.s32.totalorder %s184, 0
      %s187 = sadd.s32 %s186, 1
      %s188 = scalar_select %p185, %s186, %s187
      %p191 = pneg %p185
      %p192 = scmp.eq.s32.totalorder %s18, 1
      %p193 = por %p191, %p192
      %p194 = scmp.ne.s32.totalorder %s186, %s189
      %p195 = scmp.eq.s32.totalorder %s18, 0
      %p196 = por %p194, %p195
      %p197 = scmp.ne.s32.totalorder %s186, %s189
      %p198 = scmp.eq.s32.totalorder %s23, 1
      %p199 = por %p197, %p198
      %p200 = scmp.ne.s32.totalorder %s189, %s190
      %p201 = scmp.eq.s32.totalorder %s23, 0
      %p202 = por %p200, %p201
      %p203 = scmp.ne.s32.totalorder %s189, %s190
      %p204 = scmp.eq.s32.totalorder %s24, 1
      %p205 = por %p203, %p204
      %p207 = scmp.ne.s32.totalorder %s190, %s206
      %p208 = scmp.eq.s32.totalorder %s24, 0
      %p209 = por %p207, %p208
      %s211 = sadd.s32 %s210, 1
      %p214 = scmp.eq.s32.totalorder %s18, 1
      %p215 = scmp.ne.s32.totalorder %s210, %s212
      %p216 = scmp.eq.s32.totalorder %s18, 0
      %p217 = por %p215, %p216
      %p218 = scmp.ne.s32.totalorder %s210, %s212
      %p219 = scmp.eq.s32.totalorder %s23, 1
      %p220 = por %p218, %p219
      %p221 = scmp.ne.s32.totalorder %s212, %s213
      %p222 = scmp.eq.s32.totalorder %s23, 0
      %p223 = por %p221, %p222
      %p224 = scmp.ne.s32.totalorder %s212, %s213
      %p225 = scmp.eq.s32.totalorder %s24, 1
      %p226 = por %p224, %p225
      %p228 = scmp.ne.s32.totalorder %s213, %s227
      %p229 = scmp.eq.s32.totalorder %s24, 0
      %p230 = por %p228, %p229
      %s232 = sadd.s32 %s231, 1
      %p235 = scmp.eq.s32.totalorder %s18, 1
      %p236 = scmp.ne.s32.totalorder %s231, %s233
      %p237 = scmp.eq.s32.totalorder %s18, 0
      %p238 = por %p236, %p237
      %p239 = scmp.ne.s32.totalorder %s231, %s233
      %p240 = scmp.eq.s32.totalorder %s23, 1
      %p241 = por %p239, %p240
      %p242 = scmp.ne.s32.totalorder %s233, %s234
      %p243 = scmp.eq.s32.totalorder %s23, 0
      %p244 = por %p242, %p243
      %p245 = scmp.ne.s32.totalorder %s233, %s234
      %p246 = scmp.eq.s32.totalorder %s24, 1
      %p247 = por %p245, %p246
      %p249 = scmp.ne.s32.totalorder %s234, %s248
      %p250 = scmp.eq.s32.totalorder %s24, 0
      %p251 = por %p249, %p250
      %s252 = ssub.s32 %s25, %s37
      %p253 = scmp.eq.s32.totalorder %s252, 0
      %s255 = sadd.s32 %s254, 1
      %s256 = scalar_select %p253, %s254, %s255
      %p259 = pneg %p253
      %p260 = scmp.eq.s32.totalorder %s18, 1
      %p261 = por %p259, %p260
      %p262 = scmp.ne.s32.totalorder %s254, %s257
      %p263 = scmp.eq.s32.totalorder %s18, 0
      %p264 = por %p262, %p263
      %p265 = scmp.ne.s32.totalorder %s254, %s257
      %p266 = scmp.eq.s32.totalorder %s23, 1
      %p267 = por %p265, %p266
      %p268 = scmp.ne.s32.totalorder %s257, %s258
      %p269 = scmp.eq.s32.totalorder %s23, 0
      %p270 = por %p268, %p269
      %p271 = scmp.ne.s32.totalorder %s257, %s258
      %p272 = scmp.eq.s32.totalorder %s24, 1
      %p273 = por %p271, %p272
      %p275 = scmp.ne.s32.totalorder %s258, %s274
      %p276 = scmp.eq.s32.totalorder %s24, 0
      %p277 = por %p275, %p276
      %p278 = scmp.le.s32.totalorder 1, %s18
      %p279 = scmp.lt.s32.totalorder %s18, 3
      %p280 = pnand %p278, %p279
      %p281 = pneg %p280
      // Predicated region
      $region9: #{tpu_custom_call.1} parent=5 // pred_check
        _
      $region10: #{tpu_custom_call.1} parent=5 // pred_check_branch
        %283 = sbr.rel (%p280) target = $region12
      $region11: #{tpu_custom_call.1} parent=5 // pred_region
        %s284 = ssub.s32 %s18, 1
        // Predicated region
        $region13: #{tpu_custom_call.1} parent=11 // pred_check
          %p285 = pneg %p56
        $region14: #{tpu_custom_call.1} parent=11 // pred_check_branch
          %287 = sbr.rel (%p285) target = $region16
        $region15: #{tpu_custom_call.1} parent=11 // pred_region
          %s289 = ssub.s32 1024, 1024
          %290 = vsyncadd [#allocation5], %s289
          %s291 = smul.addr %s27, 8
          %s292 = smul.addr %s291, 128
          %s293 = scalar_lea.hbm %s0, %s292
          %s294 = sshll.u32 [#allocation4], 4
          %s295 = int_to_ptr.vmem [resolvable:$true] %s294
          %300 = dma.hbm_to_vmem [thread:$0]  %s293, 1024, %s295, [#allocation5], 128, 128, 8
        $region16: #{tpu_custom_call.1} parent=11 // pred_fallthru
          _
        // Predicated region
        $region17: #{tpu_custom_call.1} parent=11 // pred_check
          %p301 = pneg %p77
        $region18: #{tpu_custom_call.1} parent=11 // pred_check_branch
          %303 = sbr.rel (%p301) target = $region20
        $region19: #{tpu_custom_call.1} parent=11 // pred_region
          %s305 = ssub.s32 2048, 2048
          %306 = vsyncadd [#allocation8], %s305
          %s307 = sshll.u32 [#allocation7], 4
          %s308 = int_to_ptr.vmem [resolvable:$true] %s307
          %313 = dma.hbm_to_vmem [thread:$0]  %s1, 2048, %s308, [#allocation8], 128, 128, 8
        $region20: #{tpu_custom_call.1} parent=11 // pred_fallthru
          _
        // Predicated region
        $region21: #{tpu_custom_call.1} parent=11 // pred_check
          %p314 = pneg %p98
        $region22: #{tpu_custom_call.1} parent=11 // pred_check_branch
          %316 = sbr.rel (%p314) target = $region24
        $region23: #{tpu_custom_call.1} parent=11 // pred_region
          _
        $region24: #{tpu_custom_call.1} parent=11 // pred_fallthru
          _
        // Predicated region
        $region25: #{tpu_custom_call.1} parent=11 // pred_check
          %p317 = pneg %p223
        $region26: #{tpu_custom_call.1} parent=11 // pred_check_branch
          %319 = sbr.rel (%p317) target = $region28
        $region27: #{tpu_custom_call.1} parent=11 // pred_region
          %s321 = ssub.s32 2048, 2048
          %322 = vsyncadd [#allocation8], %s321
          %s323 = sshll.u32 [#allocation12], 4
          %s324 = int_to_ptr.vmem [resolvable:$true] %s323
          %329 = dma.hbm_to_vmem [thread:$0]  %s7, 2048, %s324, [#allocation8], 128, 128, 8
        $region28: #{tpu_custom_call.1} parent=11 // pred_fallthru
          _
        // Predicated region
        $region29: #{tpu_custom_call.1} parent=11 // pred_check
          %p330 = pneg %p244
        $region30: #{tpu_custom_call.1} parent=11 // pred_check_branch
          %332 = sbr.rel (%p330) target = $region32
        $region31: #{tpu_custom_call.1} parent=11 // pred_region
          _
        $region32: #{tpu_custom_call.1} parent=11 // pred_fallthru
          _
      $region12: #{tpu_custom_call.1} parent=5 // pred_fallthru
        _
      %p333 = scmp.lt.s32.totalorder %s18, 2
      // Predicated region
      $region33: #{tpu_custom_call.1} parent=5 // pred_check
        %p334 = pneg %p333
      $region34: #{tpu_custom_call.1} parent=5 // pred_check_branch
        %336 = sbr.rel (%p334) target = $region36
      $region35: #{tpu_custom_call.1} parent=5 // pred_region
        // Predicated region
        $region37: #{tpu_custom_call.1} parent=35 // pred_check
          %p337 = pneg %p118
        $region38: #{tpu_custom_call.1} parent=35 // pred_check_branch
          %339 = sbr.rel (%p337) target = $region40
        $region39: #{tpu_custom_call.1} parent=35 // pred_region
          %s340 = sand.u32 %s18, 1
          %s341 = scalar_lea.sflag [#allocation5], %s340
          %s342 = sand.u32 %s108, 1
          %s343 = smul.addr %s342, 384
          %s344 = scalar_lea.vmem [#allocation9], %s343
          %s346 = ssub.s32 6144, 6144
          %347 = vsyncadd %s341, %s346
          %s348 = smul.addr %s26, 48
          %s349 = smul.addr %s348, 128
          %s350 = scalar_lea.hbm %s3, %s349
          %s351 = sshll.u32 %s344, 4
          %s352 = int_to_ptr.vmem [resolvable:$true] %s351
          %357 = dma.hbm_to_vmem [thread:$0]  %s350, 6144, %s352, %s341, 384, 384, 24
        $region40: #{tpu_custom_call.1} parent=35 // pred_fallthru
          _
        // Predicated region
        $region41: #{tpu_custom_call.1} parent=35 // pred_check
          %p358 = pneg %p144
        $region42: #{tpu_custom_call.1} parent=35 // pred_check_branch
          %360 = sbr.rel (%p358) target = $region44
        $region43: #{tpu_custom_call.1} parent=35 // pred_region
          %s361 = sand.u32 %s18, 1
          %s362 = scalar_lea.sflag [#allocation5], %s361
          %s363 = sand.u32 %s134, 1
          %s364 = smul.addr %s363, 384
          %s365 = scalar_lea.vmem [#allocation10], %s364
          %s367 = ssub.s32 6144, 6144
          %368 = vsyncadd %s362, %s367
          %s369 = smul.addr %s26, 48
          %s370 = smul.addr %s369, 128
          %s371 = scalar_lea.hbm %s4, %s370
          %s372 = sshll.u32 %s365, 4
          %s373 = int_to_ptr.vmem [resolvable:$true] %s372
          %378 = dma.hbm_to_vmem [thread:$0]  %s371, 6144, %s373, %s362, 384, 384, 24
        $region44: #{tpu_custom_call.1} parent=35 // pred_fallthru
          _
        // Predicated region
        $region45: #{tpu_custom_call.1} parent=35 // pred_check
          %p379 = pneg %p170
        $region46: #{tpu_custom_call.1} parent=35 // pred_check_branch
          %381 = sbr.rel (%p379) target = $region48
        $region47: #{tpu_custom_call.1} parent=35 // pred_region
          %p382 = scmp.lt.s32.totalorder %s26, 1
          %s383 = scalar_select %p382, %s26, 1
          %s384 = smul.addr %s383, 3
          %s385 = scalar_lea.vmem %s5, %s384
        $region48: #{tpu_custom_call.1} parent=35 // pred_fallthru
          _
        // Predicated region
        $region49: #{tpu_custom_call.1} parent=35 // pred_check
          %p386 = pneg %p196
        $region50: #{tpu_custom_call.1} parent=35 // pred_check_branch
          %388 = sbr.rel (%p386) target = $region52
        $region51: #{tpu_custom_call.1} parent=35 // pred_region
          %s389 = sand.u32 %s18, 1
          %s390 = scalar_lea.sflag [#allocation5], %s389
          %s391 = sand.u32 %s186, 1
          %s392 = smul.addr %s391, 3
          %s393 = scalar_lea.vmem [#allocation11], %s392
          %s395 = ssub.s32 48, 48
          %396 = vsyncadd %s390, %s395
          %s397 = smul.addr %s26, 3
          %s398 = smul.addr %s397, 16
          %s399 = scalar_lea.hbm %s6, %s398
          %s401 = sshll.u32 %s393, 4
          %s402 = int_to_ptr.vmem [resolvable:$true] %s401
          %404 = dma.hbm_to_vmem [thread:$0]  %s399, 48, %s402, %s390
        $region52: #{tpu_custom_call.1} parent=35 // pred_fallthru
          _
      $region36: #{tpu_custom_call.1} parent=5 // pred_fallthru
        _
      %p405 = scmp.le.s32.totalorder 1, %s18
      %p406 = scmp.lt.s32.totalorder %s18, 3
      %p407 = pnand %p405, %p406
      %p408 = pneg %p407
      // Predicated region
      $region53: #{tpu_custom_call.1} parent=5 // pred_check
        _
      $region54: #{tpu_custom_call.1} parent=5 // pred_check_branch
        %410 = sbr.rel (%p407) target = $region56
      $region55: #{tpu_custom_call.1} parent=5 // pred_region
        %s411 = ssub.s32 %s18, 1
        // Predicated region
        $region57: #{tpu_custom_call.1} parent=55 // pred_check
          %p412 = pneg %p56
        $region58: #{tpu_custom_call.1} parent=55 // pred_check_branch
          %414 = sbr.rel (%p412) target = $region60
        $region59: #{tpu_custom_call.1} parent=55 // pred_region
          %415 = dma.done [#allocation5], 1024
        $region60: #{tpu_custom_call.1} parent=55 // pred_fallthru
          _
        // Predicated region
        $region61: #{tpu_custom_call.1} parent=55 // pred_check
          %p416 = pneg %p77
        $region62: #{tpu_custom_call.1} parent=55 // pred_check_branch
          %418 = sbr.rel (%p416) target = $region64
        $region63: #{tpu_custom_call.1} parent=55 // pred_region
          %419 = dma.done [#allocation8], 2048
        $region64: #{tpu_custom_call.1} parent=55 // pred_fallthru
          _
        %s420 = sand.u32 %s23, 1
        %s421 = scalar_lea.sflag [#allocation5], %s420
        %s422 = sand.u32 %s111, 1
        %s423 = smul.addr %s422, 384
        %s424 = scalar_lea.vmem [#allocation9], %s423
        // Predicated region
        $region65: #{tpu_custom_call.1} parent=55 // pred_check
          %p425 = pneg %p124
        $region66: #{tpu_custom_call.1} parent=55 // pred_check_branch
          %427 = sbr.rel (%p425) target = $region68
        $region67: #{tpu_custom_call.1} parent=55 // pred_region
          %428 = dma.done %s421, 6144
        $region68: #{tpu_custom_call.1} parent=55 // pred_fallthru
          _
        %s429 = sand.u32 %s23, 1
        %s430 = scalar_lea.sflag [#allocation5], %s429
        %s431 = sand.u32 %s137, 1
        %s432 = smul.addr %s431, 384
        %s433 = scalar_lea.vmem [#allocation10], %s432
        // Predicated region
        $region69: #{tpu_custom_call.1} parent=55 // pred_check
          %p434 = pneg %p150
        $region70: #{tpu_custom_call.1} parent=55 // pred_check_branch
          %436 = sbr.rel (%p434) target = $region72
        $region71: #{tpu_custom_call.1} parent=55 // pred_region
          %437 = dma.done %s430, 6144
        $region72: #{tpu_custom_call.1} parent=55 // pred_fallthru
          _
        %s438 = sand.u32 %s23, 1
        %s439 = scalar_lea.sflag [#allocation5], %s438
        %s440 = sand.u32 %s189, 1
        %s441 = smul.addr %s440, 3
        %s442 = scalar_lea.vmem [#allocation11], %s441
        // Predicated region
        $region73: #{tpu_custom_call.1} parent=55 // pred_check
          %p443 = pneg %p202
        $region74: #{tpu_custom_call.1} parent=55 // pred_check_branch
          %445 = sbr.rel (%p443) target = $region76
        $region75: #{tpu_custom_call.1} parent=55 // pred_region
          %446 = dma.done %s439, 48
        $region76: #{tpu_custom_call.1} parent=55 // pred_fallthru
          _
        // Predicated region
        $region77: #{tpu_custom_call.1} parent=55 // pred_check
          %p447 = pneg %p223
        $region78: #{tpu_custom_call.1} parent=55 // pred_check_branch
          %449 = sbr.rel (%p447) target = $region80
        $region79: #{tpu_custom_call.1} parent=55 // pred_region
          %450 = dma.done [#allocation8], 2048
        $region80: #{tpu_custom_call.1} parent=55 // pred_fallthru
          _
        %p451 = pneg %p56
        %p452 = pneg %p53
        %p453 = pneg %p77
        %p454 = pneg %p74
        %p455 = pneg %p98
        %p456 = pneg %p95
        %s457 = sand.u32 %s23, 1
        %s458 = scalar_lea.sflag [#allocation5], %s457
        %s459 = sand.u32 %s111, 1
        %s460 = smul.addr %s459, 384
        %s461 = scalar_lea.vmem [#allocation9], %s460
        %p462 = pneg %p124
        %p463 = pneg %p121
        %s464 = sand.u32 %s23, 1
        %s465 = scalar_lea.sflag [#allocation5], %s464
        %s466 = sand.u32 %s137, 1
        %s467 = smul.addr %s466, 384
        %s468 = scalar_lea.vmem [#allocation10], %s467
        %p469 = pneg %p150
        %p470 = pneg %p147
        %p471 = scmp.lt.s32.totalorder %s28, 1
        %s472 = scalar_select %p471, %s28, 1
        %s473 = smul.addr %s472, 3
        %s474 = scalar_lea.vmem %s5, %s473
        %p475 = pneg %p176
        %p476 = pneg %p173
        %s477 = sand.u32 %s23, 1
        %s478 = scalar_lea.sflag [#allocation5], %s477
        %s479 = sand.u32 %s189, 1
        %s480 = smul.addr %s479, 3
        %s481 = scalar_lea.vmem [#allocation11], %s480
        %p482 = pneg %p202
        %p483 = pneg %p199
        %p484 = pneg %p223
        %p485 = pneg %p220
        %p486 = pneg %p244
        %p487 = pneg %p241
        %p488 = pneg %p270
        %p489 = pneg %p267
        %p490 = scmp.lt.s32.totalorder %s28, 1
        %s491 = scalar_select %p490, %s28, 1
        %s492 = smul.addr %s491, 3
        %s493 = scalar_lea.vmem %s5, %s492
        %p494 = scmp.eq.s32.totalorder %s28, 0
        // Predicated region
        $region81: #{tpu_custom_call.1} parent=55 // pred_check
          %p495 = pneg %p494
        $region82: #{tpu_custom_call.1} parent=55 // pred_check_branch
          %497 = sbr.rel (%p495) target = $region84
        $region83: #{tpu_custom_call.1} parent=55 // pred_region
          %v498 = vld [vmem:[#allocation4] sm:$0xff]
          %v499 = vld [vmem:[#allocation4 + $0x8] sm:$0xff]
          %v500 = vld [vmem:[#allocation4 + $0x10] sm:$0xff]
          %v501 = vld [vmem:[#allocation4 + $0x18] sm:$0xff]
          %v502 = vld [vmem:[#allocation4 + $0x20] sm:$0xff]
          %v503 = vld [vmem:[#allocation4 + $0x28] sm:$0xff]
          %v504 = vld [vmem:[#allocation4 + $0x30] sm:$0xff]
          %v505 = vld [vmem:[#allocation4 + $0x38] sm:$0xff]
          %v506 = vld [vmem:[#allocation7] sm:$0xff]
          %v507 = vld [vmem:[#allocation7 + $0x8] sm:$0xff]
          %v508 = vld [vmem:[#allocation7 + $0x10] sm:$0xff]
          %v509 = vld [vmem:[#allocation7 + $0x18] sm:$0xff]
          %v510 = vld [vmem:[#allocation7 + $0x20] sm:$0xff]
          %v511 = vld [vmem:[#allocation7 + $0x28] sm:$0xff]
          %v512 = vld [vmem:[#allocation7 + $0x30] sm:$0xff]
          %v513 = vld [vmem:[#allocation7 + $0x38] sm:$0xff]
          %v514 = vld [vmem:[#allocation7 + $0x40] sm:$0xff]
          %v515 = vld [vmem:[#allocation7 + $0x48] sm:$0xff]
          %v516 = vld [vmem:[#allocation7 + $0x50] sm:$0xff]
          %v517 = vld [vmem:[#allocation7 + $0x58] sm:$0xff]
          %v518 = vld [vmem:[#allocation7 + $0x60] sm:$0xff]
          %v519 = vld [vmem:[#allocation7 + $0x68] sm:$0xff]
          %v520 = vld [vmem:[#allocation7 + $0x70] sm:$0xff]
          %v521 = vld [vmem:[#allocation7 + $0x78] sm:$0xff]
          %v522 = vld [vmem:[%s2] sm:$0x1]
          %v524 = vlaneseq
          %v525 = vshrl.u32 %v524, 7
          %v526 = vsub.s32 0, %v525
          %v527 = vrot.slane %v522, %v526
          %529 = vmatprep.subr.mxu0 0.0
          %530 = vmatpush1.msra.mxu0 %v521
          %531 = vmatprep.subr.mxu0 0.0
          %532 = vmatpush1.msra.mxu0 %v520
          %533 = vmatprep.subr.mxu0 0.0
          %534 = vmatpush1.msra.mxu0 %v519
          %535 = vmatprep.subr.mxu0 0.0
          %536 = vmatpush1.msra.mxu0 %v518
          %537 = vmatprep.subr.mxu0 0.0
          %538 = vmatpush1.msra.mxu0 %v517
          %539 = vmatprep.subr.mxu0 0.0
          %540 = vmatpush1.msra.mxu0 %v516
          %541 = vmatprep.subr.mxu0 0.0
          %542 = vmatpush1.msra.mxu0 %v515
          %543 = vmatprep.subr.mxu0 0.0
          %544 = vmatpush1.msra.mxu0 %v514
          %545 = vmatprep.subr.mxu0 0.0
          %546 = vmatpush1.msra.mxu0 %v513
          %547 = vmatprep.subr.mxu0 0.0
          %548 = vmatpush1.msra.mxu0 %v512
          %549 = vmatprep.subr.mxu0 0.0
          %550 = vmatpush1.msra.mxu0 %v511
          %551 = vmatprep.subr.mxu0 0.0
          %552 = vmatpush1.msra.mxu0 %v510
          %553 = vmatprep.subr.mxu0 0.0
          %554 = vmatpush1.msra.mxu0 %v509
          %555 = vmatprep.subr.mxu0 0.0
          %556 = vmatpush1.msra.mxu0 %v508
          %557 = vmatprep.subr.mxu0 0.0
          %558 = vmatpush1.msra.mxu0 %v507
          %559 = vmatprep.subr.mxu0 0.0
          %560 = vmatpush1.msra.mxu0 %v506
          %561 = vmatprep.subr.mxu0 0.0
          %562 = vmatpush2.msra.mxu0 0.0
          %563 = vmatprep.subr.mxu0 0.0
          %564 = vmatpush2.msra.mxu0 0.0
          %565 = vmatprep.subr.mxu0 0.0
          %566 = vmatpush2.msra.mxu0 0.0
          %567 = vmatprep.subr.mxu0 0.0
          %568 = vmatpush2.msra.mxu0 0.0
          %569 = vmatprep.subr.mxu0 0.0
          %570 = vmatpush2.msra.mxu0 0.0
          %571 = vmatprep.subr.mxu0 0.0
          %572 = vmatpush2.msra.mxu0 0.0
          %573 = vmatprep.subr.mxu0 0.0
          %574 = vmatpush2.msra.mxu0 0.0
          %575 = vmatprep.subr.mxu0 0.0
          %576 = vmatpush2.msra.mxu0 0.0
          %577 = vmatprep.subr.mxu0 0.0
          %578 = vmatpush2.msra.mxu0 0.0
          %579 = vmatprep.subr.mxu0 0.0
          %580 = vmatpush2.msra.mxu0 0.0
          %581 = vmatprep.subr.mxu0 0.0
          %582 = vmatpush2.msra.mxu0 0.0
          %583 = vmatprep.subr.mxu0 0.0
          %584 = vmatpush2.msra.mxu0 0.0
          %585 = vmatprep.subr.mxu0 0.0
          %586 = vmatpush2.msra.mxu0 0.0
          %587 = vmatprep.subr.mxu0 0.0
          %588 = vmatpush2.msra.mxu0 0.0
          %589 = vmatprep.subr.mxu0 0.0
          %590 = vmatpush2.msra.mxu0 0.0
          %591 = vmatprep.subr.mxu0 0.0
          %592 = vmatpush2.msra.mxu0 0.0
          %593 = vmatprep.mubr.f32.mxu0 0.0
          %594 = vmatmul.mubr.f32.gmra.mxu0 %v498
          %v595 = vpop.f32.mrf.mxu0
          %v596 = vadd.f32 %v527, %v595
          %v597 = vpop.f32.mrf.mxu0
          %598 = vmatprep.mubr.f32.mxu0 0.0
          %599 = vmatmul.mubr.f32.gmra.mxu0 %v499
          %v600 = vpop.f32.mrf.mxu0
          %v601 = vadd.f32 %v527, %v600
          %v602 = vpop.f32.mrf.mxu0
          %603 = vmatprep.mubr.f32.mxu0 0.0
          %604 = vmatmul.mubr.f32.gmra.mxu0 %v500
          %v605 = vpop.f32.mrf.mxu0
          %v606 = vadd.f32 %v527, %v605
          %v607 = vpop.f32.mrf.mxu0
          %608 = vmatprep.mubr.f32.mxu0 0.0
          %609 = vmatmul.mubr.f32.gmra.mxu0 %v501
          %v610 = vpop.f32.mrf.mxu0
          %v611 = vadd.f32 %v527, %v610
          %v612 = vpop.f32.mrf.mxu0
          %613 = vmatprep.mubr.f32.mxu0 0.0
          %614 = vmatmul.mubr.f32.gmra.mxu0 %v502
          %v615 = vpop.f32.mrf.mxu0
          %v616 = vadd.f32 %v527, %v615
          %v617 = vpop.f32.mrf.mxu0
          %618 = vmatprep.mubr.f32.mxu0 0.0
          %619 = vmatmul.mubr.f32.gmra.mxu0 %v503
          %v620 = vpop.f32.mrf.mxu0
          %v621 = vadd.f32 %v527, %v620
          %v622 = vpop.f32.mrf.mxu0
          %623 = vmatprep.mubr.f32.mxu0 0.0
          %624 = vmatmul.mubr.f32.gmra.mxu0 %v504
          %v625 = vpop.f32.mrf.mxu0
          %v626 = vadd.f32 %v527, %v625
          %v627 = vpop.f32.mrf.mxu0
          %628 = vmatprep.mubr.f32.mxu0 0.0
          %629 = vmatmul.mubr.f32.gmra.mxu0 %v505
          %v630 = vpop.f32.mrf.mxu0
          %v631 = vadd.f32 %v527, %v630
          %v632 = vpop.f32.mrf.mxu0
          %633 = vdwg.mxu0
          %634 = vst [vmem:[#allocation2] sm:$0xff] %v596
          %635 = vst [vmem:[#allocation2 + $0x8] sm:$0xff] %v601
          %636 = vst [vmem:[#allocation2 + $0x10] sm:$0xff] %v606
          %637 = vst [vmem:[#allocation2 + $0x18] sm:$0xff] %v611
          %638 = vst [vmem:[#allocation2 + $0x20] sm:$0xff] %v616
          %639 = vst [vmem:[#allocation2 + $0x28] sm:$0xff] %v621
          %640 = vst [vmem:[#allocation2 + $0x30] sm:$0xff] %v626
          %641 = vst [vmem:[#allocation2 + $0x38] sm:$0xff] %v631
        $region84: #{tpu_custom_call.1} parent=55 // pred_fallthru
          _
        %v642 = vld [vmem:[%s424] sm:$0xff]
        %v643 = vld [vmem:[%s424 + $0x8] sm:$0xff]
        %v644 = vld [vmem:[%s424 + $0x10] sm:$0xff]
        %v645 = vld [vmem:[%s424 + $0x18] sm:$0xff]
        %v646 = vld [vmem:[%s424 + $0x20] sm:$0xff]
        %v647 = vld [vmem:[%s424 + $0x28] sm:$0xff]
        %v648 = vld [vmem:[%s424 + $0x30] sm:$0xff]
        %v649 = vld [vmem:[%s424 + $0x38] sm:$0xff]
        %v650 = vld [vmem:[%s424 + $0x40] sm:$0xff]
        %v651 = vld [vmem:[%s424 + $0x48] sm:$0xff]
        %v652 = vld [vmem:[%s424 + $0x50] sm:$0xff]
        %v653 = vld [vmem:[%s424 + $0x58] sm:$0xff]
        %v654 = vld [vmem:[%s424 + $0x60] sm:$0xff]
        %v655 = vld [vmem:[%s424 + $0x68] sm:$0xff]
        %v656 = vld [vmem:[%s424 + $0x70] sm:$0xff]
        %v657 = vld [vmem:[%s424 + $0x78] sm:$0xff]
        %v658 = vld [vmem:[%s424 + $0x80] sm:$0xff]
        %v659 = vld [vmem:[%s424 + $0x88] sm:$0xff]
        %v660 = vld [vmem:[%s424 + $0x90] sm:$0xff]
        %v661 = vld [vmem:[%s424 + $0x98] sm:$0xff]
        %v662 = vld [vmem:[%s424 + $0xa0] sm:$0xff]
        %v663 = vld [vmem:[%s424 + $0xa8] sm:$0xff]
        %v664 = vld [vmem:[%s424 + $0xb0] sm:$0xff]
        %v665 = vld [vmem:[%s424 + $0xb8] sm:$0xff]
        %v666 = vld [vmem:[%s424 + $0xc0] sm:$0xff]
        %v667 = vld [vmem:[%s424 + $0xc8] sm:$0xff]
        %v668 = vld [vmem:[%s424 + $0xd0] sm:$0xff]
        %v669 = vld [vmem:[%s424 + $0xd8] sm:$0xff]
        %v670 = vld [vmem:[%s424 + $0xe0] sm:$0xff]
        %v671 = vld [vmem:[%s424 + $0xe8] sm:$0xff]
        %v672 = vld [vmem:[%s424 + $0xf0] sm:$0xff]
        %v673 = vld [vmem:[%s424 + $0xf8] sm:$0xff]
        %v674 = vld [vmem:[%s424 + $0x100] sm:$0xff]
        %v675 = vld [vmem:[%s424 + $0x108] sm:$0xff]
        %v676 = vld [vmem:[%s424 + $0x110] sm:$0xff]
        %v677 = vld [vmem:[%s424 + $0x118] sm:$0xff]
        %v678 = vld [vmem:[%s424 + $0x120] sm:$0xff]
        %v679 = vld [vmem:[%s424 + $0x128] sm:$0xff]
        %v680 = vld [vmem:[%s424 + $0x130] sm:$0xff]
        %v681 = vld [vmem:[%s424 + $0x138] sm:$0xff]
        %v682 = vld [vmem:[%s424 + $0x140] sm:$0xff]
        %v683 = vld [vmem:[%s424 + $0x148] sm:$0xff]
        %v684 = vld [vmem:[%s424 + $0x150] sm:$0xff]
        %v685 = vld [vmem:[%s424 + $0x158] sm:$0xff]
        %v686 = vld [vmem:[%s424 + $0x160] sm:$0xff]
        %v687 = vld [vmem:[%s424 + $0x168] sm:$0xff]
        %v688 = vld [vmem:[%s424 + $0x170] sm:$0xff]
        %v689 = vld [vmem:[%s424 + $0x178] sm:$0xff]
        %v690 = vld [vmem:[%s493] sm:$0x7]
        %v691 = vld [vmem:[%s433] sm:$0xff]
        %v692 = vld [vmem:[%s433 + $0x8] sm:$0xff]
        %v693 = vld [vmem:[%s433 + $0x10] sm:$0xff]
        %v694 = vld [vmem:[%s433 + $0x18] sm:$0xff]
        %v695 = vld [vmem:[%s433 + $0x20] sm:$0xff]
        %v696 = vld [vmem:[%s433 + $0x28] sm:$0xff]
        %v697 = vld [vmem:[%s433 + $0x30] sm:$0xff]
        %v698 = vld [vmem:[%s433 + $0x38] sm:$0xff]
        %v699 = vld [vmem:[%s433 + $0x40] sm:$0xff]
        %v700 = vld [vmem:[%s433 + $0x48] sm:$0xff]
        %v701 = vld [vmem:[%s433 + $0x50] sm:$0xff]
        %v702 = vld [vmem:[%s433 + $0x58] sm:$0xff]
        %v703 = vld [vmem:[%s433 + $0x60] sm:$0xff]
        %v704 = vld [vmem:[%s433 + $0x68] sm:$0xff]
        %v705 = vld [vmem:[%s433 + $0x70] sm:$0xff]
        %v706 = vld [vmem:[%s433 + $0x78] sm:$0xff]
        %v707 = vld [vmem:[%s433 + $0x80] sm:$0xff]
        %v708 = vld [vmem:[%s433 + $0x88] sm:$0xff]
        %v709 = vld [vmem:[%s433 + $0x90] sm:$0xff]
        %v710 = vld [vmem:[%s433 + $0x98] sm:$0xff]
        %v711 = vld [vmem:[%s433 + $0xa0] sm:$0xff]
        %v712 = vld [vmem:[%s433 + $0xa8] sm:$0xff]
        %v713 = vld [vmem:[%s433 + $0xb0] sm:$0xff]
        %v714 = vld [vmem:[%s433 + $0xb8] sm:$0xff]
        %v715 = vld [vmem:[%s433 + $0xc0] sm:$0xff]
        %v716 = vld [vmem:[%s433 + $0xc8] sm:$0xff]
        %v717 = vld [vmem:[%s433 + $0xd0] sm:$0xff]
        %v718 = vld [vmem:[%s433 + $0xd8] sm:$0xff]
        %v719 = vld [vmem:[%s433 + $0xe0] sm:$0xff]
        %v720 = vld [vmem:[%s433 + $0xe8] sm:$0xff]
        %v721 = vld [vmem:[%s433 + $0xf0] sm:$0xff]
        %v722 = vld [vmem:[%s433 + $0xf8] sm:$0xff]
        %v723 = vld [vmem:[%s433 + $0x100] sm:$0xff]
        %v724 = vld [vmem:[%s433 + $0x108] sm:$0xff]
        %v725 = vld [vmem:[%s433 + $0x110] sm:$0xff]
        %v726 = vld [vmem:[%s433 + $0x118] sm:$0xff]
        %v727 = vld [vmem:[%s433 + $0x120] sm:$0xff]
        %v728 = vld [vmem:[%s433 + $0x128] sm:$0xff]
        %v729 = vld [vmem:[%s433 + $0x130] sm:$0xff]
        %v730 = vld [vmem:[%s433 + $0x138] sm:$0xff]
        %v731 = vld [vmem:[%s433 + $0x140] sm:$0xff]
        %v732 = vld [vmem:[%s433 + $0x148] sm:$0xff]
        %v733 = vld [vmem:[%s433 + $0x150] sm:$0xff]
        %v734 = vld [vmem:[%s433 + $0x158] sm:$0xff]
        %v735 = vld [vmem:[%s433 + $0x160] sm:$0xff]
        %v736 = vld [vmem:[%s433 + $0x168] sm:$0xff]
        %v737 = vld [vmem:[%s433 + $0x170] sm:$0xff]
        %v738 = vld [vmem:[%s433 + $0x178] sm:$0xff]
        %v739 = vld [vmem:[%s442] sm:$0x7]
        %v740 = vld [vmem:[#allocation2] sm:$0xff]
        %v741 = vld [vmem:[#allocation2 + $0x8] sm:$0xff]
        %v742 = vld [vmem:[#allocation2 + $0x10] sm:$0xff]
        %v743 = vld [vmem:[#allocation2 + $0x18] sm:$0xff]
        %v744 = vld [vmem:[#allocation2 + $0x20] sm:$0xff]
        %v745 = vld [vmem:[#allocation2 + $0x28] sm:$0xff]
        %v746 = vld [vmem:[#allocation2 + $0x30] sm:$0xff]
        %v747 = vld [vmem:[#allocation2 + $0x38] sm:$0xff]
        %v749 = vlaneseq
        %v750 = vshrl.u32 %v749, 7
        %v751 = vsub.s32 0, %v750
        %v752 = vrot.slane %v690, %v751
        %v753 = vlaneseq
        %v754 = vshrl.u32 %v753, 7
        %v755 = vsub.s32 1, %v754
        %v756 = vrot.slane %v690, %v755
        %v757 = vlaneseq
        %v758 = vshrl.u32 %v757, 7
        %v759 = vsub.s32 2, %v758
        %v760 = vrot.slane %v690, %v759
        %764 = vmatprep.subr.mxu0 %v688
        %765 = vmatpush1.msra.mxu0 %v687
        %766 = vmatprep.subr.mxu0 %v685
        %767 = vmatpush1.msra.mxu0 %v684
        %768 = vmatprep.subr.mxu0 %v682
        %769 = vmatpush1.msra.mxu0 %v681
        %770 = vmatprep.subr.mxu0 %v679
        %771 = vmatpush1.msra.mxu0 %v678
        %772 = vmatprep.subr.mxu0 %v676
        %773 = vmatpush1.msra.mxu0 %v675
        %774 = vmatprep.subr.mxu0 %v673
        %775 = vmatpush1.msra.mxu0 %v672
        %776 = vmatprep.subr.mxu0 %v670
        %777 = vmatpush1.msra.mxu0 %v669
        %778 = vmatprep.subr.mxu0 %v667
        %779 = vmatpush1.msra.mxu0 %v666
        %780 = vmatprep.subr.mxu0 %v664
        %781 = vmatpush1.msra.mxu0 %v663
        %782 = vmatprep.subr.mxu0 %v661
        %783 = vmatpush1.msra.mxu0 %v660
        %784 = vmatprep.subr.mxu0 %v658
        %785 = vmatpush1.msra.mxu0 %v657
        %786 = vmatprep.subr.mxu0 %v655
        %787 = vmatpush1.msra.mxu0 %v654
        %788 = vmatprep.subr.mxu0 %v652
        %789 = vmatpush1.msra.mxu0 %v651
        %790 = vmatprep.subr.mxu0 %v649
        %791 = vmatpush1.msra.mxu0 %v648
        %792 = vmatprep.subr.mxu0 %v646
        %793 = vmatpush1.msra.mxu0 %v645
        %794 = vmatprep.subr.mxu0 %v643
        %795 = vmatpush1.msra.mxu0 %v642
        %796 = vmatprep.subr.mxu0 0.0
        %797 = vmatpush2.msra.mxu0 0.0
        %798 = vmatprep.subr.mxu0 0.0
        %799 = vmatpush2.msra.mxu0 0.0
        %800 = vmatprep.subr.mxu0 0.0
        %801 = vmatpush2.msra.mxu0 0.0
        %802 = vmatprep.subr.mxu0 0.0
        %803 = vmatpush2.msra.mxu0 0.0
        %804 = vmatprep.subr.mxu0 0.0
        %805 = vmatpush2.msra.mxu0 0.0
        %806 = vmatprep.subr.mxu0 0.0
        %807 = vmatpush2.msra.mxu0 0.0
        %808 = vmatprep.subr.mxu0 0.0
        %809 = vmatpush2.msra.mxu0 0.0
        %810 = vmatprep.subr.mxu0 0.0
        %811 = vmatpush2.msra.mxu0 0.0
        %812 = vmatprep.subr.mxu0 0.0
        %813 = vmatpush2.msra.mxu0 0.0
        %814 = vmatprep.subr.mxu0 0.0
        %815 = vmatpush2.msra.mxu0 0.0
        %816 = vmatprep.subr.mxu0 0.0
        %817 = vmatpush2.msra.mxu0 0.0
        %818 = vmatprep.subr.mxu0 0.0
        %819 = vmatpush2.msra.mxu0 0.0
        %820 = vmatprep.subr.mxu0 0.0
        %821 = vmatpush2.msra.mxu0 0.0
        %822 = vmatprep.subr.mxu0 0.0
        %823 = vmatpush2.msra.mxu0 0.0
        %824 = vmatprep.subr.mxu0 0.0
        %825 = vmatpush2.msra.mxu0 0.0
        %826 = vmatprep.subr.mxu0 0.0
        %827 = vmatpush2.msra.mxu0 0.0
        %828 = vmatprep.mubr.f32.mxu0 0.0
        %829 = vmatmul.mubr.f32.gmra.mxu0 %v740
        %v830 = vpop.f32.mrf.mxu0
        %v831 = vadd.f32 %v752, %v830
        %v832 = vpop.f32.mrf.mxu0
        %v833 = vadd.f32 %v756, %v832
        %834 = vmatprep.mubr.f32.mxu0 0.0
        %835 = vmatmul.mubr.f32.gmra.mxu0 %v741
        %v836 = vpop.f32.mrf.mxu0
        %v837 = vadd.f32 %v752, %v836
        %v838 = vpop.f32.mrf.mxu0
        %v839 = vadd.f32 %v756, %v838
        %840 = vmatprep.mubr.f32.mxu0 0.0
        %841 = vmatmul.mubr.f32.gmra.mxu0 %v742
        %v842 = vpop.f32.mrf.mxu0
        %v843 = vadd.f32 %v752, %v842
        %v844 = vpop.f32.mrf.mxu0
        %v845 = vadd.f32 %v756, %v844
        %846 = vmatprep.mubr.f32.mxu0 0.0
        %847 = vmatmul.mubr.f32.gmra.mxu0 %v743
        %v848 = vpop.f32.mrf.mxu0
        %v849 = vadd.f32 %v752, %v848
        %v850 = vpop.f32.mrf.mxu0
        %v851 = vadd.f32 %v756, %v850
        %852 = vmatprep.mubr.f32.mxu0 0.0
        %853 = vmatmul.mubr.f32.gmra.mxu0 %v744
        %v854 = vpop.f32.mrf.mxu0
        %v855 = vadd.f32 %v752, %v854
        %v856 = vpop.f32.mrf.mxu0
        %v857 = vadd.f32 %v756, %v856
        %858 = vmatprep.mubr.f32.mxu0 0.0
        %859 = vmatmul.mubr.f32.gmra.mxu0 %v745
        %v860 = vpop.f32.mrf.mxu0
        %v861 = vadd.f32 %v752, %v860
        %v862 = vpop.f32.mrf.mxu0
        %v863 = vadd.f32 %v756, %v862
        %864 = vmatprep.mubr.f32.mxu0 0.0
        %865 = vmatmul.mubr.f32.gmra.mxu0 %v746
        %v866 = vpop.f32.mrf.mxu0
        %v867 = vadd.f32 %v752, %v866
        %v868 = vpop.f32.mrf.mxu0
        %v869 = vadd.f32 %v756, %v868
        %870 = vmatprep.mubr.f32.mxu0 0.0
        %871 = vmatmul.mubr.f32.gmra.mxu0 %v747
        %v872 = vpop.f32.mrf.mxu0
        %v873 = vadd.f32 %v752, %v872
        %v874 = vpop.f32.mrf.mxu0
        %v875 = vadd.f32 %v756, %v874
        %876 = vdwg.mxu0
        %877 = vmatprep.subr.mxu0 0.0
        %878 = vmatpush1.msra.mxu0 %v689
        %879 = vmatprep.subr.mxu0 0.0
        %880 = vmatpush1.msra.mxu0 %v686
        %881 = vmatprep.subr.mxu0 0.0
        %882 = vmatpush1.msra.mxu0 %v683
        %883 = vmatprep.subr.mxu0 0.0
        %884 = vmatpush1.msra.mxu0 %v680
        %885 = vmatprep.subr.mxu0 0.0
        %886 = vmatpush1.msra.mxu0 %v677
        %887 = vmatprep.subr.mxu0 0.0
        %888 = vmatpush1.msra.mxu0 %v674
        %889 = vmatprep.subr.mxu0 0.0
        %890 = vmatpush1.msra.mxu0 %v671
        %891 = vmatprep.subr.mxu0 0.0
        %892 = vmatpush1.msra.mxu0 %v668
        %893 = vmatprep.subr.mxu0 0.0
        %894 = vmatpush1.msra.mxu0 %v665
        %895 = vmatprep.subr.mxu0 0.0
        %896 = vmatpush1.msra.mxu0 %v662
        %897 = vmatprep.subr.mxu0 0.0
        %898 = vmatpush1.msra.mxu0 %v659
        %899 = vmatprep.subr.mxu0 0.0
        %900 = vmatpush1.msra.mxu0 %v656
        %901 = vmatprep.subr.mxu0 0.0
        %902 = vmatpush1.msra.mxu0 %v653
        %903 = vmatprep.subr.mxu0 0.0
        %904 = vmatpush1.msra.mxu0 %v650
        %905 = vmatprep.subr.mxu0 0.0
        %906 = vmatpush1.msra.mxu0 %v647
        %907 = vmatprep.subr.mxu0 0.0
        %908 = vmatpush1.msra.mxu0 %v644
        %909 = vmatprep.subr.mxu0 0.0
        %910 = vmatpush2.msra.mxu0 0.0
        %911 = vmatprep.subr.mxu0 0.0
        %912 = vmatpush2.msra.mxu0 0.0
        %913 = vmatprep.subr.mxu0 0.0
        %914 = vmatpush2.msra.mxu0 0.0
        %915 = vmatprep.subr.mxu0 0.0
        %916 = vmatpush2.msra.mxu0 0.0
        %917 = vmatprep.subr.mxu0 0.0
        %918 = vmatpush2.msra.mxu0 0.0
        %919 = vmatprep.subr.mxu0 0.0
        %920 = vmatpush2.msra.mxu0 0.0
        %921 = vmatprep.subr.mxu0 0.0
        %922 = vmatpush2.msra.mxu0 0.0
        %923 = vmatprep.subr.mxu0 0.0
        %924 = vmatpush2.msra.mxu0 0.0
        %925 = vmatprep.subr.mxu0 0.0
        %926 = vmatpush2.msra.mxu0 0.0
        %927 = vmatprep.subr.mxu0 0.0
        %928 = vmatpush2.msra.mxu0 0.0
        %929 = vmatprep.subr.mxu0 0.0
        %930 = vmatpush2.msra.mxu0 0.0
        %931 = vmatprep.subr.mxu0 0.0
        %932 = vmatpush2.msra.mxu0 0.0
        %933 = vmatprep.subr.mxu0 0.0
        %934 = vmatpush2.msra.mxu0 0.0
        %935 = vmatprep.subr.mxu0 0.0
        %936 = vmatpush2.msra.mxu0 0.0
        %937 = vmatprep.subr.mxu0 0.0
        %938 = vmatpush2.msra.mxu0 0.0
        %939 = vmatprep.subr.mxu0 0.0
        %940 = vmatpush2.msra.mxu0 0.0
        %941 = vmatprep.mubr.f32.mxu0 0.0
        %942 = vmatmul.mubr.f32.gmra.mxu0 %v740
        %v943 = vpop.f32.mrf.mxu0
        %v944 = vadd.f32 %v760, %v943
        %v945 = vpop.f32.mrf.mxu0
        %946 = vmatprep.mubr.f32.mxu0 0.0
        %947 = vmatmul.mubr.f32.gmra.mxu0 %v741
        %v948 = vpop.f32.mrf.mxu0
        %v949 = vadd.f32 %v760, %v948
        %v950 = vpop.f32.mrf.mxu0
        %951 = vmatprep.mubr.f32.mxu0 0.0
        %952 = vmatmul.mubr.f32.gmra.mxu0 %v742
        %v953 = vpop.f32.mrf.mxu0
        %v954 = vadd.f32 %v760, %v953
        %v955 = vpop.f32.mrf.mxu0
        %956 = vmatprep.mubr.f32.mxu0 0.0
        %957 = vmatmul.mubr.f32.gmra.mxu0 %v743
        %v958 = vpop.f32.mrf.mxu0
        %v959 = vadd.f32 %v760, %v958
        %v960 = vpop.f32.mrf.mxu0
        %961 = vmatprep.mubr.f32.mxu0 0.0
        %962 = vmatmul.mubr.f32.gmra.mxu0 %v744
        %v963 = vpop.f32.mrf.mxu0
        %v964 = vadd.f32 %v760, %v963
        %v965 = vpop.f32.mrf.mxu0
        %966 = vmatprep.mubr.f32.mxu0 0.0
        %967 = vmatmul.mubr.f32.gmra.mxu0 %v745
        %v968 = vpop.f32.mrf.mxu0
        %v969 = vadd.f32 %v760, %v968
        %v970 = vpop.f32.mrf.mxu0
        %971 = vmatprep.mubr.f32.mxu0 0.0
        %972 = vmatmul.mubr.f32.gmra.mxu0 %v746
        %v973 = vpop.f32.mrf.mxu0
        %v974 = vadd.f32 %v760, %v973
        %v975 = vpop.f32.mrf.mxu0
        %976 = vmatprep.mubr.f32.mxu0 0.0
        %977 = vmatmul.mubr.f32.gmra.mxu0 %v747
        %v978 = vpop.f32.mrf.mxu0
        %v979 = vadd.f32 %v760, %v978
        %v980 = vpop.f32.mrf.mxu0
        %981 = vdwg.mxu0
        %982 = vst [vmem:[#allocation3] sm:$0xff] %v831
        %983 = vst [vmem:[#allocation3 + $0x8] sm:$0xff] %v833
        %984 = vst [vmem:[#allocation3 + $0x10] sm:$0xff] %v944
        %985 = vst [vmem:[#allocation3 + $0x18] sm:$0xff] %v837
        %986 = vst [vmem:[#allocation3 + $0x20] sm:$0xff] %v839
        %987 = vst [vmem:[#allocation3 + $0x28] sm:$0xff] %v949
        %988 = vst [vmem:[#allocation3 + $0x30] sm:$0xff] %v843
        %989 = vst [vmem:[#allocation3 + $0x38] sm:$0xff] %v845
        %990 = vst [vmem:[#allocation3 + $0x40] sm:$0xff] %v954
        %991 = vst [vmem:[#allocation3 + $0x48] sm:$0xff] %v849
        %992 = vst [vmem:[#allocation3 + $0x50] sm:$0xff] %v851
        %993 = vst [vmem:[#allocation3 + $0x58] sm:$0xff] %v959
        %994 = vst [vmem:[#allocation3 + $0x60] sm:$0xff] %v855
        %995 = vst [vmem:[#allocation3 + $0x68] sm:$0xff] %v857
        %996 = vst [vmem:[#allocation3 + $0x70] sm:$0xff] %v964
        %997 = vst [vmem:[#allocation3 + $0x78] sm:$0xff] %v861
        %998 = vst [vmem:[#allocation3 + $0x80] sm:$0xff] %v863
        %999 = vst [vmem:[#allocation3 + $0x88] sm:$0xff] %v969
        %1000 = vst [vmem:[#allocation3 + $0x90] sm:$0xff] %v867
        %1001 = vst [vmem:[#allocation3 + $0x98] sm:$0xff] %v869
        %1002 = vst [vmem:[#allocation3 + $0xa0] sm:$0xff] %v974
        %1003 = vst [vmem:[#allocation3 + $0xa8] sm:$0xff] %v873
        %1004 = vst [vmem:[#allocation3 + $0xb0] sm:$0xff] %v875
        %1005 = vst [vmem:[#allocation3 + $0xb8] sm:$0xff] %v979
        %s1006 = smul.u32 0, 3
        %s1007 = smul.addr %s1006, 8
        %s1008 = scalar_lea.vmem [#allocation3], %s1007
        %v1009 = vld [vmem:[%s1008] sm:$0xff]
        %v1010 = vld [vmem:[%s1008 + $0x8] sm:$0xff]
        %v1011 = vld [vmem:[%s1008 + $0x10] sm:$0xff]
        %v1013 = vlaneseq
        %v1014 = vshrl.u32 %v1013, 7
        %v1015 = vsub.s32 0, %v1014
        %v1016 = vrot.slane %v739, %v1015
        %v1017 = vlaneseq
        %v1018 = vshrl.u32 %v1017, 7
        %v1019 = vsub.s32 1, %v1018
        %v1020 = vrot.slane %v739, %v1019
        %v1021 = vlaneseq
        %v1022 = vshrl.u32 %v1021, 7
        %v1023 = vsub.s32 2, %v1022
        %v1024 = vrot.slane %v739, %v1023
        %1028 = vmatprep.subr.mxu0 %v737
        %1029 = vmatpush1.msra.mxu0 %v736
        %1030 = vmatprep.subr.mxu0 %v734
        %1031 = vmatpush1.msra.mxu0 %v733
        %1032 = vmatprep.subr.mxu0 %v731
        %1033 = vmatpush1.msra.mxu0 %v730
        %1034 = vmatprep.subr.mxu0 %v728
        %1035 = vmatpush1.msra.mxu0 %v727
        %1036 = vmatprep.subr.mxu0 %v725
        %1037 = vmatpush1.msra.mxu0 %v724
        %1038 = vmatprep.subr.mxu0 %v722
        %1039 = vmatpush1.msra.mxu0 %v721
        %1040 = vmatprep.subr.mxu0 %v719
        %1041 = vmatpush1.msra.mxu0 %v718
        %1042 = vmatprep.subr.mxu0 %v716
        %1043 = vmatpush1.msra.mxu0 %v715
        %1044 = vmatprep.subr.mxu0 %v713
        %1045 = vmatpush1.msra.mxu0 %v712
        %1046 = vmatprep.subr.mxu0 %v710
        %1047 = vmatpush1.msra.mxu0 %v709
        %1048 = vmatprep.subr.mxu0 %v707
        %1049 = vmatpush1.msra.mxu0 %v706
        %1050 = vmatprep.subr.mxu0 %v704
        %1051 = vmatpush1.msra.mxu0 %v703
        %1052 = vmatprep.subr.mxu0 %v701
        %1053 = vmatpush1.msra.mxu0 %v700
        %1054 = vmatprep.subr.mxu0 %v698
        %1055 = vmatpush1.msra.mxu0 %v697
        %1056 = vmatprep.subr.mxu0 %v695
        %1057 = vmatpush1.msra.mxu0 %v694
        %1058 = vmatprep.subr.mxu0 %v692
        %1059 = vmatpush1.msra.mxu0 %v691
        %1060 = vmatprep.subr.mxu0 0.0
        %1061 = vmatpush2.msra.mxu0 0.0
        %1062 = vmatprep.subr.mxu0 0.0
        %1063 = vmatpush2.msra.mxu0 0.0
        %1064 = vmatprep.subr.mxu0 0.0
        %1065 = vmatpush2.msra.mxu0 0.0
        %1066 = vmatprep.subr.mxu0 0.0
        %1067 = vmatpush2.msra.mxu0 0.0
        %1068 = vmatprep.subr.mxu0 0.0
        %1069 = vmatpush2.msra.mxu0 0.0
        %1070 = vmatprep.subr.mxu0 0.0
        %1071 = vmatpush2.msra.mxu0 0.0
        %1072 = vmatprep.subr.mxu0 0.0
        %1073 = vmatpush2.msra.mxu0 0.0
        %1074 = vmatprep.subr.mxu0 0.0
        %1075 = vmatpush2.msra.mxu0 0.0
        %1076 = vmatprep.subr.mxu0 0.0
        %1077 = vmatpush2.msra.mxu0 0.0
        %1078 = vmatprep.subr.mxu0 0.0
        %1079 = vmatpush2.msra.mxu0 0.0
        %1080 = vmatprep.subr.mxu0 0.0
        %1081 = vmatpush2.msra.mxu0 0.0
        %1082 = vmatprep.subr.mxu0 0.0
        %1083 = vmatpush2.msra.mxu0 0.0
        %1084 = vmatprep.subr.mxu0 0.0
        %1085 = vmatpush2.msra.mxu0 0.0
        %1086 = vmatprep.subr.mxu0 0.0
        %1087 = vmatpush2.msra.mxu0 0.0
        %1088 = vmatprep.subr.mxu0 0.0
        %1089 = vmatpush2.msra.mxu0 0.0
        %1090 = vmatprep.subr.mxu0 0.0
        %1091 = vmatpush2.msra.mxu0 0.0
        %1092 = vmatprep.mubr.f32.mxu0 0.0
        %1093 = vmatmul.mubr.f32.gmra.mxu0 0.0
        %v1094 = vpop.f32.mrf.mxu0
        %v1095 = vadd.f32 %v1016, %v1094
        %v1096 = vpop.f32.mrf.mxu0
        %v1097 = vadd.f32 %v1020, %v1096
        %1098 = vdwg.mxu0
        %1099 = vmatprep.subr.mxu0 0.0
        %1100 = vmatpush1.msra.mxu0 %v738
        %1101 = vmatprep.subr.mxu0 0.0
        %1102 = vmatpush1.msra.mxu0 %v735
        %1103 = vmatprep.subr.mxu0 0.0
        %1104 = vmatpush1.msra.mxu0 %v732
        %1105 = vmatprep.subr.mxu0 0.0
        %1106 = vmatpush1.msra.mxu0 %v729
        %1107 = vmatprep.subr.mxu0 0.0
        %1108 = vmatpush1.msra.mxu0 %v726
        %1109 = vmatprep.subr.mxu0 0.0
        %1110 = vmatpush1.msra.mxu0 %v723
        %1111 = vmatprep.subr.mxu0 0.0
        %1112 = vmatpush1.msra.mxu0 %v720
        %1113 = vmatprep.subr.mxu0 0.0
        %1114 = vmatpush1.msra.mxu0 %v717
        %1115 = vmatprep.subr.mxu0 0.0
        %1116 = vmatpush1.msra.mxu0 %v714
        %1117 = vmatprep.subr.mxu0 0.0
        %1118 = vmatpush1.msra.mxu0 %v711
        %1119 = vmatprep.subr.mxu0 0.0
        %1120 = vmatpush1.msra.mxu0 %v708
        %1121 = vmatprep.subr.mxu0 0.0
        %1122 = vmatpush1.msra.mxu0 %v705
        %1123 = vmatprep.subr.mxu0 0.0
        %1124 = vmatpush1.msra.mxu0 %v702
        %1125 = vmatprep.subr.mxu0 0.0
        %1126 = vmatpush1.msra.mxu0 %v699
        %1127 = vmatprep.subr.mxu0 0.0
        %1128 = vmatpush1.msra.mxu0 %v696
        %1129 = vmatprep.subr.mxu0 0.0
        %1130 = vmatpush1.msra.mxu0 %v693
        %1131 = vmatprep.subr.mxu0 0.0
        %1132 = vmatpush2.msra.mxu0 0.0
        %1133 = vmatprep.subr.mxu0 0.0
        %1134 = vmatpush2.msra.mxu0 0.0
        %1135 = vmatprep.subr.mxu0 0.0
        %1136 = vmatpush2.msra.mxu0 0.0
        %1137 = vmatprep.subr.mxu0 0.0
        %1138 = vmatpush2.msra.mxu0 0.0
        %1139 = vmatprep.subr.mxu0 0.0
        %1140 = vmatpush2.msra.mxu0 0.0
        %1141 = vmatprep.subr.mxu0 0.0
        %1142 = vmatpush2.msra.mxu0 0.0
        %1143 = vmatprep.subr.mxu0 0.0
        %1144 = vmatpush2.msra.mxu0 0.0
        %1145 = vmatprep.subr.mxu0 0.0
        %1146 = vmatpush2.msra.mxu0 0.0
        %1147 = vmatprep.subr.mxu0 0.0
        %1148 = vmatpush2.msra.mxu0 0.0
        %1149 = vmatprep.subr.mxu0 0.0
        %1150 = vmatpush2.msra.mxu0 0.0
        %1151 = vmatprep.subr.mxu0 0.0
        %1152 = vmatpush2.msra.mxu0 0.0
        %1153 = vmatprep.subr.mxu0 0.0
        %1154 = vmatpush2.msra.mxu0 0.0
        %1155 = vmatprep.subr.mxu0 0.0
        %1156 = vmatpush2.msra.mxu0 0.0
        %1157 = vmatprep.subr.mxu0 0.0
        %1158 = vmatpush2.msra.mxu0 0.0
        %1159 = vmatprep.subr.mxu0 0.0
        %1160 = vmatpush2.msra.mxu0 0.0
        %1161 = vmatprep.subr.mxu0 0.0
        %1162 = vmatpush2.msra.mxu0 0.0
        %1163 = vmatprep.mubr.f32.mxu0 0.0
        %1164 = vmatmul.mubr.f32.gmra.mxu0 0.0
        %v1165 = vpop.f32.mrf.mxu0
        %v1166 = vadd.f32 %v1024, %v1165
        %v1167 = vpop.f32.mrf.mxu0
        %1168 = vdwg.mxu0
        %v1169 = vadd.f32 %v1009, %v1095
        %v1170 = vxor.u32 %v1169, 2147483648
        %v1171 = vmul.f32 %v1170, 1.442695
        %v1172 = vpow.pop %v1171
        %v1173 = vadd.f32 %v1172, 1.0
        %v1174 = vrcp.pop %v1173
        %v1175 = vmul.f32 1.0, %v1174
        %v1176 = vadd.f32 %v1010, %v1097
        %v1177 = vxor.u32 %v1176, 2147483648
        %v1178 = vmul.f32 %v1177, 1.442695
        %v1179 = vpow.pop %v1178
        %v1180 = vadd.f32 %v1179, 1.0
        %v1181 = vrcp.pop %v1180
        %v1182 = vmul.f32 1.0, %v1181
        %v1183 = vmul.f32 %v1175, %v1166
        %v1184 = vadd.f32 %v1011, %v1183
        %v1185 = vtanh.pop %v1184
        %v1186 = vsub.f32 1.0, %v1182
        %v1187 = vmul.f32 %v1186, %v1185
        %v1188 = vmul.f32 %v1182, 0.0
        %v1189 = vadd.f32 %v1187, %v1188
        %s1190 = sadd.s32 0, 0
        %s1191 = scalar_lea.vmem [#allocation2], %s1190
        %1192 = vst [vmem:[%s1191] sm:$0xff] %v1189
        %s1193 = smul.u32 1, 3
        %s1194 = smul.addr %s1193, 8
        %s1195 = scalar_lea.vmem [#allocation3], %s1194
        %v1196 = vld [vmem:[%s1195] sm:$0xff]
        %v1197 = vld [vmem:[%s1195 + $0x8] sm:$0xff]
        %v1198 = vld [vmem:[%s1195 + $0x10] sm:$0xff]
        %1199 = vmatprep.subr.mxu0 %v737
        %1200 = vmatpush1.msra.mxu0 %v736
        %1201 = vmatprep.subr.mxu0 %v734
        %1202 = vmatpush1.msra.mxu0 %v733
        %1203 = vmatprep.subr.mxu0 %v731
        %1204 = vmatpush1.msra.mxu0 %v730
        %1205 = vmatprep.subr.mxu0 %v728
        %1206 = vmatpush1.msra.mxu0 %v727
        %1207 = vmatprep.subr.mxu0 %v725
        %1208 = vmatpush1.msra.mxu0 %v724
        %1209 = vmatprep.subr.mxu0 %v722
        %1210 = vmatpush1.msra.mxu0 %v721
        %1211 = vmatprep.subr.mxu0 %v719
        %1212 = vmatpush1.msra.mxu0 %v718
        %1213 = vmatprep.subr.mxu0 %v716
        %1214 = vmatpush1.msra.mxu0 %v715
        %1215 = vmatprep.subr.mxu0 %v713
        %1216 = vmatpush1.msra.mxu0 %v712
        %1217 = vmatprep.subr.mxu0 %v710
        %1218 = vmatpush1.msra.mxu0 %v709
        %1219 = vmatprep.subr.mxu0 %v707
        %1220 = vmatpush1.msra.mxu0 %v706
        %1221 = vmatprep.subr.mxu0 %v704
        %1222 = vmatpush1.msra.mxu0 %v703
        %1223 = vmatprep.subr.mxu0 %v701
        %1224 = vmatpush1.msra.mxu0 %v700
        %1225 = vmatprep.subr.mxu0 %v698
        %1226 = vmatpush1.msra.mxu0 %v697
        %1227 = vmatprep.subr.mxu0 %v695
        %1228 = vmatpush1.msra.mxu0 %v694
        %1229 = vmatprep.subr.mxu0 %v692
        %1230 = vmatpush1.msra.mxu0 %v691
        %1231 = vmatprep.subr.mxu0 0.0
        %1232 = vmatpush2.msra.mxu0 0.0
        %1233 = vmatprep.subr.mxu0 0.0
        %1234 = vmatpush2.msra.mxu0 0.0
        %1235 = vmatprep.subr.mxu0 0.0
        %1236 = vmatpush2.msra.mxu0 0.0
        %1237 = vmatprep.subr.mxu0 0.0
        %1238 = vmatpush2.msra.mxu0 0.0
        %1239 = vmatprep.subr.mxu0 0.0
        %1240 = vmatpush2.msra.mxu0 0.0
        %1241 = vmatprep.subr.mxu0 0.0
        %1242 = vmatpush2.msra.mxu0 0.0
        %1243 = vmatprep.subr.mxu0 0.0
        %1244 = vmatpush2.msra.mxu0 0.0
        %1245 = vmatprep.subr.mxu0 0.0
        %1246 = vmatpush2.msra.mxu0 0.0
        %1247 = vmatprep.subr.mxu0 0.0
        %1248 = vmatpush2.msra.mxu0 0.0
        %1249 = vmatprep.subr.mxu0 0.0
        %1250 = vmatpush2.msra.mxu0 0.0
        %1251 = vmatprep.subr.mxu0 0.0
        %1252 = vmatpush2.msra.mxu0 0.0
        %1253 = vmatprep.subr.mxu0 0.0
        %1254 = vmatpush2.msra.mxu0 0.0
        %1255 = vmatprep.subr.mxu0 0.0
        %1256 = vmatpush2.msra.mxu0 0.0
        %1257 = vmatprep.subr.mxu0 0.0
        %1258 = vmatpush2.msra.mxu0 0.0
        %1259 = vmatprep.subr.mxu0 0.0
        %1260 = vmatpush2.msra.mxu0 0.0
        %1261 = vmatprep.subr.mxu0 0.0
        %1262 = vmatpush2.msra.mxu0 0.0
        %1263 = vmatprep.mubr.f32.mxu0 0.0
        %1264 = vmatmul.mubr.f32.gmra.mxu0 %v1189
        %v1265 = vpop.f32.mrf.mxu0
        %v1266 = vadd.f32 %v1016, %v1265
        %v1267 = vpop.f32.mrf.mxu0
        %v1268 = vadd.f32 %v1020, %v1267
        %1269 = vdwg.mxu0
        %1270 = vmatprep.subr.mxu0 0.0
        %1271 = vmatpush1.msra.mxu0 %v738
        %1272 = vmatprep.subr.mxu0 0.0
        %1273 = vmatpush1.msra.mxu0 %v735
        %1274 = vmatprep.subr.mxu0 0.0
        %1275 = vmatpush1.msra.mxu0 %v732
        %1276 = vmatprep.subr.mxu0 0.0
        %1277 = vmatpush1.msra.mxu0 %v729
        %1278 = vmatprep.subr.mxu0 0.0
        %1279 = vmatpush1.msra.mxu0 %v726
        %1280 = vmatprep.subr.mxu0 0.0
        %1281 = vmatpush1.msra.mxu0 %v723
        %1282 = vmatprep.subr.mxu0 0.0
        %1283 = vmatpush1.msra.mxu0 %v720
        %1284 = vmatprep.subr.mxu0 0.0
        %1285 = vmatpush1.msra.mxu0 %v717
        %1286 = vmatprep.subr.mxu0 0.0
        %1287 = vmatpush1.msra.mxu0 %v714
        %1288 = vmatprep.subr.mxu0 0.0
        %1289 = vmatpush1.msra.mxu0 %v711
        %1290 = vmatprep.subr.mxu0 0.0
        %1291 = vmatpush1.msra.mxu0 %v708
        %1292 = vmatprep.subr.mxu0 0.0
        %1293 = vmatpush1.msra.mxu0 %v705
        %1294 = vmatprep.subr.mxu0 0.0
        %1295 = vmatpush1.msra.mxu0 %v702
        %1296 = vmatprep.subr.mxu0 0.0
        %1297 = vmatpush1.msra.mxu0 %v699
        %1298 = vmatprep.subr.mxu0 0.0
        %1299 = vmatpush1.msra.mxu0 %v696
        %1300 = vmatprep.subr.mxu0 0.0
        %1301 = vmatpush1.msra.mxu0 %v693
        %1302 = vmatprep.subr.mxu0 0.0
        %1303 = vmatpush2.msra.mxu0 0.0
        %1304 = vmatprep.subr.mxu0 0.0
        %1305 = vmatpush2.msra.mxu0 0.0
        %1306 = vmatprep.subr.mxu0 0.0
        %1307 = vmatpush2.msra.mxu0 0.0
        %1308 = vmatprep.subr.mxu0 0.0
        %1309 = vmatpush2.msra.mxu0 0.0
        %1310 = vmatprep.subr.mxu0 0.0
        %1311 = vmatpush2.msra.mxu0 0.0
        %1312 = vmatprep.subr.mxu0 0.0
        %1313 = vmatpush2.msra.mxu0 0.0
        %1314 = vmatprep.subr.mxu0 0.0
        %1315 = vmatpush2.msra.mxu0 0.0
        %1316 = vmatprep.subr.mxu0 0.0
        %1317 = vmatpush2.msra.mxu0 0.0
        %1318 = vmatprep.subr.mxu0 0.0
        %1319 = vmatpush2.msra.mxu0 0.0
        %1320 = vmatprep.subr.mxu0 0.0
        %1321 = vmatpush2.msra.mxu0 0.0
        %1322 = vmatprep.subr.mxu0 0.0
        %1323 = vmatpush2.msra.mxu0 0.0
        %1324 = vmatprep.subr.mxu0 0.0
        %1325 = vmatpush2.msra.mxu0 0.0
        %1326 = vmatprep.subr.mxu0 0.0
        %1327 = vmatpush2.msra.mxu0 0.0
        %1328 = vmatprep.subr.mxu0 0.0
        %1329 = vmatpush2.msra.mxu0 0.0
        %1330 = vmatprep.subr.mxu0 0.0
        %1331 = vmatpush2.msra.mxu0 0.0
        %1332 = vmatprep.subr.mxu0 0.0
        %1333 = vmatpush2.msra.mxu0 0.0
        %1334 = vmatprep.mubr.f32.mxu0 0.0
        %1335 = vmatmul.mubr.f32.gmra.mxu0 %v1189
        %v1336 = vpop.f32.mrf.mxu0
        %v1337 = vadd.f32 %v1024, %v1336
        %v1338 = vpop.f32.mrf.mxu0
        %1339 = vdwg.mxu0
        %v1340 = vadd.f32 %v1196, %v1266
        %v1341 = vxor.u32 %v1340, 2147483648
        %v1342 = vmul.f32 %v1341, 1.442695
        %v1343 = vpow.pop %v1342
        %v1344 = vadd.f32 %v1343, 1.0
        %v1345 = vrcp.pop %v1344
        %v1346 = vmul.f32 1.0, %v1345
        %v1347 = vadd.f32 %v1197, %v1268
        %v1348 = vxor.u32 %v1347, 2147483648
        %v1349 = vmul.f32 %v1348, 1.442695
        %v1350 = vpow.pop %v1349
        %v1351 = vadd.f32 %v1350, 1.0
        %v1352 = vrcp.pop %v1351
        %v1353 = vmul.f32 1.0, %v1352
        %v1354 = vmul.f32 %v1346, %v1337
        %v1355 = vadd.f32 %v1198, %v1354
        %v1356 = vtanh.pop %v1355
        %v1357 = vsub.f32 1.0, %v1353
        %v1358 = vmul.f32 %v1357, %v1356
        %v1359 = vmul.f32 %v1353, %v1189
        %v1360 = vadd.f32 %v1358, %v1359
        %s1361 = sadd.s32 0, 8
        %s1362 = scalar_lea.vmem [#allocation2], %s1361
        %1363 = vst [vmem:[%s1362] sm:$0xff] %v1360
        %s1364 = smul.u32 2, 3
        %s1365 = smul.addr %s1364, 8
        %s1366 = scalar_lea.vmem [#allocation3], %s1365
        %v1367 = vld [vmem:[%s1366] sm:$0xff]
        %v1368 = vld [vmem:[%s1366 + $0x8] sm:$0xff]
        %v1369 = vld [vmem:[%s1366 + $0x10] sm:$0xff]
        %1370 = vmatprep.subr.mxu0 %v737
        %1371 = vmatpush1.msra.mxu0 %v736
        %1372 = vmatprep.subr.mxu0 %v734
        %1373 = vmatpush1.msra.mxu0 %v733
        %1374 = vmatprep.subr.mxu0 %v731
        %1375 = vmatpush1.msra.mxu0 %v730
        %1376 = vmatprep.subr.mxu0 %v728
        %1377 = vmatpush1.msra.mxu0 %v727
        %1378 = vmatprep.subr.mxu0 %v725
        %1379 = vmatpush1.msra.mxu0 %v724
        %1380 = vmatprep.subr.mxu0 %v722
        %1381 = vmatpush1.msra.mxu0 %v721
        %1382 = vmatprep.subr.mxu0 %v719
        %1383 = vmatpush1.msra.mxu0 %v718
        %1384 = vmatprep.subr.mxu0 %v716
        %1385 = vmatpush1.msra.mxu0 %v715
        %1386 = vmatprep.subr.mxu0 %v713
        %1387 = vmatpush1.msra.mxu0 %v712
        %1388 = vmatprep.subr.mxu0 %v710
        %1389 = vmatpush1.msra.mxu0 %v709
        %1390 = vmatprep.subr.mxu0 %v707
        %1391 = vmatpush1.msra.mxu0 %v706
        %1392 = vmatprep.subr.mxu0 %v704
        %1393 = vmatpush1.msra.mxu0 %v703
        %1394 = vmatprep.subr.mxu0 %v701
        %1395 = vmatpush1.msra.mxu0 %v700
        %1396 = vmatprep.subr.mxu0 %v698
        %1397 = vmatpush1.msra.mxu0 %v697
        %1398 = vmatprep.subr.mxu0 %v695
        %1399 = vmatpush1.msra.mxu0 %v694
        %1400 = vmatprep.subr.mxu0 %v692
        %1401 = vmatpush1.msra.mxu0 %v691
        %1402 = vmatprep.subr.mxu0 0.0
        %1403 = vmatpush2.msra.mxu0 0.0
        %1404 = vmatprep.subr.mxu0 0.0
        %1405 = vmatpush2.msra.mxu0 0.0
        %1406 = vmatprep.subr.mxu0 0.0
        %1407 = vmatpush2.msra.mxu0 0.0
        %1408 = vmatprep.subr.mxu0 0.0
        %1409 = vmatpush2.msra.mxu0 0.0
        %1410 = vmatprep.subr.mxu0 0.0
        %1411 = vmatpush2.msra.mxu0 0.0
        %1412 = vmatprep.subr.mxu0 0.0
        %1413 = vmatpush2.msra.mxu0 0.0
        %1414 = vmatprep.subr.mxu0 0.0
        %1415 = vmatpush2.msra.mxu0 0.0
        %1416 = vmatprep.subr.mxu0 0.0
        %1417 = vmatpush2.msra.mxu0 0.0
        %1418 = vmatprep.subr.mxu0 0.0
        %1419 = vmatpush2.msra.mxu0 0.0
        %1420 = vmatprep.subr.mxu0 0.0
        %1421 = vmatpush2.msra.mxu0 0.0
        %1422 = vmatprep.subr.mxu0 0.0
        %1423 = vmatpush2.msra.mxu0 0.0
        %1424 = vmatprep.subr.mxu0 0.0
        %1425 = vmatpush2.msra.mxu0 0.0
        %1426 = vmatprep.subr.mxu0 0.0
        %1427 = vmatpush2.msra.mxu0 0.0
        %1428 = vmatprep.subr.mxu0 0.0
        %1429 = vmatpush2.msra.mxu0 0.0
        %1430 = vmatprep.subr.mxu0 0.0
        %1431 = vmatpush2.msra.mxu0 0.0
        %1432 = vmatprep.subr.mxu0 0.0
        %1433 = vmatpush2.msra.mxu0 0.0
        %1434 = vmatprep.mubr.f32.mxu0 0.0
        %1435 = vmatmul.mubr.f32.gmra.mxu0 %v1360
        %v1436 = vpop.f32.mrf.mxu0
        %v1437 = vadd.f32 %v1016, %v1436
        %v1438 = vpop.f32.mrf.mxu0
        %v1439 = vadd.f32 %v1020, %v1438
        %1440 = vdwg.mxu0
        %1441 = vmatprep.subr.mxu0 0.0
        %1442 = vmatpush1.msra.mxu0 %v738
        %1443 = vmatprep.subr.mxu0 0.0
        %1444 = vmatpush1.msra.mxu0 %v735
        %1445 = vmatprep.subr.mxu0 0.0
        %1446 = vmatpush1.msra.mxu0 %v732
        %1447 = vmatprep.subr.mxu0 0.0
        %1448 = vmatpush1.msra.mxu0 %v729
        %1449 = vmatprep.subr.mxu0 0.0
        %1450 = vmatpush1.msra.mxu0 %v726
        %1451 = vmatprep.subr.mxu0 0.0
        %1452 = vmatpush1.msra.mxu0 %v723
        %1453 = vmatprep.subr.mxu0 0.0
        %1454 = vmatpush1.msra.mxu0 %v720
        %1455 = vmatprep.subr.mxu0 0.0
        %1456 = vmatpush1.msra.mxu0 %v717
        %1457 = vmatprep.subr.mxu0 0.0
        %1458 = vmatpush1.msra.mxu0 %v714
        %1459 = vmatprep.subr.mxu0 0.0
        %1460 = vmatpush1.msra.mxu0 %v711
        %1461 = vmatprep.subr.mxu0 0.0
        %1462 = vmatpush1.msra.mxu0 %v708
        %1463 = vmatprep.subr.mxu0 0.0
        %1464 = vmatpush1.msra.mxu0 %v705
        %1465 = vmatprep.subr.mxu0 0.0
        %1466 = vmatpush1.msra.mxu0 %v702
        %1467 = vmatprep.subr.mxu0 0.0
        %1468 = vmatpush1.msra.mxu0 %v699
        %1469 = vmatprep.subr.mxu0 0.0
        %1470 = vmatpush1.msra.mxu0 %v696
        %1471 = vmatprep.subr.mxu0 0.0
        %1472 = vmatpush1.msra.mxu0 %v693
        %1473 = vmatprep.subr.mxu0 0.0
        %1474 = vmatpush2.msra.mxu0 0.0
        %1475 = vmatprep.subr.mxu0 0.0
        %1476 = vmatpush2.msra.mxu0 0.0
        %1477 = vmatprep.subr.mxu0 0.0
        %1478 = vmatpush2.msra.mxu0 0.0
        %1479 = vmatprep.subr.mxu0 0.0
        %1480 = vmatpush2.msra.mxu0 0.0
        %1481 = vmatprep.subr.mxu0 0.0
        %1482 = vmatpush2.msra.mxu0 0.0
        %1483 = vmatprep.subr.mxu0 0.0
        %1484 = vmatpush2.msra.mxu0 0.0
        %1485 = vmatprep.subr.mxu0 0.0
        %1486 = vmatpush2.msra.mxu0 0.0
        %1487 = vmatprep.subr.mxu0 0.0
        %1488 = vmatpush2.msra.mxu0 0.0
        %1489 = vmatprep.subr.mxu0 0.0
        %1490 = vmatpush2.msra.mxu0 0.0
        %1491 = vmatprep.subr.mxu0 0.0
        %1492 = vmatpush2.msra.mxu0 0.0
        %1493 = vmatprep.subr.mxu0 0.0
        %1494 = vmatpush2.msra.mxu0 0.0
        %1495 = vmatprep.subr.mxu0 0.0
        %1496 = vmatpush2.msra.mxu0 0.0
        %1497 = vmatprep.subr.mxu0 0.0
        %1498 = vmatpush2.msra.mxu0 0.0
        %1499 = vmatprep.subr.mxu0 0.0
        %1500 = vmatpush2.msra.mxu0 0.0
        %1501 = vmatprep.subr.mxu0 0.0
        %1502 = vmatpush2.msra.mxu0 0.0
        %1503 = vmatprep.subr.mxu0 0.0
        %1504 = vmatpush2.msra.mxu0 0.0
        %1505 = vmatprep.mubr.f32.mxu0 0.0
        %1506 = vmatmul.mubr.f32.gmra.mxu0 %v1360
        %v1507 = vpop.f32.mrf.mxu0
        %v1508 = vadd.f32 %v1024, %v1507
        %v1509 = vpop.f32.mrf.mxu0
        %1510 = vdwg.mxu0
        %v1511 = vadd.f32 %v1367, %v1437
        %v1512 = vxor.u32 %v1511, 2147483648
        %v1513 = vmul.f32 %v1512, 1.442695
        %v1514 = vpow.pop %v1513
        %v1515 = vadd.f32 %v1514, 1.0
        %v1516 = vrcp.pop %v1515
        %v1517 = vmul.f32 1.0, %v1516
        %v1518 = vadd.f32 %v1368, %v1439
        %v1519 = vxor.u32 %v1518, 2147483648
        %v1520 = vmul.f32 %v1519, 1.442695
        %v1521 = vpow.pop %v1520
        %v1522 = vadd.f32 %v1521, 1.0
        %v1523 = vrcp.pop %v1522
        %v1524 = vmul.f32 1.0, %v1523
        %v1525 = vmul.f32 %v1517, %v1508
        %v1526 = vadd.f32 %v1369, %v1525
        %v1527 = vtanh.pop %v1526
        %v1528 = vsub.f32 1.0, %v1524
        %v1529 = vmul.f32 %v1528, %v1527
        %v1530 = vmul.f32 %v1524, %v1360
        %v1531 = vadd.f32 %v1529, %v1530
        %s1532 = sadd.s32 0, 16
        %s1533 = scalar_lea.vmem [#allocation2], %s1532
        %1534 = vst [vmem:[%s1533] sm:$0xff] %v1531
        %s1535 = smul.u32 3, 3
        %s1536 = smul.addr %s1535, 8
        %s1537 = scalar_lea.vmem [#allocation3], %s1536
        %v1538 = vld [vmem:[%s1537] sm:$0xff]
        %v1539 = vld [vmem:[%s1537 + $0x8] sm:$0xff]
        %v1540 = vld [vmem:[%s1537 + $0x10] sm:$0xff]
        %1541 = vmatprep.subr.mxu0 %v737
        %1542 = vmatpush1.msra.mxu0 %v736
        %1543 = vmatprep.subr.mxu0 %v734
        %1544 = vmatpush1.msra.mxu0 %v733
        %1545 = vmatprep.subr.mxu0 %v731
        %1546 = vmatpush1.msra.mxu0 %v730
        %1547 = vmatprep.subr.mxu0 %v728
        %1548 = vmatpush1.msra.mxu0 %v727
        %1549 = vmatprep.subr.mxu0 %v725
        %1550 = vmatpush1.msra.mxu0 %v724
        %1551 = vmatprep.subr.mxu0 %v722
        %1552 = vmatpush1.msra.mxu0 %v721
        %1553 = vmatprep.subr.mxu0 %v719
        %1554 = vmatpush1.msra.mxu0 %v718
        %1555 = vmatprep.subr.mxu0 %v716
        %1556 = vmatpush1.msra.mxu0 %v715
        %1557 = vmatprep.subr.mxu0 %v713
        %1558 = vmatpush1.msra.mxu0 %v712
        %1559 = vmatprep.subr.mxu0 %v710
        %1560 = vmatpush1.msra.mxu0 %v709
        %1561 = vmatprep.subr.mxu0 %v707
        %1562 = vmatpush1.msra.mxu0 %v706
        %1563 = vmatprep.subr.mxu0 %v704
        %1564 = vmatpush1.msra.mxu0 %v703
        %1565 = vmatprep.subr.mxu0 %v701
        %1566 = vmatpush1.msra.mxu0 %v700
        %1567 = vmatprep.subr.mxu0 %v698
        %1568 = vmatpush1.msra.mxu0 %v697
        %1569 = vmatprep.subr.mxu0 %v695
        %1570 = vmatpush1.msra.mxu0 %v694
        %1571 = vmatprep.subr.mxu0 %v692
        %1572 = vmatpush1.msra.mxu0 %v691
        %1573 = vmatprep.subr.mxu0 0.0
        %1574 = vmatpush2.msra.mxu0 0.0
        %1575 = vmatprep.subr.mxu0 0.0
        %1576 = vmatpush2.msra.mxu0 0.0
        %1577 = vmatprep.subr.mxu0 0.0
        %1578 = vmatpush2.msra.mxu0 0.0
        %1579 = vmatprep.subr.mxu0 0.0
        %1580 = vmatpush2.msra.mxu0 0.0
        %1581 = vmatprep.subr.mxu0 0.0
        %1582 = vmatpush2.msra.mxu0 0.0
        %1583 = vmatprep.subr.mxu0 0.0
        %1584 = vmatpush2.msra.mxu0 0.0
        %1585 = vmatprep.subr.mxu0 0.0
        %1586 = vmatpush2.msra.mxu0 0.0
        %1587 = vmatprep.subr.mxu0 0.0
        %1588 = vmatpush2.msra.mxu0 0.0
        %1589 = vmatprep.subr.mxu0 0.0
        %1590 = vmatpush2.msra.mxu0 0.0
        %1591 = vmatprep.subr.mxu0 0.0
        %1592 = vmatpush2.msra.mxu0 0.0
        %1593 = vmatprep.subr.mxu0 0.0
        %1594 = vmatpush2.msra.mxu0 0.0
        %1595 = vmatprep.subr.mxu0 0.0
        %1596 = vmatpush2.msra.mxu0 0.0
        %1597 = vmatprep.subr.mxu0 0.0
        %1598 = vmatpush2.msra.mxu0 0.0
        %1599 = vmatprep.subr.mxu0 0.0
        %1600 = vmatpush2.msra.mxu0 0.0
        %1601 = vmatprep.subr.mxu0 0.0
        %1602 = vmatpush2.msra.mxu0 0.0
        %1603 = vmatprep.subr.mxu0 0.0
        %1604 = vmatpush2.msra.mxu0 0.0
        %1605 = vmatprep.mubr.f32.mxu0 0.0
        %1606 = vmatmul.mubr.f32.gmra.mxu0 %v1531
        %v1607 = vpop.f32.mrf.mxu0
        %v1608 = vadd.f32 %v1016, %v1607
        %v1609 = vpop.f32.mrf.mxu0
        %v1610 = vadd.f32 %v1020, %v1609
        %1611 = vdwg.mxu0
        %1612 = vmatprep.subr.mxu0 0.0
        %1613 = vmatpush1.msra.mxu0 %v738
        %1614 = vmatprep.subr.mxu0 0.0
        %1615 = vmatpush1.msra.mxu0 %v735
        %1616 = vmatprep.subr.mxu0 0.0
        %1617 = vmatpush1.msra.mxu0 %v732
        %1618 = vmatprep.subr.mxu0 0.0
        %1619 = vmatpush1.msra.mxu0 %v729
        %1620 = vmatprep.subr.mxu0 0.0
        %1621 = vmatpush1.msra.mxu0 %v726
        %1622 = vmatprep.subr.mxu0 0.0
        %1623 = vmatpush1.msra.mxu0 %v723
        %1624 = vmatprep.subr.mxu0 0.0
        %1625 = vmatpush1.msra.mxu0 %v720
        %1626 = vmatprep.subr.mxu0 0.0
        %1627 = vmatpush1.msra.mxu0 %v717
        %1628 = vmatprep.subr.mxu0 0.0
        %1629 = vmatpush1.msra.mxu0 %v714
        %1630 = vmatprep.subr.mxu0 0.0
        %1631 = vmatpush1.msra.mxu0 %v711
        %1632 = vmatprep.subr.mxu0 0.0
        %1633 = vmatpush1.msra.mxu0 %v708
        %1634 = vmatprep.subr.mxu0 0.0
        %1635 = vmatpush1.msra.mxu0 %v705
        %1636 = vmatprep.subr.mxu0 0.0
        %1637 = vmatpush1.msra.mxu0 %v702
        %1638 = vmatprep.subr.mxu0 0.0
        %1639 = vmatpush1.msra.mxu0 %v699
        %1640 = vmatprep.subr.mxu0 0.0
        %1641 = vmatpush1.msra.mxu0 %v696
        %1642 = vmatprep.subr.mxu0 0.0
        %1643 = vmatpush1.msra.mxu0 %v693
        %1644 = vmatprep.subr.mxu0 0.0
        %1645 = vmatpush2.msra.mxu0 0.0
        %1646 = vmatprep.subr.mxu0 0.0
        %1647 = vmatpush2.msra.mxu0 0.0
        %1648 = vmatprep.subr.mxu0 0.0
        %1649 = vmatpush2.msra.mxu0 0.0
        %1650 = vmatprep.subr.mxu0 0.0
        %1651 = vmatpush2.msra.mxu0 0.0
        %1652 = vmatprep.subr.mxu0 0.0
        %1653 = vmatpush2.msra.mxu0 0.0
        %1654 = vmatprep.subr.mxu0 0.0
        %1655 = vmatpush2.msra.mxu0 0.0
        %1656 = vmatprep.subr.mxu0 0.0
        %1657 = vmatpush2.msra.mxu0 0.0
        %1658 = vmatprep.subr.mxu0 0.0
        %1659 = vmatpush2.msra.mxu0 0.0
        %1660 = vmatprep.subr.mxu0 0.0
        %1661 = vmatpush2.msra.mxu0 0.0
        %1662 = vmatprep.subr.mxu0 0.0
        %1663 = vmatpush2.msra.mxu0 0.0
        %1664 = vmatprep.subr.mxu0 0.0
        %1665 = vmatpush2.msra.mxu0 0.0
        %1666 = vmatprep.subr.mxu0 0.0
        %1667 = vmatpush2.msra.mxu0 0.0
        %1668 = vmatprep.subr.mxu0 0.0
        %1669 = vmatpush2.msra.mxu0 0.0
        %1670 = vmatprep.subr.mxu0 0.0
        %1671 = vmatpush2.msra.mxu0 0.0
        %1672 = vmatprep.subr.mxu0 0.0
        %1673 = vmatpush2.msra.mxu0 0.0
        %1674 = vmatprep.subr.mxu0 0.0
        %1675 = vmatpush2.msra.mxu0 0.0
        %1676 = vmatprep.mubr.f32.mxu0 0.0
        %1677 = vmatmul.mubr.f32.gmra.mxu0 %v1531
        %v1678 = vpop.f32.mrf.mxu0
        %v1679 = vadd.f32 %v1024, %v1678
        %v1680 = vpop.f32.mrf.mxu0
        %1681 = vdwg.mxu0
        %v1682 = vadd.f32 %v1538, %v1608
        %v1683 = vxor.u32 %v1682, 2147483648
        %v1684 = vmul.f32 %v1683, 1.442695
        %v1685 = vpow.pop %v1684
        %v1686 = vadd.f32 %v1685, 1.0
        %v1687 = vrcp.pop %v1686
        %v1688 = vmul.f32 1.0, %v1687
        %v1689 = vadd.f32 %v1539, %v1610
        %v1690 = vxor.u32 %v1689, 2147483648
        %v1691 = vmul.f32 %v1690, 1.442695
        %v1692 = vpow.pop %v1691
        %v1693 = vadd.f32 %v1692, 1.0
        %v1694 = vrcp.pop %v1693
        %v1695 = vmul.f32 1.0, %v1694
        %v1696 = vmul.f32 %v1688, %v1679
        %v1697 = vadd.f32 %v1540, %v1696
        %v1698 = vtanh.pop %v1697
        %v1699 = vsub.f32 1.0, %v1695
        %v1700 = vmul.f32 %v1699, %v1698
        %v1701 = vmul.f32 %v1695, %v1531
        %v1702 = vadd.f32 %v1700, %v1701
        %s1703 = sadd.s32 0, 24
        %s1704 = scalar_lea.vmem [#allocation2], %s1703
        %1705 = vst [vmem:[%s1704] sm:$0xff] %v1702
        %s1706 = smul.u32 4, 3
        %s1707 = smul.addr %s1706, 8
        %s1708 = scalar_lea.vmem [#allocation3], %s1707
        %v1709 = vld [vmem:[%s1708] sm:$0xff]
        %v1710 = vld [vmem:[%s1708 + $0x8] sm:$0xff]
        %v1711 = vld [vmem:[%s1708 + $0x10] sm:$0xff]
        %1712 = vmatprep.subr.mxu0 %v737
        %1713 = vmatpush1.msra.mxu0 %v736
        %1714 = vmatprep.subr.mxu0 %v734
        %1715 = vmatpush1.msra.mxu0 %v733
        %1716 = vmatprep.subr.mxu0 %v731
        %1717 = vmatpush1.msra.mxu0 %v730
        %1718 = vmatprep.subr.mxu0 %v728
        %1719 = vmatpush1.msra.mxu0 %v727
        %1720 = vmatprep.subr.mxu0 %v725
        %1721 = vmatpush1.msra.mxu0 %v724
        %1722 = vmatprep.subr.mxu0 %v722
        %1723 = vmatpush1.msra.mxu0 %v721
        %1724 = vmatprep.subr.mxu0 %v719
        %1725 = vmatpush1.msra.mxu0 %v718
        %1726 = vmatprep.subr.mxu0 %v716
        %1727 = vmatpush1.msra.mxu0 %v715
        %1728 = vmatprep.subr.mxu0 %v713
        %1729 = vmatpush1.msra.mxu0 %v712
        %1730 = vmatprep.subr.mxu0 %v710
        %1731 = vmatpush1.msra.mxu0 %v709
        %1732 = vmatprep.subr.mxu0 %v707
        %1733 = vmatpush1.msra.mxu0 %v706
        %1734 = vmatprep.subr.mxu0 %v704
        %1735 = vmatpush1.msra.mxu0 %v703
        %1736 = vmatprep.subr.mxu0 %v701
        %1737 = vmatpush1.msra.mxu0 %v700
        %1738 = vmatprep.subr.mxu0 %v698
        %1739 = vmatpush1.msra.mxu0 %v697
        %1740 = vmatprep.subr.mxu0 %v695
        %1741 = vmatpush1.msra.mxu0 %v694
        %1742 = vmatprep.subr.mxu0 %v692
        %1743 = vmatpush1.msra.mxu0 %v691
        %1744 = vmatprep.subr.mxu0 0.0
        %1745 = vmatpush2.msra.mxu0 0.0
        %1746 = vmatprep.subr.mxu0 0.0
        %1747 = vmatpush2.msra.mxu0 0.0
        %1748 = vmatprep.subr.mxu0 0.0
        %1749 = vmatpush2.msra.mxu0 0.0
        %1750 = vmatprep.subr.mxu0 0.0
        %1751 = vmatpush2.msra.mxu0 0.0
        %1752 = vmatprep.subr.mxu0 0.0
        %1753 = vmatpush2.msra.mxu0 0.0
        %1754 = vmatprep.subr.mxu0 0.0
        %1755 = vmatpush2.msra.mxu0 0.0
        %1756 = vmatprep.subr.mxu0 0.0
        %1757 = vmatpush2.msra.mxu0 0.0
        %1758 = vmatprep.subr.mxu0 0.0
        %1759 = vmatpush2.msra.mxu0 0.0
        %1760 = vmatprep.subr.mxu0 0.0
        %1761 = vmatpush2.msra.mxu0 0.0
        %1762 = vmatprep.subr.mxu0 0.0
        %1763 = vmatpush2.msra.mxu0 0.0
        %1764 = vmatprep.subr.mxu0 0.0
        %1765 = vmatpush2.msra.mxu0 0.0
        %1766 = vmatprep.subr.mxu0 0.0
        %1767 = vmatpush2.msra.mxu0 0.0
        %1768 = vmatprep.subr.mxu0 0.0
        %1769 = vmatpush2.msra.mxu0 0.0
        %1770 = vmatprep.subr.mxu0 0.0
        %1771 = vmatpush2.msra.mxu0 0.0
        %1772 = vmatprep.subr.mxu0 0.0
        %1773 = vmatpush2.msra.mxu0 0.0
        %1774 = vmatprep.subr.mxu0 0.0
        %1775 = vmatpush2.msra.mxu0 0.0
        %1776 = vmatprep.mubr.f32.mxu0 0.0
        %1777 = vmatmul.mubr.f32.gmra.mxu0 %v1702
        %v1778 = vpop.f32.mrf.mxu0
        %v1779 = vadd.f32 %v1016, %v1778
        %v1780 = vpop.f32.mrf.mxu0
        %v1781 = vadd.f32 %v1020, %v1780
        %1782 = vdwg.mxu0
        %1783 = vmatprep.subr.mxu0 0.0
        %1784 = vmatpush1.msra.mxu0 %v738
        %1785 = vmatprep.subr.mxu0 0.0
        %1786 = vmatpush1.msra.mxu0 %v735
        %1787 = vmatprep.subr.mxu0 0.0
        %1788 = vmatpush1.msra.mxu0 %v732
        %1789 = vmatprep.subr.mxu0 0.0
        %1790 = vmatpush1.msra.mxu0 %v729
        %1791 = vmatprep.subr.mxu0 0.0
        %1792 = vmatpush1.msra.mxu0 %v726
        %1793 = vmatprep.subr.mxu0 0.0
        %1794 = vmatpush1.msra.mxu0 %v723
        %1795 = vmatprep.subr.mxu0 0.0
        %1796 = vmatpush1.msra.mxu0 %v720
        %1797 = vmatprep.subr.mxu0 0.0
        %1798 = vmatpush1.msra.mxu0 %v717
        %1799 = vmatprep.subr.mxu0 0.0
        %1800 = vmatpush1.msra.mxu0 %v714
        %1801 = vmatprep.subr.mxu0 0.0
        %1802 = vmatpush1.msra.mxu0 %v711
        %1803 = vmatprep.subr.mxu0 0.0
        %1804 = vmatpush1.msra.mxu0 %v708
        %1805 = vmatprep.subr.mxu0 0.0
        %1806 = vmatpush1.msra.mxu0 %v705
        %1807 = vmatprep.subr.mxu0 0.0
        %1808 = vmatpush1.msra.mxu0 %v702
        %1809 = vmatprep.subr.mxu0 0.0
        %1810 = vmatpush1.msra.mxu0 %v699
        %1811 = vmatprep.subr.mxu0 0.0
        %1812 = vmatpush1.msra.mxu0 %v696
        %1813 = vmatprep.subr.mxu0 0.0
        %1814 = vmatpush1.msra.mxu0 %v693
        %1815 = vmatprep.subr.mxu0 0.0
        %1816 = vmatpush2.msra.mxu0 0.0
        %1817 = vmatprep.subr.mxu0 0.0
        %1818 = vmatpush2.msra.mxu0 0.0
        %1819 = vmatprep.subr.mxu0 0.0
        %1820 = vmatpush2.msra.mxu0 0.0
        %1821 = vmatprep.subr.mxu0 0.0
        %1822 = vmatpush2.msra.mxu0 0.0
        %1823 = vmatprep.subr.mxu0 0.0
        %1824 = vmatpush2.msra.mxu0 0.0
        %1825 = vmatprep.subr.mxu0 0.0
        %1826 = vmatpush2.msra.mxu0 0.0
        %1827 = vmatprep.subr.mxu0 0.0
        %1828 = vmatpush2.msra.mxu0 0.0
        %1829 = vmatprep.subr.mxu0 0.0
        %1830 = vmatpush2.msra.mxu0 0.0
        %1831 = vmatprep.subr.mxu0 0.0
        %1832 = vmatpush2.msra.mxu0 0.0
        %1833 = vmatprep.subr.mxu0 0.0
        %1834 = vmatpush2.msra.mxu0 0.0
        %1835 = vmatprep.subr.mxu0 0.0
        %1836 = vmatpush2.msra.mxu0 0.0
        %1837 = vmatprep.subr.mxu0 0.0
        %1838 = vmatpush2.msra.mxu0 0.0
        %1839 = vmatprep.subr.mxu0 0.0
        %1840 = vmatpush2.msra.mxu0 0.0
        %1841 = vmatprep.subr.mxu0 0.0
        %1842 = vmatpush2.msra.mxu0 0.0
        %1843 = vmatprep.subr.mxu0 0.0
        %1844 = vmatpush2.msra.mxu0 0.0
        %1845 = vmatprep.subr.mxu0 0.0
        %1846 = vmatpush2.msra.mxu0 0.0
        %1847 = vmatprep.mubr.f32.mxu0 0.0
        %1848 = vmatmul.mubr.f32.gmra.mxu0 %v1702
        %v1849 = vpop.f32.mrf.mxu0
        %v1850 = vadd.f32 %v1024, %v1849
        %v1851 = vpop.f32.mrf.mxu0
        %1852 = vdwg.mxu0
        %v1853 = vadd.f32 %v1709, %v1779
        %v1854 = vxor.u32 %v1853, 2147483648
        %v1855 = vmul.f32 %v1854, 1.442695
        %v1856 = vpow.pop %v1855
        %v1857 = vadd.f32 %v1856, 1.0
        %v1858 = vrcp.pop %v1857
        %v1859 = vmul.f32 1.0, %v1858
        %v1860 = vadd.f32 %v1710, %v1781
        %v1861 = vxor.u32 %v1860, 2147483648
        %v1862 = vmul.f32 %v1861, 1.442695
        %v1863 = vpow.pop %v1862
        %v1864 = vadd.f32 %v1863, 1.0
        %v1865 = vrcp.pop %v1864
        %v1866 = vmul.f32 1.0, %v1865
        %v1867 = vmul.f32 %v1859, %v1850
        %v1868 = vadd.f32 %v1711, %v1867
        %v1869 = vtanh.pop %v1868
        %v1870 = vsub.f32 1.0, %v1866
        %v1871 = vmul.f32 %v1870, %v1869
        %v1872 = vmul.f32 %v1866, %v1702
        %v1873 = vadd.f32 %v1871, %v1872
        %s1874 = sadd.s32 0, 32
        %s1875 = scalar_lea.vmem [#allocation2], %s1874
        %1876 = vst [vmem:[%s1875] sm:$0xff] %v1873
        %s1877 = smul.u32 5, 3
        %s1878 = smul.addr %s1877, 8
        %s1879 = scalar_lea.vmem [#allocation3], %s1878
        %v1880 = vld [vmem:[%s1879] sm:$0xff]
        %v1881 = vld [vmem:[%s1879 + $0x8] sm:$0xff]
        %v1882 = vld [vmem:[%s1879 + $0x10] sm:$0xff]
        %1883 = vmatprep.subr.mxu0 %v737
        %1884 = vmatpush1.msra.mxu0 %v736
        %1885 = vmatprep.subr.mxu0 %v734
        %1886 = vmatpush1.msra.mxu0 %v733
        %1887 = vmatprep.subr.mxu0 %v731
        %1888 = vmatpush1.msra.mxu0 %v730
        %1889 = vmatprep.subr.mxu0 %v728
        %1890 = vmatpush1.msra.mxu0 %v727
        %1891 = vmatprep.subr.mxu0 %v725
        %1892 = vmatpush1.msra.mxu0 %v724
        %1893 = vmatprep.subr.mxu0 %v722
        %1894 = vmatpush1.msra.mxu0 %v721
        %1895 = vmatprep.subr.mxu0 %v719
        %1896 = vmatpush1.msra.mxu0 %v718
        %1897 = vmatprep.subr.mxu0 %v716
        %1898 = vmatpush1.msra.mxu0 %v715
        %1899 = vmatprep.subr.mxu0 %v713
        %1900 = vmatpush1.msra.mxu0 %v712
        %1901 = vmatprep.subr.mxu0 %v710
        %1902 = vmatpush1.msra.mxu0 %v709
        %1903 = vmatprep.subr.mxu0 %v707
        %1904 = vmatpush1.msra.mxu0 %v706
        %1905 = vmatprep.subr.mxu0 %v704
        %1906 = vmatpush1.msra.mxu0 %v703
        %1907 = vmatprep.subr.mxu0 %v701
        %1908 = vmatpush1.msra.mxu0 %v700
        %1909 = vmatprep.subr.mxu0 %v698
        %1910 = vmatpush1.msra.mxu0 %v697
        %1911 = vmatprep.subr.mxu0 %v695
        %1912 = vmatpush1.msra.mxu0 %v694
        %1913 = vmatprep.subr.mxu0 %v692
        %1914 = vmatpush1.msra.mxu0 %v691
        %1915 = vmatprep.subr.mxu0 0.0
        %1916 = vmatpush2.msra.mxu0 0.0
        %1917 = vmatprep.subr.mxu0 0.0
        %1918 = vmatpush2.msra.mxu0 0.0
        %1919 = vmatprep.subr.mxu0 0.0
        %1920 = vmatpush2.msra.mxu0 0.0
        %1921 = vmatprep.subr.mxu0 0.0
        %1922 = vmatpush2.msra.mxu0 0.0
        %1923 = vmatprep.subr.mxu0 0.0
        %1924 = vmatpush2.msra.mxu0 0.0
        %1925 = vmatprep.subr.mxu0 0.0
        %1926 = vmatpush2.msra.mxu0 0.0
        %1927 = vmatprep.subr.mxu0 0.0
        %1928 = vmatpush2.msra.mxu0 0.0
        %1929 = vmatprep.subr.mxu0 0.0
        %1930 = vmatpush2.msra.mxu0 0.0
        %1931 = vmatprep.subr.mxu0 0.0
        %1932 = vmatpush2.msra.mxu0 0.0
        %1933 = vmatprep.subr.mxu0 0.0
        %1934 = vmatpush2.msra.mxu0 0.0
        %1935 = vmatprep.subr.mxu0 0.0
        %1936 = vmatpush2.msra.mxu0 0.0
        %1937 = vmatprep.subr.mxu0 0.0
        %1938 = vmatpush2.msra.mxu0 0.0
        %1939 = vmatprep.subr.mxu0 0.0
        %1940 = vmatpush2.msra.mxu0 0.0
        %1941 = vmatprep.subr.mxu0 0.0
        %1942 = vmatpush2.msra.mxu0 0.0
        %1943 = vmatprep.subr.mxu0 0.0
        %1944 = vmatpush2.msra.mxu0 0.0
        %1945 = vmatprep.subr.mxu0 0.0
        %1946 = vmatpush2.msra.mxu0 0.0
        %1947 = vmatprep.mubr.f32.mxu0 0.0
        %1948 = vmatmul.mubr.f32.gmra.mxu0 %v1873
        %v1949 = vpop.f32.mrf.mxu0
        %v1950 = vadd.f32 %v1016, %v1949
        %v1951 = vpop.f32.mrf.mxu0
        %v1952 = vadd.f32 %v1020, %v1951
        %1953 = vdwg.mxu0
        %1954 = vmatprep.subr.mxu0 0.0
        %1955 = vmatpush1.msra.mxu0 %v738
        %1956 = vmatprep.subr.mxu0 0.0
        %1957 = vmatpush1.msra.mxu0 %v735
        %1958 = vmatprep.subr.mxu0 0.0
        %1959 = vmatpush1.msra.mxu0 %v732
        %1960 = vmatprep.subr.mxu0 0.0
        %1961 = vmatpush1.msra.mxu0 %v729
        %1962 = vmatprep.subr.mxu0 0.0
        %1963 = vmatpush1.msra.mxu0 %v726
        %1964 = vmatprep.subr.mxu0 0.0
        %1965 = vmatpush1.msra.mxu0 %v723
        %1966 = vmatprep.subr.mxu0 0.0
        %1967 = vmatpush1.msra.mxu0 %v720
        %1968 = vmatprep.subr.mxu0 0.0
        %1969 = vmatpush1.msra.mxu0 %v717
        %1970 = vmatprep.subr.mxu0 0.0
        %1971 = vmatpush1.msra.mxu0 %v714
        %1972 = vmatprep.subr.mxu0 0.0
        %1973 = vmatpush1.msra.mxu0 %v711
        %1974 = vmatprep.subr.mxu0 0.0
        %1975 = vmatpush1.msra.mxu0 %v708
        %1976 = vmatprep.subr.mxu0 0.0
        %1977 = vmatpush1.msra.mxu0 %v705
        %1978 = vmatprep.subr.mxu0 0.0
        %1979 = vmatpush1.msra.mxu0 %v702
        %1980 = vmatprep.subr.mxu0 0.0
        %1981 = vmatpush1.msra.mxu0 %v699
        %1982 = vmatprep.subr.mxu0 0.0
        %1983 = vmatpush1.msra.mxu0 %v696
        %1984 = vmatprep.subr.mxu0 0.0
        %1985 = vmatpush1.msra.mxu0 %v693
        %1986 = vmatprep.subr.mxu0 0.0
        %1987 = vmatpush2.msra.mxu0 0.0
        %1988 = vmatprep.subr.mxu0 0.0
        %1989 = vmatpush2.msra.mxu0 0.0
        %1990 = vmatprep.subr.mxu0 0.0
        %1991 = vmatpush2.msra.mxu0 0.0
        %1992 = vmatprep.subr.mxu0 0.0
        %1993 = vmatpush2.msra.mxu0 0.0
        %1994 = vmatprep.subr.mxu0 0.0
        %1995 = vmatpush2.msra.mxu0 0.0
        %1996 = vmatprep.subr.mxu0 0.0
        %1997 = vmatpush2.msra.mxu0 0.0
        %1998 = vmatprep.subr.mxu0 0.0
        %1999 = vmatpush2.msra.mxu0 0.0
        %2000 = vmatprep.subr.mxu0 0.0
        %2001 = vmatpush2.msra.mxu0 0.0
        %2002 = vmatprep.subr.mxu0 0.0
        %2003 = vmatpush2.msra.mxu0 0.0
        %2004 = vmatprep.subr.mxu0 0.0
        %2005 = vmatpush2.msra.mxu0 0.0
        %2006 = vmatprep.subr.mxu0 0.0
        %2007 = vmatpush2.msra.mxu0 0.0
        %2008 = vmatprep.subr.mxu0 0.0
        %2009 = vmatpush2.msra.mxu0 0.0
        %2010 = vmatprep.subr.mxu0 0.0
        %2011 = vmatpush2.msra.mxu0 0.0
        %2012 = vmatprep.subr.mxu0 0.0
        %2013 = vmatpush2.msra.mxu0 0.0
        %2014 = vmatprep.subr.mxu0 0.0
        %2015 = vmatpush2.msra.mxu0 0.0
        %2016 = vmatprep.subr.mxu0 0.0
        %2017 = vmatpush2.msra.mxu0 0.0
        %2018 = vmatprep.mubr.f32.mxu0 0.0
        %2019 = vmatmul.mubr.f32.gmra.mxu0 %v1873
        %v2020 = vpop.f32.mrf.mxu0
        %v2021 = vadd.f32 %v1024, %v2020
        %v2022 = vpop.f32.mrf.mxu0
        %2023 = vdwg.mxu0
        %v2024 = vadd.f32 %v1880, %v1950
        %v2025 = vxor.u32 %v2024, 2147483648
        %v2026 = vmul.f32 %v2025, 1.442695
        %v2027 = vpow.pop %v2026
        %v2028 = vadd.f32 %v2027, 1.0
        %v2029 = vrcp.pop %v2028
        %v2030 = vmul.f32 1.0, %v2029
        %v2031 = vadd.f32 %v1881, %v1952
        %v2032 = vxor.u32 %v2031, 2147483648
        %v2033 = vmul.f32 %v2032, 1.442695
        %v2034 = vpow.pop %v2033
        %v2035 = vadd.f32 %v2034, 1.0
        %v2036 = vrcp.pop %v2035
        %v2037 = vmul.f32 1.0, %v2036
        %v2038 = vmul.f32 %v2030, %v2021
        %v2039 = vadd.f32 %v1882, %v2038
        %v2040 = vtanh.pop %v2039
        %v2041 = vsub.f32 1.0, %v2037
        %v2042 = vmul.f32 %v2041, %v2040
        %v2043 = vmul.f32 %v2037, %v1873
        %v2044 = vadd.f32 %v2042, %v2043
        %s2045 = sadd.s32 0, 40
        %s2046 = scalar_lea.vmem [#allocation2], %s2045
        %2047 = vst [vmem:[%s2046] sm:$0xff] %v2044
        %s2048 = smul.u32 6, 3
        %s2049 = smul.addr %s2048, 8
        %s2050 = scalar_lea.vmem [#allocation3], %s2049
        %v2051 = vld [vmem:[%s2050] sm:$0xff]
        %v2052 = vld [vmem:[%s2050 + $0x8] sm:$0xff]
        %v2053 = vld [vmem:[%s2050 + $0x10] sm:$0xff]
        %2054 = vmatprep.subr.mxu0 %v737
        %2055 = vmatpush1.msra.mxu0 %v736
        %2056 = vmatprep.subr.mxu0 %v734
        %2057 = vmatpush1.msra.mxu0 %v733
        %2058 = vmatprep.subr.mxu0 %v731
        %2059 = vmatpush1.msra.mxu0 %v730
        %2060 = vmatprep.subr.mxu0 %v728
        %2061 = vmatpush1.msra.mxu0 %v727
        %2062 = vmatprep.subr.mxu0 %v725
        %2063 = vmatpush1.msra.mxu0 %v724
        %2064 = vmatprep.subr.mxu0 %v722
        %2065 = vmatpush1.msra.mxu0 %v721
        %2066 = vmatprep.subr.mxu0 %v719
        %2067 = vmatpush1.msra.mxu0 %v718
        %2068 = vmatprep.subr.mxu0 %v716
        %2069 = vmatpush1.msra.mxu0 %v715
        %2070 = vmatprep.subr.mxu0 %v713
        %2071 = vmatpush1.msra.mxu0 %v712
        %2072 = vmatprep.subr.mxu0 %v710
        %2073 = vmatpush1.msra.mxu0 %v709
        %2074 = vmatprep.subr.mxu0 %v707
        %2075 = vmatpush1.msra.mxu0 %v706
        %2076 = vmatprep.subr.mxu0 %v704
        %2077 = vmatpush1.msra.mxu0 %v703
        %2078 = vmatprep.subr.mxu0 %v701
        %2079 = vmatpush1.msra.mxu0 %v700
        %2080 = vmatprep.subr.mxu0 %v698
        %2081 = vmatpush1.msra.mxu0 %v697
        %2082 = vmatprep.subr.mxu0 %v695
        %2083 = vmatpush1.msra.mxu0 %v694
        %2084 = vmatprep.subr.mxu0 %v692
        %2085 = vmatpush1.msra.mxu0 %v691
        %2086 = vmatprep.subr.mxu0 0.0
        %2087 = vmatpush2.msra.mxu0 0.0
        %2088 = vmatprep.subr.mxu0 0.0
        %2089 = vmatpush2.msra.mxu0 0.0
        %2090 = vmatprep.subr.mxu0 0.0
        %2091 = vmatpush2.msra.mxu0 0.0
        %2092 = vmatprep.subr.mxu0 0.0
        %2093 = vmatpush2.msra.mxu0 0.0
        %2094 = vmatprep.subr.mxu0 0.0
        %2095 = vmatpush2.msra.mxu0 0.0
        %2096 = vmatprep.subr.mxu0 0.0
        %2097 = vmatpush2.msra.mxu0 0.0
        %2098 = vmatprep.subr.mxu0 0.0
        %2099 = vmatpush2.msra.mxu0 0.0
        %2100 = vmatprep.subr.mxu0 0.0
        %2101 = vmatpush2.msra.mxu0 0.0
        %2102 = vmatprep.subr.mxu0 0.0
        %2103 = vmatpush2.msra.mxu0 0.0
        %2104 = vmatprep.subr.mxu0 0.0
        %2105 = vmatpush2.msra.mxu0 0.0
        %2106 = vmatprep.subr.mxu0 0.0
        %2107 = vmatpush2.msra.mxu0 0.0
        %2108 = vmatprep.subr.mxu0 0.0
        %2109 = vmatpush2.msra.mxu0 0.0
        %2110 = vmatprep.subr.mxu0 0.0
        %2111 = vmatpush2.msra.mxu0 0.0
        %2112 = vmatprep.subr.mxu0 0.0
        %2113 = vmatpush2.msra.mxu0 0.0
        %2114 = vmatprep.subr.mxu0 0.0
        %2115 = vmatpush2.msra.mxu0 0.0
        %2116 = vmatprep.subr.mxu0 0.0
        %2117 = vmatpush2.msra.mxu0 0.0
        %2118 = vmatprep.mubr.f32.mxu0 0.0
        %2119 = vmatmul.mubr.f32.gmra.mxu0 %v2044
        %v2120 = vpop.f32.mrf.mxu0
        %v2121 = vadd.f32 %v1016, %v2120
        %v2122 = vpop.f32.mrf.mxu0
        %v2123 = vadd.f32 %v1020, %v2122
        %2124 = vdwg.mxu0
        %2125 = vmatprep.subr.mxu0 0.0
        %2126 = vmatpush1.msra.mxu0 %v738
        %2127 = vmatprep.subr.mxu0 0.0
        %2128 = vmatpush1.msra.mxu0 %v735
        %2129 = vmatprep.subr.mxu0 0.0
        %2130 = vmatpush1.msra.mxu0 %v732
        %2131 = vmatprep.subr.mxu0 0.0
        %2132 = vmatpush1.msra.mxu0 %v729
        %2133 = vmatprep.subr.mxu0 0.0
        %2134 = vmatpush1.msra.mxu0 %v726
        %2135 = vmatprep.subr.mxu0 0.0
        %2136 = vmatpush1.msra.mxu0 %v723
        %2137 = vmatprep.subr.mxu0 0.0
        %2138 = vmatpush1.msra.mxu0 %v720
        %2139 = vmatprep.subr.mxu0 0.0
        %2140 = vmatpush1.msra.mxu0 %v717
        %2141 = vmatprep.subr.mxu0 0.0
        %2142 = vmatpush1.msra.mxu0 %v714
        %2143 = vmatprep.subr.mxu0 0.0
        %2144 = vmatpush1.msra.mxu0 %v711
        %2145 = vmatprep.subr.mxu0 0.0
        %2146 = vmatpush1.msra.mxu0 %v708
        %2147 = vmatprep.subr.mxu0 0.0
        %2148 = vmatpush1.msra.mxu0 %v705
        %2149 = vmatprep.subr.mxu0 0.0
        %2150 = vmatpush1.msra.mxu0 %v702
        %2151 = vmatprep.subr.mxu0 0.0
        %2152 = vmatpush1.msra.mxu0 %v699
        %2153 = vmatprep.subr.mxu0 0.0
        %2154 = vmatpush1.msra.mxu0 %v696
        %2155 = vmatprep.subr.mxu0 0.0
        %2156 = vmatpush1.msra.mxu0 %v693
        %2157 = vmatprep.subr.mxu0 0.0
        %2158 = vmatpush2.msra.mxu0 0.0
        %2159 = vmatprep.subr.mxu0 0.0
        %2160 = vmatpush2.msra.mxu0 0.0
        %2161 = vmatprep.subr.mxu0 0.0
        %2162 = vmatpush2.msra.mxu0 0.0
        %2163 = vmatprep.subr.mxu0 0.0
        %2164 = vmatpush2.msra.mxu0 0.0
        %2165 = vmatprep.subr.mxu0 0.0
        %2166 = vmatpush2.msra.mxu0 0.0
        %2167 = vmatprep.subr.mxu0 0.0
        %2168 = vmatpush2.msra.mxu0 0.0
        %2169 = vmatprep.subr.mxu0 0.0
        %2170 = vmatpush2.msra.mxu0 0.0
        %2171 = vmatprep.subr.mxu0 0.0
        %2172 = vmatpush2.msra.mxu0 0.0
        %2173 = vmatprep.subr.mxu0 0.0
        %2174 = vmatpush2.msra.mxu0 0.0
        %2175 = vmatprep.subr.mxu0 0.0
        %2176 = vmatpush2.msra.mxu0 0.0
        %2177 = vmatprep.subr.mxu0 0.0
        %2178 = vmatpush2.msra.mxu0 0.0
        %2179 = vmatprep.subr.mxu0 0.0
        %2180 = vmatpush2.msra.mxu0 0.0
        %2181 = vmatprep.subr.mxu0 0.0
        %2182 = vmatpush2.msra.mxu0 0.0
        %2183 = vmatprep.subr.mxu0 0.0
        %2184 = vmatpush2.msra.mxu0 0.0
        %2185 = vmatprep.subr.mxu0 0.0
        %2186 = vmatpush2.msra.mxu0 0.0
        %2187 = vmatprep.subr.mxu0 0.0
        %2188 = vmatpush2.msra.mxu0 0.0
        %2189 = vmatprep.mubr.f32.mxu0 0.0
        %2190 = vmatmul.mubr.f32.gmra.mxu0 %v2044
        %v2191 = vpop.f32.mrf.mxu0
        %v2192 = vadd.f32 %v1024, %v2191
        %v2193 = vpop.f32.mrf.mxu0
        %2194 = vdwg.mxu0
        %v2195 = vadd.f32 %v2051, %v2121
        %v2196 = vxor.u32 %v2195, 2147483648
        %v2197 = vmul.f32 %v2196, 1.442695
        %v2198 = vpow.pop %v2197
        %v2199 = vadd.f32 %v2198, 1.0
        %v2200 = vrcp.pop %v2199
        %v2201 = vmul.f32 1.0, %v2200
        %v2202 = vadd.f32 %v2052, %v2123
        %v2203 = vxor.u32 %v2202, 2147483648
        %v2204 = vmul.f32 %v2203, 1.442695
        %v2205 = vpow.pop %v2204
        %v2206 = vadd.f32 %v2205, 1.0
        %v2207 = vrcp.pop %v2206
        %v2208 = vmul.f32 1.0, %v2207
        %v2209 = vmul.f32 %v2201, %v2192
        %v2210 = vadd.f32 %v2053, %v2209
        %v2211 = vtanh.pop %v2210
        %v2212 = vsub.f32 1.0, %v2208
        %v2213 = vmul.f32 %v2212, %v2211
        %v2214 = vmul.f32 %v2208, %v2044
        %v2215 = vadd.f32 %v2213, %v2214
        %s2216 = sadd.s32 0, 48
        %s2217 = scalar_lea.vmem [#allocation2], %s2216
        %2218 = vst [vmem:[%s2217] sm:$0xff] %v2215
        %s2219 = smul.u32 7, 3
        %s2220 = smul.addr %s2219, 8
        %s2221 = scalar_lea.vmem [#allocation3], %s2220
        %v2222 = vld [vmem:[%s2221] sm:$0xff]
        %v2223 = vld [vmem:[%s2221 + $0x8] sm:$0xff]
        %v2224 = vld [vmem:[%s2221 + $0x10] sm:$0xff]
        %2225 = vmatprep.subr.mxu0 %v737
        %2226 = vmatpush1.msra.mxu0 %v736
        %2227 = vmatprep.subr.mxu0 %v734
        %2228 = vmatpush1.msra.mxu0 %v733
        %2229 = vmatprep.subr.mxu0 %v731
        %2230 = vmatpush1.msra.mxu0 %v730
        %2231 = vmatprep.subr.mxu0 %v728
        %2232 = vmatpush1.msra.mxu0 %v727
        %2233 = vmatprep.subr.mxu0 %v725
        %2234 = vmatpush1.msra.mxu0 %v724
        %2235 = vmatprep.subr.mxu0 %v722
        %2236 = vmatpush1.msra.mxu0 %v721
        %2237 = vmatprep.subr.mxu0 %v719
        %2238 = vmatpush1.msra.mxu0 %v718
        %2239 = vmatprep.subr.mxu0 %v716
        %2240 = vmatpush1.msra.mxu0 %v715
        %2241 = vmatprep.subr.mxu0 %v713
        %2242 = vmatpush1.msra.mxu0 %v712
        %2243 = vmatprep.subr.mxu0 %v710
        %2244 = vmatpush1.msra.mxu0 %v709
        %2245 = vmatprep.subr.mxu0 %v707
        %2246 = vmatpush1.msra.mxu0 %v706
        %2247 = vmatprep.subr.mxu0 %v704
        %2248 = vmatpush1.msra.mxu0 %v703
        %2249 = vmatprep.subr.mxu0 %v701
        %2250 = vmatpush1.msra.mxu0 %v700
        %2251 = vmatprep.subr.mxu0 %v698
        %2252 = vmatpush1.msra.mxu0 %v697
        %2253 = vmatprep.subr.mxu0 %v695
        %2254 = vmatpush1.msra.mxu0 %v694
        %2255 = vmatprep.subr.mxu0 %v692
        %2256 = vmatpush1.msra.mxu0 %v691
        %2257 = vmatprep.subr.mxu0 0.0
        %2258 = vmatpush2.msra.mxu0 0.0
        %2259 = vmatprep.subr.mxu0 0.0
        %2260 = vmatpush2.msra.mxu0 0.0
        %2261 = vmatprep.subr.mxu0 0.0
        %2262 = vmatpush2.msra.mxu0 0.0
        %2263 = vmatprep.subr.mxu0 0.0
        %2264 = vmatpush2.msra.mxu0 0.0
        %2265 = vmatprep.subr.mxu0 0.0
        %2266 = vmatpush2.msra.mxu0 0.0
        %2267 = vmatprep.subr.mxu0 0.0
        %2268 = vmatpush2.msra.mxu0 0.0
        %2269 = vmatprep.subr.mxu0 0.0
        %2270 = vmatpush2.msra.mxu0 0.0
        %2271 = vmatprep.subr.mxu0 0.0
        %2272 = vmatpush2.msra.mxu0 0.0
        %2273 = vmatprep.subr.mxu0 0.0
        %2274 = vmatpush2.msra.mxu0 0.0
        %2275 = vmatprep.subr.mxu0 0.0
        %2276 = vmatpush2.msra.mxu0 0.0
        %2277 = vmatprep.subr.mxu0 0.0
        %2278 = vmatpush2.msra.mxu0 0.0
        %2279 = vmatprep.subr.mxu0 0.0
        %2280 = vmatpush2.msra.mxu0 0.0
        %2281 = vmatprep.subr.mxu0 0.0
        %2282 = vmatpush2.msra.mxu0 0.0
        %2283 = vmatprep.subr.mxu0 0.0
        %2284 = vmatpush2.msra.mxu0 0.0
        %2285 = vmatprep.subr.mxu0 0.0
        %2286 = vmatpush2.msra.mxu0 0.0
        %2287 = vmatprep.subr.mxu0 0.0
        %2288 = vmatpush2.msra.mxu0 0.0
        %2289 = vmatprep.mubr.f32.mxu0 0.0
        %2290 = vmatmul.mubr.f32.gmra.mxu0 %v2215
        %v2291 = vpop.f32.mrf.mxu0
        %v2292 = vadd.f32 %v1016, %v2291
        %v2293 = vpop.f32.mrf.mxu0
        %v2294 = vadd.f32 %v1020, %v2293
        %2295 = vdwg.mxu0
        %2296 = vmatprep.subr.mxu0 0.0
        %2297 = vmatpush1.msra.mxu0 %v738
        %2298 = vmatprep.subr.mxu0 0.0
        %2299 = vmatpush1.msra.mxu0 %v735
        %2300 = vmatprep.subr.mxu0 0.0
        %2301 = vmatpush1.msra.mxu0 %v732
        %2302 = vmatprep.subr.mxu0 0.0
        %2303 = vmatpush1.msra.mxu0 %v729
        %2304 = vmatprep.subr.mxu0 0.0
        %2305 = vmatpush1.msra.mxu0 %v726
        %2306 = vmatprep.subr.mxu0 0.0
        %2307 = vmatpush1.msra.mxu0 %v723
        %2308 = vmatprep.subr.mxu0 0.0
        %2309 = vmatpush1.msra.mxu0 %v720
        %2310 = vmatprep.subr.mxu0 0.0
        %2311 = vmatpush1.msra.mxu0 %v717
        %2312 = vmatprep.subr.mxu0 0.0
        %2313 = vmatpush1.msra.mxu0 %v714
        %2314 = vmatprep.subr.mxu0 0.0
        %2315 = vmatpush1.msra.mxu0 %v711
        %2316 = vmatprep.subr.mxu0 0.0
        %2317 = vmatpush1.msra.mxu0 %v708
        %2318 = vmatprep.subr.mxu0 0.0
        %2319 = vmatpush1.msra.mxu0 %v705
        %2320 = vmatprep.subr.mxu0 0.0
        %2321 = vmatpush1.msra.mxu0 %v702
        %2322 = vmatprep.subr.mxu0 0.0
        %2323 = vmatpush1.msra.mxu0 %v699
        %2324 = vmatprep.subr.mxu0 0.0
        %2325 = vmatpush1.msra.mxu0 %v696
        %2326 = vmatprep.subr.mxu0 0.0
        %2327 = vmatpush1.msra.mxu0 %v693
        %2328 = vmatprep.subr.mxu0 0.0
        %2329 = vmatpush2.msra.mxu0 0.0
        %2330 = vmatprep.subr.mxu0 0.0
        %2331 = vmatpush2.msra.mxu0 0.0
        %2332 = vmatprep.subr.mxu0 0.0
        %2333 = vmatpush2.msra.mxu0 0.0
        %2334 = vmatprep.subr.mxu0 0.0
        %2335 = vmatpush2.msra.mxu0 0.0
        %2336 = vmatprep.subr.mxu0 0.0
        %2337 = vmatpush2.msra.mxu0 0.0
        %2338 = vmatprep.subr.mxu0 0.0
        %2339 = vmatpush2.msra.mxu0 0.0
        %2340 = vmatprep.subr.mxu0 0.0
        %2341 = vmatpush2.msra.mxu0 0.0
        %2342 = vmatprep.subr.mxu0 0.0
        %2343 = vmatpush2.msra.mxu0 0.0
        %2344 = vmatprep.subr.mxu0 0.0
        %2345 = vmatpush2.msra.mxu0 0.0
        %2346 = vmatprep.subr.mxu0 0.0
        %2347 = vmatpush2.msra.mxu0 0.0
        %2348 = vmatprep.subr.mxu0 0.0
        %2349 = vmatpush2.msra.mxu0 0.0
        %2350 = vmatprep.subr.mxu0 0.0
        %2351 = vmatpush2.msra.mxu0 0.0
        %2352 = vmatprep.subr.mxu0 0.0
        %2353 = vmatpush2.msra.mxu0 0.0
        %2354 = vmatprep.subr.mxu0 0.0
        %2355 = vmatpush2.msra.mxu0 0.0
        %2356 = vmatprep.subr.mxu0 0.0
        %2357 = vmatpush2.msra.mxu0 0.0
        %2358 = vmatprep.subr.mxu0 0.0
        %2359 = vmatpush2.msra.mxu0 0.0
        %2360 = vmatprep.mubr.f32.mxu0 0.0
        %2361 = vmatmul.mubr.f32.gmra.mxu0 %v2215
        %v2362 = vpop.f32.mrf.mxu0
        %v2363 = vadd.f32 %v1024, %v2362
        %v2364 = vpop.f32.mrf.mxu0
        %2365 = vdwg.mxu0
        %v2366 = vadd.f32 %v2222, %v2292
        %v2367 = vxor.u32 %v2366, 2147483648
        %v2368 = vmul.f32 %v2367, 1.442695
        %v2369 = vpow.pop %v2368
        %v2370 = vadd.f32 %v2369, 1.0
        %v2371 = vrcp.pop %v2370
        %v2372 = vmul.f32 1.0, %v2371
        %v2373 = vadd.f32 %v2223, %v2294
        %v2374 = vxor.u32 %v2373, 2147483648
        %v2375 = vmul.f32 %v2374, 1.442695
        %v2376 = vpow.pop %v2375
        %v2377 = vadd.f32 %v2376, 1.0
        %v2378 = vrcp.pop %v2377
        %v2379 = vmul.f32 1.0, %v2378
        %v2380 = vmul.f32 %v2372, %v2363
        %v2381 = vadd.f32 %v2224, %v2380
        %v2382 = vtanh.pop %v2381
        %v2383 = vsub.f32 1.0, %v2379
        %v2384 = vmul.f32 %v2383, %v2382
        %v2385 = vmul.f32 %v2379, %v2215
        %v2386 = vadd.f32 %v2384, %v2385
        %s2387 = sadd.s32 0, 56
        %s2388 = scalar_lea.vmem [#allocation2], %s2387
        %2389 = vst [vmem:[%s2388] sm:$0xff] %v2386
        %p2390 = scmp.eq.s32.totalorder %s28, 1
        // Predicated region
        $region85: #{tpu_custom_call.1} parent=55 // pred_check
          %p2391 = pneg %p2390
        $region86: #{tpu_custom_call.1} parent=55 // pred_check_branch
          %2393 = sbr.rel (%p2391) target = $region88
        $region87: #{tpu_custom_call.1} parent=55 // pred_region
          %v2394 = vld [vmem:[#allocation2] sm:$0xff]
          %v2395 = vld [vmem:[#allocation2 + $0x8] sm:$0xff]
          %v2396 = vld [vmem:[#allocation2 + $0x10] sm:$0xff]
          %v2397 = vld [vmem:[#allocation2 + $0x18] sm:$0xff]
          %v2398 = vld [vmem:[#allocation2 + $0x20] sm:$0xff]
          %v2399 = vld [vmem:[#allocation2 + $0x28] sm:$0xff]
          %v2400 = vld [vmem:[#allocation2 + $0x30] sm:$0xff]
          %v2401 = vld [vmem:[#allocation2 + $0x38] sm:$0xff]
          %v2402 = vld [vmem:[#allocation12] sm:$0xff]
          %v2403 = vld [vmem:[#allocation12 + $0x8] sm:$0xff]
          %v2404 = vld [vmem:[#allocation12 + $0x10] sm:$0xff]
          %v2405 = vld [vmem:[#allocation12 + $0x18] sm:$0xff]
          %v2406 = vld [vmem:[#allocation12 + $0x20] sm:$0xff]
          %v2407 = vld [vmem:[#allocation12 + $0x28] sm:$0xff]
          %v2408 = vld [vmem:[#allocation12 + $0x30] sm:$0xff]
          %v2409 = vld [vmem:[#allocation12 + $0x38] sm:$0xff]
          %v2410 = vld [vmem:[#allocation12 + $0x40] sm:$0xff]
          %v2411 = vld [vmem:[#allocation12 + $0x48] sm:$0xff]
          %v2412 = vld [vmem:[#allocation12 + $0x50] sm:$0xff]
          %v2413 = vld [vmem:[#allocation12 + $0x58] sm:$0xff]
          %v2414 = vld [vmem:[#allocation12 + $0x60] sm:$0xff]
          %v2415 = vld [vmem:[#allocation12 + $0x68] sm:$0xff]
          %v2416 = vld [vmem:[#allocation12 + $0x70] sm:$0xff]
          %v2417 = vld [vmem:[#allocation12 + $0x78] sm:$0xff]
          %v2418 = vld [vmem:[%s8] sm:$0x1]
          %v2420 = vlaneseq
          %v2421 = vshrl.u32 %v2420, 7
          %v2422 = vsub.s32 0, %v2421
          %v2423 = vrot.slane %v2418, %v2422
          %2425 = vmatprep.subr.mxu0 0.0
          %2426 = vmatpush1.msra.mxu0 %v2417
          %2427 = vmatprep.subr.mxu0 0.0
          %2428 = vmatpush1.msra.mxu0 %v2416
          %2429 = vmatprep.subr.mxu0 0.0
          %2430 = vmatpush1.msra.mxu0 %v2415
          %2431 = vmatprep.subr.mxu0 0.0
          %2432 = vmatpush1.msra.mxu0 %v2414
          %2433 = vmatprep.subr.mxu0 0.0
          %2434 = vmatpush1.msra.mxu0 %v2413
          %2435 = vmatprep.subr.mxu0 0.0
          %2436 = vmatpush1.msra.mxu0 %v2412
          %2437 = vmatprep.subr.mxu0 0.0
          %2438 = vmatpush1.msra.mxu0 %v2411
          %2439 = vmatprep.subr.mxu0 0.0
          %2440 = vmatpush1.msra.mxu0 %v2410
          %2441 = vmatprep.subr.mxu0 0.0
          %2442 = vmatpush1.msra.mxu0 %v2409
          %2443 = vmatprep.subr.mxu0 0.0
          %2444 = vmatpush1.msra.mxu0 %v2408
          %2445 = vmatprep.subr.mxu0 0.0
          %2446 = vmatpush1.msra.mxu0 %v2407
          %2447 = vmatprep.subr.mxu0 0.0
          %2448 = vmatpush1.msra.mxu0 %v2406
          %2449 = vmatprep.subr.mxu0 0.0
          %2450 = vmatpush1.msra.mxu0 %v2405
          %2451 = vmatprep.subr.mxu0 0.0
          %2452 = vmatpush1.msra.mxu0 %v2404
          %2453 = vmatprep.subr.mxu0 0.0
          %2454 = vmatpush1.msra.mxu0 %v2403
          %2455 = vmatprep.subr.mxu0 0.0
          %2456 = vmatpush1.msra.mxu0 %v2402
          %2457 = vmatprep.subr.mxu0 0.0
          %2458 = vmatpush2.msra.mxu0 0.0
          %2459 = vmatprep.subr.mxu0 0.0
          %2460 = vmatpush2.msra.mxu0 0.0
          %2461 = vmatprep.subr.mxu0 0.0
          %2462 = vmatpush2.msra.mxu0 0.0
          %2463 = vmatprep.subr.mxu0 0.0
          %2464 = vmatpush2.msra.mxu0 0.0
          %2465 = vmatprep.subr.mxu0 0.0
          %2466 = vmatpush2.msra.mxu0 0.0
          %2467 = vmatprep.subr.mxu0 0.0
          %2468 = vmatpush2.msra.mxu0 0.0
          %2469 = vmatprep.subr.mxu0 0.0
          %2470 = vmatpush2.msra.mxu0 0.0
          %2471 = vmatprep.subr.mxu0 0.0
          %2472 = vmatpush2.msra.mxu0 0.0
          %2473 = vmatprep.subr.mxu0 0.0
          %2474 = vmatpush2.msra.mxu0 0.0
          %2475 = vmatprep.subr.mxu0 0.0
          %2476 = vmatpush2.msra.mxu0 0.0
          %2477 = vmatprep.subr.mxu0 0.0
          %2478 = vmatpush2.msra.mxu0 0.0
          %2479 = vmatprep.subr.mxu0 0.0
          %2480 = vmatpush2.msra.mxu0 0.0
          %2481 = vmatprep.subr.mxu0 0.0
          %2482 = vmatpush2.msra.mxu0 0.0
          %2483 = vmatprep.subr.mxu0 0.0
          %2484 = vmatpush2.msra.mxu0 0.0
          %2485 = vmatprep.subr.mxu0 0.0
          %2486 = vmatpush2.msra.mxu0 0.0
          %2487 = vmatprep.subr.mxu0 0.0
          %2488 = vmatpush2.msra.mxu0 0.0
          %2489 = vmatprep.mubr.f32.mxu0 0.0
          %2490 = vmatmul.mubr.f32.gmra.mxu0 %v2394
          %v2491 = vpop.f32.mrf.mxu0
          %v2492 = vadd.f32 %v2423, %v2491
          %v2493 = vpop.f32.mrf.mxu0
          %2494 = vmatprep.mubr.f32.mxu0 0.0
          %2495 = vmatmul.mubr.f32.gmra.mxu0 %v2395
          %v2496 = vpop.f32.mrf.mxu0
          %v2497 = vadd.f32 %v2423, %v2496
          %v2498 = vpop.f32.mrf.mxu0
          %2499 = vmatprep.mubr.f32.mxu0 0.0
          %2500 = vmatmul.mubr.f32.gmra.mxu0 %v2396
          %v2501 = vpop.f32.mrf.mxu0
          %v2502 = vadd.f32 %v2423, %v2501
          %v2503 = vpop.f32.mrf.mxu0
          %2504 = vmatprep.mubr.f32.mxu0 0.0
          %2505 = vmatmul.mubr.f32.gmra.mxu0 %v2397
          %v2506 = vpop.f32.mrf.mxu0
          %v2507 = vadd.f32 %v2423, %v2506
          %v2508 = vpop.f32.mrf.mxu0
          %2509 = vmatprep.mubr.f32.mxu0 0.0
          %2510 = vmatmul.mubr.f32.gmra.mxu0 %v2398
          %v2511 = vpop.f32.mrf.mxu0
          %v2512 = vadd.f32 %v2423, %v2511
          %v2513 = vpop.f32.mrf.mxu0
          %2514 = vmatprep.mubr.f32.mxu0 0.0
          %2515 = vmatmul.mubr.f32.gmra.mxu0 %v2399
          %v2516 = vpop.f32.mrf.mxu0
          %v2517 = vadd.f32 %v2423, %v2516
          %v2518 = vpop.f32.mrf.mxu0
          %2519 = vmatprep.mubr.f32.mxu0 0.0
          %2520 = vmatmul.mubr.f32.gmra.mxu0 %v2400
          %v2521 = vpop.f32.mrf.mxu0
          %v2522 = vadd.f32 %v2423, %v2521
          %v2523 = vpop.f32.mrf.mxu0
          %2524 = vmatprep.mubr.f32.mxu0 0.0
          %2525 = vmatmul.mubr.f32.gmra.mxu0 %v2401
          %v2526 = vpop.f32.mrf.mxu0
          %v2527 = vadd.f32 %v2423, %v2526
          %v2528 = vpop.f32.mrf.mxu0
          %2529 = vdwg.mxu0
          %2530 = vmax.xlane.f32.xlu0 %v2492
          %v2531 = vpop.xlane.xlu0 %2530
          %2532 = vmax.xlane.f32.xlu0 %v2497
          %v2533 = vpop.xlane.xlu0 %2532
          %2534 = vmax.xlane.f32.xlu0 %v2502
          %v2535 = vpop.xlane.xlu0 %2534
          %2536 = vmax.xlane.f32.xlu0 %v2507
          %v2537 = vpop.xlane.xlu0 %2536
          %2538 = vmax.xlane.f32.xlu0 %v2512
          %v2539 = vpop.xlane.xlu0 %2538
          %2540 = vmax.xlane.f32.xlu0 %v2517
          %v2541 = vpop.xlane.xlu0 %2540
          %2542 = vmax.xlane.f32.xlu0 %v2522
          %v2543 = vpop.xlane.xlu0 %2542
          %2544 = vmax.xlane.f32.xlu0 %v2527
          %v2545 = vpop.xlane.xlu0 %2544
          %v2546 = vsub.f32 %v2492, %v2531
          %v2547 = vsub.f32 %v2497, %v2533
          %v2548 = vsub.f32 %v2502, %v2535
          %v2549 = vsub.f32 %v2507, %v2537
          %v2550 = vsub.f32 %v2512, %v2539
          %v2551 = vsub.f32 %v2517, %v2541
          %v2552 = vsub.f32 %v2522, %v2543
          %v2553 = vsub.f32 %v2527, %v2545
          %v2554 = vmul.f32 %v2546, 1.442695
          %v2555 = vpow.pop %v2554
          %v2556 = vmul.f32 %v2547, 1.442695
          %v2557 = vpow.pop %v2556
          %v2558 = vmul.f32 %v2548, 1.442695
          %v2559 = vpow.pop %v2558
          %v2560 = vmul.f32 %v2549, 1.442695
          %v2561 = vpow.pop %v2560
          %v2562 = vmul.f32 %v2550, 1.442695
          %v2563 = vpow.pop %v2562
          %v2564 = vmul.f32 %v2551, 1.442695
          %v2565 = vpow.pop %v2564
          %v2566 = vmul.f32 %v2552, 1.442695
          %v2567 = vpow.pop %v2566
          %v2568 = vmul.f32 %v2553, 1.442695
          %v2569 = vpow.pop %v2568
          %2570 = vadd.xlane.f32.xlu0 %v2555
          %v2571 = vpop.xlane.xlu0 %2570
          %2572 = vadd.xlane.f32.xlu0 %v2557
          %v2573 = vpop.xlane.xlu0 %2572
          %2574 = vadd.xlane.f32.xlu0 %v2559
          %v2575 = vpop.xlane.xlu0 %2574
          %2576 = vadd.xlane.f32.xlu0 %v2561
          %v2577 = vpop.xlane.xlu0 %2576
          %2578 = vadd.xlane.f32.xlu0 %v2563
          %v2579 = vpop.xlane.xlu0 %2578
          %2580 = vadd.xlane.f32.xlu0 %v2565
          %v2581 = vpop.xlane.xlu0 %2580
          %2582 = vadd.xlane.f32.xlu0 %v2567
          %v2583 = vpop.xlane.xlu0 %2582
          %2584 = vadd.xlane.f32.xlu0 %v2569
          %v2585 = vpop.xlane.xlu0 %2584
          %v2586 = vlog2.pop %v2571
          %v2587 = vmul.f32 %v2586, 0.6931472
          %v2588 = vlog2.pop %v2573
          %v2589 = vmul.f32 %v2588, 0.6931472
          %v2590 = vlog2.pop %v2575
          %v2591 = vmul.f32 %v2590, 0.6931472
          %v2592 = vlog2.pop %v2577
          %v2593 = vmul.f32 %v2592, 0.6931472
          %v2594 = vlog2.pop %v2579
          %v2595 = vmul.f32 %v2594, 0.6931472
          %v2596 = vlog2.pop %v2581
          %v2597 = vmul.f32 %v2596, 0.6931472
          %v2598 = vlog2.pop %v2583
          %v2599 = vmul.f32 %v2598, 0.6931472
          %v2600 = vlog2.pop %v2585
          %v2601 = vmul.f32 %v2600, 0.6931472
          %v2602 = vsub.f32 %v2546, %v2587
          %v2603 = vsub.f32 %v2547, %v2589
          %v2604 = vsub.f32 %v2548, %v2591
          %v2605 = vsub.f32 %v2549, %v2593
          %v2606 = vsub.f32 %v2550, %v2595
          %v2607 = vsub.f32 %v2551, %v2597
          %v2608 = vsub.f32 %v2552, %v2599
          %v2609 = vsub.f32 %v2553, %v2601
          %2610 = vst [vmem:[#allocation13] sm:$0xff] %v2602
          %2611 = vst [vmem:[#allocation13 + $0x8] sm:$0xff] %v2603
          %2612 = vst [vmem:[#allocation13 + $0x10] sm:$0xff] %v2604
          %2613 = vst [vmem:[#allocation13 + $0x18] sm:$0xff] %v2605
          %2614 = vst [vmem:[#allocation13 + $0x20] sm:$0xff] %v2606
          %2615 = vst [vmem:[#allocation13 + $0x28] sm:$0xff] %v2607
          %2616 = vst [vmem:[#allocation13 + $0x30] sm:$0xff] %v2608
          %2617 = vst [vmem:[#allocation13 + $0x38] sm:$0xff] %v2609
        $region88: #{tpu_custom_call.1} parent=55 // pred_fallthru
          _
        // Predicated region
        $region89: #{tpu_custom_call.1} parent=55 // pred_check
          %p2618 = pneg %p267
        $region90: #{tpu_custom_call.1} parent=55 // pred_check_branch
          %2620 = sbr.rel (%p2618) target = $region92
        $region91: #{tpu_custom_call.1} parent=55 // pred_region
          %s2622 = ssub.s32 1024, 1024
          %2623 = vsyncadd [#allocation6], %s2622
          %s2624 = smul.addr %s27, 8
          %s2625 = smul.addr %s2624, 128
          %s2626 = scalar_lea.hbm %s9, %s2625
          %s2627 = sshll.u32 [#allocation13], 4
          %s2628 = int_to_ptr.vmem [resolvable:$true] %s2627
          %2633 = dma.vmem_to_hbm [thread:$0]  %s2628, 1024, %s2626, [#allocation6], 128, 128, 8
        $region92: #{tpu_custom_call.1} parent=55 // pred_fallthru
          _
        // Predicated region
        $region93: #{tpu_custom_call.1} parent=55 // pred_check
          %p2634 = pneg %p267
        $region94: #{tpu_custom_call.1} parent=55 // pred_check_branch
          %2636 = sbr.rel (%p2634) target = $region96
        $region95: #{tpu_custom_call.1} parent=55 // pred_region
          %2637 = dma.done [#allocation6], 1024
        $region96: #{tpu_custom_call.1} parent=55 // pred_fallthru
          _
      $region56: #{tpu_custom_call.1} parent=5 // pred_fallthru
        _
      %p2638 = scmp.le.s32.totalorder 2, %s18
      // Predicated region
      $region97: #{tpu_custom_call.1} parent=5 // pred_check
        %p2639 = pneg %p2638
      $region98: #{tpu_custom_call.1} parent=5 // pred_check_branch
        %2641 = sbr.rel (%p2639) target = $region100
      $region99: #{tpu_custom_call.1} parent=5 // pred_region
        %s2642 = ssub.s32 %s18, 2
      $region100: #{tpu_custom_call.1} parent=5 // pred_fallthru
        _
    $region6: #{tpu_custom_call.1} parent=1 // loop_footer
      %s22 = sadd.s32 1, %s18
    $region7: #{tpu_custom_call.1} parent=1 // loop_footer_branch
      %17 = sbr.rel target = $region3
    $region8: #{tpu_custom_call.1} parent=1 // loop_exit
      _
    %2643 = vsyncpa [#allocation5], 1
    %s2644 = scalar_lea.sflag [#allocation5], 1
    %2645 = vsyncpa %s2644, 1
    %2646 = vsyncpa [#allocation8], 1
    %2647 = vsyncpa [#allocation6], 1
    %s2648 = scalar_lea.sflag [#allocation6], 1
    %2649 = vsyncpa %s2648, 1

</llo_original>
